<compile_context>
chip_gen: v5e
topology: v5e:2x2
jax: 0.10.0
libtpu: 0.0.40
codegen_flags: <defaults>
</compile_context>

<pallas_src>
import jax
import jax.numpy as jnp
import numpy as np
from jax.experimental import pallas as pl
from jax.experimental.pallas import tpu as pltpu


# ----------------------------------------------------------------------------
# The single fused kernel
# ----------------------------------------------------------------------------
def _cifarnet_kernel(x_ref, wb1e_ref, wb1o_ref, wb2e_ref, wb2o_ref,
                     w1p_ref, w2t_ref, bc1_ref, bc2_ref, bf1_ref, bf2_ref,
                     preds_ref, feat_ref):
    """Whole CifarNet forward for one batch tile of NB images.

    Layouts inside the kernel (NB = images per grid step, multiple of 8):
      x_ref : (32, NB, 96)    rows(h, n)   lanes (w, cin)       raw image
      a1    : (14*NB, 84)     rows(y, n)   lanes (x, 6 ch)      conv1+pool out
      a2    : (5*NB, 80)      rows(y, n)   lanes (x, 16 ch)     conv2+pool out
      h1/h2 : (NB, 120/84)    rows n                            MLP head
    Convs are sums over the 5 kernel rows of lane-dense matmuls against
    banded weight matrices; the even/odd banded pair realises the pool over
    output-x as an elementwise max, the pool over output-y is a max of
    aligned 8-row groups.  Bias/ReLU commute with max, so they run once on
    the pooled result (== torch's pool(relu(conv+b)) ).
    """
    nb = x_ref.shape[1]
    f32 = jnp.float32

    # ---- conv1: 3x32x32 -> 6x28x28 (valid 5x5) + 2x2/2 max-pool -> 6x14x14 ----
    x = x_ref[...].reshape(32 * nb, 96)                       # rows = (h, n)
    acc_e = jnp.zeros((28 * nb, 84), f32)
    acc_o = jnp.zeros((28 * nb, 84), f32)
    for kh in range(5):
        xs = x[kh * nb:(kh + 28) * nb, :]                     # rows = (oh, n)
        acc_e = acc_e + jnp.dot(xs, wb1e_ref[kh], preferred_element_type=f32)
        acc_o = acc_o + jnp.dot(xs, wb1o_ref[kh], preferred_element_type=f32)
    y1 = jnp.maximum(acc_e, acc_o)                            # pool over out-x
    y1 = y1.reshape(14, 2 * nb, 84)
    y1 = jnp.maximum(y1[:, :nb, :], y1[:, nb:, :])            # pool over out-y
    a1 = jnp.maximum(y1.reshape(14 * nb, 84) + bc1_ref[...], 0.0)

    # ---- conv2: 6x14x14 -> 16x10x10 (valid 5x5) + 2x2/2 max-pool -> 16x5x5 ----
    acc2e = jnp.zeros((10 * nb, 80), f32)
    acc2o = jnp.zeros((10 * nb, 80), f32)
    for kh in range(5):
        xs = a1[kh * nb:(kh + 10) * nb, :]
        acc2e = acc2e + jnp.dot(xs, wb2e_ref[kh], preferred_element_type=f32)
        acc2o = acc2o + jnp.dot(xs, wb2o_ref[kh], preferred_element_type=f32)
    y2 = jnp.maximum(acc2e, acc2o)
    y2 = y2.reshape(5, 2 * nb, 80)
    y2 = jnp.maximum(y2[:, :nb, :], y2[:, nb:, :])
    a2 = jnp.maximum(y2.reshape(5 * nb, 80) + bc2_ref[...], 0.0)

    # ---- fc1 (400->120; torch's NCHW flatten folded into w1p) + fc2 (120->84) ----
    h1 = jnp.zeros((nb, 120), f32)
    for i2 in range(5):
        h1 = h1 + jnp.dot(a2[i2 * nb:(i2 + 1) * nb, :], w1p_ref[i2],
                          preferred_element_type=f32)
    h1 = jnp.maximum(h1 + bf1_ref[...], 0.0)
    h2 = jnp.dot(h1, w2t_ref[...], preferred_element_type=f32) + bf2_ref[...]
    h2 = jnp.maximum(h2, 0.0)
    feat_ref[...] = h2

    # ---- log_softmax over the 84 features ----
    m = jnp.max(h2, axis=1, keepdims=True)
    s = h2 - m
    lse = jnp.log(jnp.sum(jnp.exp(s), axis=1, keepdims=True))
    preds_ref[...] = s - lse


# ----------------------------------------------------------------------------
# Weight preprocessing (pure XLA on tiny tensors, done once per call)
# ----------------------------------------------------------------------------
def _banded_conv_weights(w, in_w, parity):
    """Banded weight matrices for conv-as-matmul with fused stride-2 pool.

    w: torch conv weight (Cout, Cin, KH, KW).  Returns an array of shape
    (KH, in_w*Cin, (OW/2)*Cout) where
        out[kh, w_in*Cin + ci, j*Cout + co] = w[co, ci, kh, w_in - (2j+parity)]
    (0 where the tap is out of band), so that
        conv_out[(oh, n), (2j+parity, co)] = sum_kh  X_rows(oh+kh) @ out[kh].
    """
    cout, cin, k_h, k_w = w.shape
    ow = in_w - k_w + 1
    owp = ow // 2
    kw_idx = jnp.arange(k_w)
    w_idx = jnp.arange(in_w)
    j_idx = jnp.arange(owp)
    sel = (w_idx[None, :, None] ==
           (2 * j_idx[None, None, :] + parity + kw_idx[:, None, None])
           ).astype(w.dtype)                                   # (KW, in_w, OWp)
    r = jnp.einsum("awj,oiha->hwijo", sel, w)                  # (KH,in_w,Cin,OWp,Cout)
    return r.reshape(k_h, in_w * cin, owp * cout)


def _pick_nb(n):
    """Images per grid step: multiple of 8, capped, >=2 grid steps when n>=16
    so the 'parallel' batch axis can shard across v7x's two TensorCores."""
    if n <= 8:
        return 8
    half = -(-n // 2)
    return max(8, min(32, ((half + 7) // 8) * 8))


def _full_spec(arr):
    nd = arr.ndim
    return pl.BlockSpec(arr.shape, lambda i, _nd=nd: (0,) * _nd)


# ----------------------------------------------------------------------------
# CifarNet forward (matches the PyTorch module semantics)
# ----------------------------------------------------------------------------
def cifarnet_forward(x_nchw, params):
    n, c, h, w = x_nchw.shape
    if (c, h, w) != (3, 32, 32):
        # fc1 hardcodes 16*5*5; the fused even pooling assumes 32x32 input.
        raise ValueError("CifarNet requires (N, 3, 32, 32) inputs, got "
                         f"{x_nchw.shape}")
    f32 = jnp.float32

    nb = _pick_nb(n)
    grid_n = -(-n // nb)
    npad = grid_n * nb
    x = x_nchw
    if npad != n:
        x = jnp.pad(x, ((0, npad - n), (0, 0), (0, 0), (0, 0)))
    # Thin XLA glue (~12 KB/image): (N,C,H,W) -> (H, N, W*C), lanes = (w, cin).
    x_t = jnp.transpose(x, (2, 0, 3, 1)).reshape(32, npad, 96).astype(f32)

    # Expanded weights (all tiny; fetched into VMEM once and reused every step).
    wb1e = _banded_conv_weights(params["conv1_w"].astype(f32), 32, 0)  # (5,96,84)
    wb1o = _banded_conv_weights(params["conv1_w"].astype(f32), 32, 1)
    wb2e = _banded_conv_weights(params["conv2_w"].astype(f32), 14, 0)  # (5,84,80)
    wb2o = _banded_conv_weights(params["conv2_w"].astype(f32), 14, 1)
    # fc1 with torch's NCHW flatten (co2*25 + i2*5 + j2) folded into the layout
    # the kernel produces: rows grouped by i2, lanes (j2, co2).
    w1p = (params["fc1_w"].astype(f32).reshape(120, 16, 5, 5)
           .transpose(2, 3, 1, 0).reshape(5, 80, 120))
    w2t = params["fc2_w"].astype(f32).T                                # (120, 84)
    bc1 = jnp.tile(params["conv1_b"].astype(f32), 14).reshape(1, 84)
    bc2 = jnp.tile(params["conv2_b"].astype(f32), 5).reshape(1, 80)
    bf1 = params["fc1_b"].astype(f32).reshape(1, 120)
    bf2 = params["fc2_b"].astype(f32).reshape(1, 84)

    preds, feat = pl.pallas_call(
        _cifarnet_kernel,
        out_shape=(jax.ShapeDtypeStruct((npad, 84), f32),
                   jax.ShapeDtypeStruct((npad, 84), f32)),
        grid=(grid_n,),
        in_specs=[
            pl.BlockSpec((32, nb, 96), lambda i: (0, i, 0)),   # input images
            _full_spec(wb1e), _full_spec(wb1o),
            _full_spec(wb2e), _full_spec(wb2o),
            _full_spec(w1p), _full_spec(w2t),
            _full_spec(bc1), _full_spec(bc2),
            _full_spec(bf1), _full_spec(bf2),
        ],
        out_specs=(pl.BlockSpec((nb, 84), lambda i: (i, 0)),
                   pl.BlockSpec((nb, 84), lambda i: (i, 0))),
        compiler_params=pltpu.CompilerParams(
            dimension_semantics=("parallel",),
            vmem_limit_bytes=48 * 1024 * 1024),
    )(x_t, wb1e, wb1o, wb2e, wb2o, w1p, w2t, bc1, bc2, bf1, bf2)

    if npad != n:
        preds, feat = preds[:n], feat[:n]
    # TODO(synk): self.fc (84->10) is computed then discarded in the torch
    # forward (overwritten by log_softmax(x)); skipped here as dead code.
    return preds, feat


# ----------------------------------------------------------------------------
# Pure-JAX reference for validation
# ----------------------------------------------------------------------------
def _ref_pool(x):
    n, h, w, c = x.shape
    return jnp.max(x.reshape(n, h // 2, 2, w // 2, 2, c), axis=(2, 4))


def reference_forward(x_nchw, params):
    x = jnp.transpose(x_nchw, (0, 2, 3, 1))
    dn = ("NHWC", "HWIO", "NHWC")
    y = jax.lax.conv_general_dilated(
        x, jnp.transpose(params["conv1_w"], (2, 3, 1, 0)),
        (1, 1), "VALID", dimension_numbers=dn) + params["conv1_b"]
    y = _ref_pool(jax.nn.relu(y))
    y = jax.lax.conv_general_dilated(
        y, jnp.transpose(params["conv2_w"], (2, 3, 1, 0)),
        (1, 1), "VALID", dimension_numbers=dn) + params["conv2_b"]
    y = _ref_pool(jax.nn.relu(y))
    flat = jnp.transpose(y, (0, 3, 1, 2)).reshape(x.shape[0], 16 * 5 * 5)
    h1 = jax.nn.relu(flat @ params["fc1_w"].T + params["fc1_b"])
    h2 = jax.nn.relu(h1 @ params["fc2_w"].T + params["fc2_b"])
    return jax.nn.log_softmax(h2, axis=1), h2


# ----------------------------------------------------------------------------
def make_params():
    keys = jax.random.split(jax.random.PRNGKey(0), 11)
    f32 = jnp.float32
    return {
        "conv1_w": 0.10 * jax.random.normal(keys[0], (6, 3, 5, 5), f32),
        "conv1_b": 0.10 * jax.random.normal(keys[1], (6,), f32),
        "conv2_w": 0.05 * jax.random.normal(keys[2], (16, 6, 5, 5), f32),
        "conv2_b": 0.05 * jax.random.normal(keys[3], (16,), f32),
        "fc1_w": 0.05 * jax.random.normal(keys[4], (120, 400), f32),
        "fc1_b": 0.05 * jax.random.normal(keys[5], (120,), f32),
        "fc2_w": 0.05 * jax.random.normal(keys[6], (84, 120), f32),
        "fc2_b": 0.05 * jax.random.normal(keys[7], (84,), f32),
        # fc (84->10) weights exist in the module but are dead in forward().
        "fc_w": 0.05 * jax.random.normal(keys[8], (10, 84), f32),
        "fc_b": 0.05 * jax.random.normal(keys[9], (10,), f32),
    }


if __name__ == "__main__":
    params = make_params()
    # batch_size=16 matches the torch module constant; gives a 2-step grid.
    x = jax.random.normal(jax.random.PRNGKey(0), (16, 3, 32, 32), jnp.float32)

    fwd = jax.jit(cifarnet_forward)
    preds, feat = jax.block_until_ready(fwd(x, params))
    ref_preds, ref_feat = jax.block_until_ready(reference_forward(x, params))

    assert preds.shape == (16, 84) and feat.shape == (16, 84)
    np.testing.assert_allclose(np.asarray(feat), np.asarray(ref_feat),
                               rtol=2e-2, atol=2e-2)
    np.testing.assert_allclose(np.asarray(preds), np.asarray(ref_preds),
                               rtol=2e-2, atol=2e-2)
    print("KERNEL_OK")
</pallas_src>

<mosaic_0001>
module attributes {stable_mosaic.version = 11 : i64} {
  func.func @_cifarnet_kernel(%arg0: i32, %arg1: memref<32x8x96xf32, #tpu.memory_space<vmem>>, %arg2: memref<5x96x84xf32, #tpu.memory_space<vmem>>, %arg3: memref<5x96x84xf32, #tpu.memory_space<vmem>>, %arg4: memref<5x84x80xf32, #tpu.memory_space<vmem>>, %arg5: memref<5x84x80xf32, #tpu.memory_space<vmem>>, %arg6: memref<5x80x120xf32, #tpu.memory_space<vmem>>, %arg7: memref<120x84xf32, #tpu.memory_space<vmem>>, %arg8: memref<1x84xf32, #tpu.memory_space<vmem>>, %arg9: memref<1x80xf32, #tpu.memory_space<vmem>>, %arg10: memref<1x120xf32, #tpu.memory_space<vmem>>, %arg11: memref<1x84xf32, #tpu.memory_space<vmem>>, %arg12: memref<8x84xf32, #tpu.memory_space<vmem>>, %arg13: memref<8x84xf32, #tpu.memory_space<vmem>>) attributes {dimension_semantics = [#tpu.dimension_semantics<parallel>], iteration_bounds = array<i64: 2>, scalar_prefetch = 0 : i64, scratch_operands = 0 : i64, tpu.core_type = #tpu.core_type<tc>, window_params = [{transform_indices = @transform_0, window_bounds = array<i64: 32, 8, 96>}, {pipeline_mode = #tpu.pipeline_mode<synchronous>, transform_indices = @transform_1, window_bounds = array<i64: 5, 96, 84>}, {pipeline_mode = #tpu.pipeline_mode<synchronous>, transform_indices = @transform_2, window_bounds = array<i64: 5, 96, 84>}, {pipeline_mode = #tpu.pipeline_mode<synchronous>, transform_indices = @transform_3, window_bounds = array<i64: 5, 84, 80>}, {pipeline_mode = #tpu.pipeline_mode<synchronous>, transform_indices = @transform_4, window_bounds = array<i64: 5, 84, 80>}, {pipeline_mode = #tpu.pipeline_mode<synchronous>, transform_indices = @transform_5, window_bounds = array<i64: 5, 80, 120>}, {pipeline_mode = #tpu.pipeline_mode<synchronous>, transform_indices = @transform_6, window_bounds = array<i64: 120, 84>}, {pipeline_mode = #tpu.pipeline_mode<synchronous>, transform_indices = @transform_7, window_bounds = array<i64: 1, 84>}, {pipeline_mode = #tpu.pipeline_mode<synchronous>, transform_indices = @transform_8, window_bounds = array<i64: 1, 80>}, {pipeline_mode = #tpu.pipeline_mode<synchronous>, transform_indices = @transform_9, window_bounds = array<i64: 1, 120>}, {pipeline_mode = #tpu.pipeline_mode<synchronous>, transform_indices = @transform_10, window_bounds = array<i64: 1, 84>}, {transform_indices = @transform_11, window_bounds = array<i64: 8, 84>}, {transform_indices = @transform_12, window_bounds = array<i64: 8, 84>}]} {
    %c0 = arith.constant 0 : index
    %c0_0 = arith.constant 0 : index
    %c0_1 = arith.constant 0 : index
    %0 = vector.load %arg1[%c0, %c0_0, %c0_1] : memref<32x8x96xf32, #tpu.memory_space<vmem>>, vector<32x8x96xf32>
    %1 = vector.shape_cast %0 : vector<32x8x96xf32> to vector<256x96xf32>
    %cst = arith.constant 0.000000e+00 : f32
    %2 = vector.broadcast %cst : f32 to vector<224x84xf32>
    %cst_2 = arith.constant 0.000000e+00 : f32
    %3 = vector.broadcast %cst_2 : f32 to vector<224x84xf32>
    %4 = vector.extract_strided_slice %1 {offsets = [0, 0], sizes = [224, 96], strides = [1, 1]} : vector<256x96xf32> to vector<224x96xf32>
    %c0_3 = arith.constant 0 : index
    %c0_4 = arith.constant 0 : index
    %c0_5 = arith.constant 0 : index
    %5 = vector.load %arg2[%c0_3, %c0_4, %c0_5] : memref<5x96x84xf32, #tpu.memory_space<vmem>>, vector<1x96x84xf32>
    %6 = vector.shape_cast %5 : vector<1x96x84xf32> to vector<96x84xf32>
    %cst_6 = arith.constant dense<0.000000e+00> : vector<224x84xf32>
    %7 = tpu.matmul %4, %6, %cst_6 {dimension_numbers = #tpu.dot_dimension_numbers<[1], [0], [0], [1], [0, 0, 1, 1], [], []>} : vector<224x96xf32>, vector<96x84xf32>, vector<224x84xf32> -> vector<224x84xf32>
    %8 = arith.addf %2, %7 : vector<224x84xf32>
    %c0_7 = arith.constant 0 : index
    %c0_8 = arith.constant 0 : index
    %c0_9 = arith.constant 0 : index
    %9 = vector.load %arg3[%c0_7, %c0_8, %c0_9] : memref<5x96x84xf32, #tpu.memory_space<vmem>>, vector<1x96x84xf32>
    %10 = vector.shape_cast %9 : vector<1x96x84xf32> to vector<96x84xf32>
    %cst_10 = arith.constant dense<0.000000e+00> : vector<224x84xf32>
    %11 = tpu.matmul %4, %10, %cst_10 {dimension_numbers = #tpu.dot_dimension_numbers<[1], [0], [0], [1], [0, 0, 1, 1], [], []>} : vector<224x96xf32>, vector<96x84xf32>, vector<224x84xf32> -> vector<224x84xf32>
    %12 = arith.addf %3, %11 : vector<224x84xf32>
    %13 = vector.extract_strided_slice %1 {offsets = [8, 0], sizes = [224, 96], strides = [1, 1]} : vector<256x96xf32> to vector<224x96xf32>
    %c1 = arith.constant 1 : index
    %c0_11 = arith.constant 0 : index
    %c0_12 = arith.constant 0 : index
    %14 = vector.load %arg2[%c1, %c0_11, %c0_12] : memref<5x96x84xf32, #tpu.memory_space<vmem>>, vector<1x96x84xf32>
    %15 = vector.shape_cast %14 : vector<1x96x84xf32> to vector<96x84xf32>
    %cst_13 = arith.constant dense<0.000000e+00> : vector<224x84xf32>
    %16 = tpu.matmul %13, %15, %cst_13 {dimension_numbers = #tpu.dot_dimension_numbers<[1], [0], [0], [1], [0, 0, 1, 1], [], []>} : vector<224x96xf32>, vector<96x84xf32>, vector<224x84xf32> -> vector<224x84xf32>
    %17 = arith.addf %8, %16 : vector<224x84xf32>
    %c1_14 = arith.constant 1 : index
    %c0_15 = arith.constant 0 : index
    %c0_16 = arith.constant 0 : index
    %18 = vector.load %arg3[%c1_14, %c0_15, %c0_16] : memref<5x96x84xf32, #tpu.memory_space<vmem>>, vector<1x96x84xf32>
    %19 = vector.shape_cast %18 : vector<1x96x84xf32> to vector<96x84xf32>
    %cst_17 = arith.constant dense<0.000000e+00> : vector<224x84xf32>
    %20 = tpu.matmul %13, %19, %cst_17 {dimension_numbers = #tpu.dot_dimension_numbers<[1], [0], [0], [1], [0, 0, 1, 1], [], []>} : vector<224x96xf32>, vector<96x84xf32>, vector<224x84xf32> -> vector<224x84xf32>
    %21 = arith.addf %12, %20 : vector<224x84xf32>
    %22 = vector.extract_strided_slice %1 {offsets = [16, 0], sizes = [224, 96], strides = [1, 1]} : vector<256x96xf32> to vector<224x96xf32>
    %c2 = arith.constant 2 : index
    %c0_18 = arith.constant 0 : index
    %c0_19 = arith.constant 0 : index
    %23 = vector.load %arg2[%c2, %c0_18, %c0_19] : memref<5x96x84xf32, #tpu.memory_space<vmem>>, vector<1x96x84xf32>
    %24 = vector.shape_cast %23 : vector<1x96x84xf32> to vector<96x84xf32>
    %cst_20 = arith.constant dense<0.000000e+00> : vector<224x84xf32>
    %25 = tpu.matmul %22, %24, %cst_20 {dimension_numbers = #tpu.dot_dimension_numbers<[1], [0], [0], [1], [0, 0, 1, 1], [], []>} : vector<224x96xf32>, vector<96x84xf32>, vector<224x84xf32> -> vector<224x84xf32>
    %26 = arith.addf %17, %25 : vector<224x84xf32>
    %c2_21 = arith.constant 2 : index
    %c0_22 = arith.constant 0 : index
    %c0_23 = arith.constant 0 : index
    %27 = vector.load %arg3[%c2_21, %c0_22, %c0_23] : memref<5x96x84xf32, #tpu.memory_space<vmem>>, vector<1x96x84xf32>
    %28 = vector.shape_cast %27 : vector<1x96x84xf32> to vector<96x84xf32>
    %cst_24 = arith.constant dense<0.000000e+00> : vector<224x84xf32>
    %29 = tpu.matmul %22, %28, %cst_24 {dimension_numbers = #tpu.dot_dimension_numbers<[1], [0], [0], [1], [0, 0, 1, 1], [], []>} : vector<224x96xf32>, vector<96x84xf32>, vector<224x84xf32> -> vector<224x84xf32>
    %30 = arith.addf %21, %29 : vector<224x84xf32>
    %31 = vector.extract_strided_slice %1 {offsets = [24, 0], sizes = [224, 96], strides = [1, 1]} : vector<256x96xf32> to vector<224x96xf32>
    %c3 = arith.constant 3 : index
    %c0_25 = arith.constant 0 : index
    %c0_26 = arith.constant 0 : index
    %32 = vector.load %arg2[%c3, %c0_25, %c0_26] : memref<5x96x84xf32, #tpu.memory_space<vmem>>, vector<1x96x84xf32>
    %33 = vector.shape_cast %32 : vector<1x96x84xf32> to vector<96x84xf32>
    %cst_27 = arith.constant dense<0.000000e+00> : vector<224x84xf32>
    %34 = tpu.matmul %31, %33, %cst_27 {dimension_numbers = #tpu.dot_dimension_numbers<[1], [0], [0], [1], [0, 0, 1, 1], [], []>} : vector<224x96xf32>, vector<96x84xf32>, vector<224x84xf32> -> vector<224x84xf32>
    %35 = arith.addf %26, %34 : vector<224x84xf32>
    %c3_28 = arith.constant 3 : index
    %c0_29 = arith.constant 0 : index
    %c0_30 = arith.constant 0 : index
    %36 = vector.load %arg3[%c3_28, %c0_29, %c0_30] : memref<5x96x84xf32, #tpu.memory_space<vmem>>, vector<1x96x84xf32>
    %37 = vector.shape_cast %36 : vector<1x96x84xf32> to vector<96x84xf32>
    %cst_31 = arith.constant dense<0.000000e+00> : vector<224x84xf32>
    %38 = tpu.matmul %31, %37, %cst_31 {dimension_numbers = #tpu.dot_dimension_numbers<[1], [0], [0], [1], [0, 0, 1, 1], [], []>} : vector<224x96xf32>, vector<96x84xf32>, vector<224x84xf32> -> vector<224x84xf32>
    %39 = arith.addf %30, %38 : vector<224x84xf32>
    %40 = vector.extract_strided_slice %1 {offsets = [32, 0], sizes = [224, 96], strides = [1, 1]} : vector<256x96xf32> to vector<224x96xf32>
    %c4 = arith.constant 4 : index
    %c0_32 = arith.constant 0 : index
    %c0_33 = arith.constant 0 : index
    %41 = vector.load %arg2[%c4, %c0_32, %c0_33] : memref<5x96x84xf32, #tpu.memory_space<vmem>>, vector<1x96x84xf32>
    %42 = vector.shape_cast %41 : vector<1x96x84xf32> to vector<96x84xf32>
    %cst_34 = arith.constant dense<0.000000e+00> : vector<224x84xf32>
    %43 = tpu.matmul %40, %42, %cst_34 {dimension_numbers = #tpu.dot_dimension_numbers<[1], [0], [0], [1], [0, 0, 1, 1], [], []>} : vector<224x96xf32>, vector<96x84xf32>, vector<224x84xf32> -> vector<224x84xf32>
    %44 = arith.addf %35, %43 : vector<224x84xf32>
    %c4_35 = arith.constant 4 : index
    %c0_36 = arith.constant 0 : index
    %c0_37 = arith.constant 0 : index
    %45 = vector.load %arg3[%c4_35, %c0_36, %c0_37] : memref<5x96x84xf32, #tpu.memory_space<vmem>>, vector<1x96x84xf32>
    %46 = vector.shape_cast %45 : vector<1x96x84xf32> to vector<96x84xf32>
    %cst_38 = arith.constant dense<0.000000e+00> : vector<224x84xf32>
    %47 = tpu.matmul %40, %46, %cst_38 {dimension_numbers = #tpu.dot_dimension_numbers<[1], [0], [0], [1], [0, 0, 1, 1], [], []>} : vector<224x96xf32>, vector<96x84xf32>, vector<224x84xf32> -> vector<224x84xf32>
    %48 = arith.addf %39, %47 : vector<224x84xf32>
    %49 = arith.maximumf %44, %48 : vector<224x84xf32>
    %50 = vector.shape_cast %49 : vector<224x84xf32> to vector<14x16x84xf32>
    %51 = vector.extract_strided_slice %50 {offsets = [0, 0, 0], sizes = [14, 8, 84], strides = [1, 1, 1]} : vector<14x16x84xf32> to vector<14x8x84xf32>
    %52 = vector.extract_strided_slice %50 {offsets = [0, 8, 0], sizes = [14, 8, 84], strides = [1, 1, 1]} : vector<14x16x84xf32> to vector<14x8x84xf32>
    %53 = arith.maximumf %51, %52 : vector<14x8x84xf32>
    %54 = vector.shape_cast %53 : vector<14x8x84xf32> to vector<112x84xf32>
    %c0_39 = arith.constant 0 : index
    %c0_40 = arith.constant 0 : index
    %55 = vector.load %arg8[%c0_39, %c0_40] : memref<1x84xf32, #tpu.memory_space<vmem>>, vector<1x84xf32>
    %56 = vector.broadcast %55 : vector<1x84xf32> to vector<112x84xf32>
    %57 = arith.addf %54, %56 : vector<112x84xf32>
    %cst_41 = arith.constant 0.000000e+00 : f32
    %58 = vector.broadcast %cst_41 : f32 to vector<112x84xf32>
    %59 = arith.maximumf %57, %58 : vector<112x84xf32>
    %cst_42 = arith.constant 0.000000e+00 : f32
    %60 = vector.broadcast %cst_42 : f32 to vector<80x80xf32>
    %cst_43 = arith.constant 0.000000e+00 : f32
    %61 = vector.broadcast %cst_43 : f32 to vector<80x80xf32>
    %62 = vector.extract_strided_slice %59 {offsets = [0, 0], sizes = [80, 84], strides = [1, 1]} : vector<112x84xf32> to vector<80x84xf32>
    %c0_44 = arith.constant 0 : index
    %c0_45 = arith.constant 0 : index
    %c0_46 = arith.constant 0 : index
    %63 = vector.load %arg4[%c0_44, %c0_45, %c0_46] : memref<5x84x80xf32, #tpu.memory_space<vmem>>, vector<1x84x80xf32>
    %64 = vector.shape_cast %63 : vector<1x84x80xf32> to vector<84x80xf32>
    %cst_47 = arith.constant dense<0.000000e+00> : vector<80x80xf32>
    %65 = tpu.matmul %62, %64, %cst_47 {dimension_numbers = #tpu.dot_dimension_numbers<[1], [0], [0], [1], [0, 0, 1, 1], [], []>} : vector<80x84xf32>, vector<84x80xf32>, vector<80x80xf32> -> vector<80x80xf32>
    %66 = arith.addf %60, %65 : vector<80x80xf32>
    %c0_48 = arith.constant 0 : index
    %c0_49 = arith.constant 0 : index
    %c0_50 = arith.constant 0 : index
    %67 = vector.load %arg5[%c0_48, %c0_49, %c0_50] : memref<5x84x80xf32, #tpu.memory_space<vmem>>, vector<1x84x80xf32>
    %68 = vector.shape_cast %67 : vector<1x84x80xf32> to vector<84x80xf32>
    %cst_51 = arith.constant dense<0.000000e+00> : vector<80x80xf32>
    %69 = tpu.matmul %62, %68, %cst_51 {dimension_numbers = #tpu.dot_dimension_numbers<[1], [0], [0], [1], [0, 0, 1, 1], [], []>} : vector<80x84xf32>, vector<84x80xf32>, vector<80x80xf32> -> vector<80x80xf32>
    %70 = arith.addf %61, %69 : vector<80x80xf32>
    %71 = vector.extract_strided_slice %59 {offsets = [8, 0], sizes = [80, 84], strides = [1, 1]} : vector<112x84xf32> to vector<80x84xf32>
    %c1_52 = arith.constant 1 : index
    %c0_53 = arith.constant 0 : index
    %c0_54 = arith.constant 0 : index
    %72 = vector.load %arg4[%c1_52, %c0_53, %c0_54] : memref<5x84x80xf32, #tpu.memory_space<vmem>>, vector<1x84x80xf32>
    %73 = vector.shape_cast %72 : vector<1x84x80xf32> to vector<84x80xf32>
    %cst_55 = arith.constant dense<0.000000e+00> : vector<80x80xf32>
    %74 = tpu.matmul %71, %73, %cst_55 {dimension_numbers = #tpu.dot_dimension_numbers<[1], [0], [0], [1], [0, 0, 1, 1], [], []>} : vector<80x84xf32>, vector<84x80xf32>, vector<80x80xf32> -> vector<80x80xf32>
    %75 = arith.addf %66, %74 : vector<80x80xf32>
    %c1_56 = arith.constant 1 : index
    %c0_57 = arith.constant 0 : index
    %c0_58 = arith.constant 0 : index
    %76 = vector.load %arg5[%c1_56, %c0_57, %c0_58] : memref<5x84x80xf32, #tpu.memory_space<vmem>>, vector<1x84x80xf32>
    %77 = vector.shape_cast %76 : vector<1x84x80xf32> to vector<84x80xf32>
    %cst_59 = arith.constant dense<0.000000e+00> : vector<80x80xf32>
    %78 = tpu.matmul %71, %77, %cst_59 {dimension_numbers = #tpu.dot_dimension_numbers<[1], [0], [0], [1], [0, 0, 1, 1], [], []>} : vector<80x84xf32>, vector<84x80xf32>, vector<80x80xf32> -> vector<80x80xf32>
    %79 = arith.addf %70, %78 : vector<80x80xf32>
    %80 = vector.extract_strided_slice %59 {offsets = [16, 0], sizes = [80, 84], strides = [1, 1]} : vector<112x84xf32> to vector<80x84xf32>
    %c2_60 = arith.constant 2 : index
    %c0_61 = arith.constant 0 : index
    %c0_62 = arith.constant 0 : index
    %81 = vector.load %arg4[%c2_60, %c0_61, %c0_62] : memref<5x84x80xf32, #tpu.memory_space<vmem>>, vector<1x84x80xf32>
    %82 = vector.shape_cast %81 : vector<1x84x80xf32> to vector<84x80xf32>
    %cst_63 = arith.constant dense<0.000000e+00> : vector<80x80xf32>
    %83 = tpu.matmul %80, %82, %cst_63 {dimension_numbers = #tpu.dot_dimension_numbers<[1], [0], [0], [1], [0, 0, 1, 1], [], []>} : vector<80x84xf32>, vector<84x80xf32>, vector<80x80xf32> -> vector<80x80xf32>
    %84 = arith.addf %75, %83 : vector<80x80xf32>
    %c2_64 = arith.constant 2 : index
    %c0_65 = arith.constant 0 : index
    %c0_66 = arith.constant 0 : index
    %85 = vector.load %arg5[%c2_64, %c0_65, %c0_66] : memref<5x84x80xf32, #tpu.memory_space<vmem>>, vector<1x84x80xf32>
    %86 = vector.shape_cast %85 : vector<1x84x80xf32> to vector<84x80xf32>
    %cst_67 = arith.constant dense<0.000000e+00> : vector<80x80xf32>
    %87 = tpu.matmul %80, %86, %cst_67 {dimension_numbers = #tpu.dot_dimension_numbers<[1], [0], [0], [1], [0, 0, 1, 1], [], []>} : vector<80x84xf32>, vector<84x80xf32>, vector<80x80xf32> -> vector<80x80xf32>
    %88 = arith.addf %79, %87 : vector<80x80xf32>
    %89 = vector.extract_strided_slice %59 {offsets = [24, 0], sizes = [80, 84], strides = [1, 1]} : vector<112x84xf32> to vector<80x84xf32>
    %c3_68 = arith.constant 3 : index
    %c0_69 = arith.constant 0 : index
    %c0_70 = arith.constant 0 : index
    %90 = vector.load %arg4[%c3_68, %c0_69, %c0_70] : memref<5x84x80xf32, #tpu.memory_space<vmem>>, vector<1x84x80xf32>
    %91 = vector.shape_cast %90 : vector<1x84x80xf32> to vector<84x80xf32>
    %cst_71 = arith.constant dense<0.000000e+00> : vector<80x80xf32>
    %92 = tpu.matmul %89, %91, %cst_71 {dimension_numbers = #tpu.dot_dimension_numbers<[1], [0], [0], [1], [0, 0, 1, 1], [], []>} : vector<80x84xf32>, vector<84x80xf32>, vector<80x80xf32> -> vector<80x80xf32>
    %93 = arith.addf %84, %92 : vector<80x80xf32>
    %c3_72 = arith.constant 3 : index
    %c0_73 = arith.constant 0 : index
    %c0_74 = arith.constant 0 : index
    %94 = vector.load %arg5[%c3_72, %c0_73, %c0_74] : memref<5x84x80xf32, #tpu.memory_space<vmem>>, vector<1x84x80xf32>
    %95 = vector.shape_cast %94 : vector<1x84x80xf32> to vector<84x80xf32>
    %cst_75 = arith.constant dense<0.000000e+00> : vector<80x80xf32>
    %96 = tpu.matmul %89, %95, %cst_75 {dimension_numbers = #tpu.dot_dimension_numbers<[1], [0], [0], [1], [0, 0, 1, 1], [], []>} : vector<80x84xf32>, vector<84x80xf32>, vector<80x80xf32> -> vector<80x80xf32>
    %97 = arith.addf %88, %96 : vector<80x80xf32>
    %98 = vector.extract_strided_slice %59 {offsets = [32, 0], sizes = [80, 84], strides = [1, 1]} : vector<112x84xf32> to vector<80x84xf32>
    %c4_76 = arith.constant 4 : index
    %c0_77 = arith.constant 0 : index
    %c0_78 = arith.constant 0 : index
    %99 = vector.load %arg4[%c4_76, %c0_77, %c0_78] : memref<5x84x80xf32, #tpu.memory_space<vmem>>, vector<1x84x80xf32>
    %100 = vector.shape_cast %99 : vector<1x84x80xf32> to vector<84x80xf32>
    %cst_79 = arith.constant dense<0.000000e+00> : vector<80x80xf32>
    %101 = tpu.matmul %98, %100, %cst_79 {dimension_numbers = #tpu.dot_dimension_numbers<[1], [0], [0], [1], [0, 0, 1, 1], [], []>} : vector<80x84xf32>, vector<84x80xf32>, vector<80x80xf32> -> vector<80x80xf32>
    %102 = arith.addf %93, %101 : vector<80x80xf32>
    %c4_80 = arith.constant 4 : index
    %c0_81 = arith.constant 0 : index
    %c0_82 = arith.constant 0 : index
    %103 = vector.load %arg5[%c4_80, %c0_81, %c0_82] : memref<5x84x80xf32, #tpu.memory_space<vmem>>, vector<1x84x80xf32>
    %104 = vector.shape_cast %103 : vector<1x84x80xf32> to vector<84x80xf32>
    %cst_83 = arith.constant dense<0.000000e+00> : vector<80x80xf32>
    %105 = tpu.matmul %98, %104, %cst_83 {dimension_numbers = #tpu.dot_dimension_numbers<[1], [0], [0], [1], [0, 0, 1, 1], [], []>} : vector<80x84xf32>, vector<84x80xf32>, vector<80x80xf32> -> vector<80x80xf32>
    %106 = arith.addf %97, %105 : vector<80x80xf32>
    %107 = arith.maximumf %102, %106 : vector<80x80xf32>
    %108 = vector.shape_cast %107 : vector<80x80xf32> to vector<5x16x80xf32>
    %109 = vector.extract_strided_slice %108 {offsets = [0, 0, 0], sizes = [5, 8, 80], strides = [1, 1, 1]} : vector<5x16x80xf32> to vector<5x8x80xf32>
    %110 = vector.extract_strided_slice %108 {offsets = [0, 8, 0], sizes = [5, 8, 80], strides = [1, 1, 1]} : vector<5x16x80xf32> to vector<5x8x80xf32>
    %111 = arith.maximumf %109, %110 : vector<5x8x80xf32>
    %112 = vector.shape_cast %111 : vector<5x8x80xf32> to vector<40x80xf32>
    %c0_84 = arith.constant 0 : index
    %c0_85 = arith.constant 0 : index
    %113 = vector.load %arg9[%c0_84, %c0_85] : memref<1x80xf32, #tpu.memory_space<vmem>>, vector<1x80xf32>
    %114 = vector.broadcast %113 : vector<1x80xf32> to vector<40x80xf32>
    %115 = arith.addf %112, %114 : vector<40x80xf32>
    %cst_86 = arith.constant 0.000000e+00 : f32
    %116 = vector.broadcast %cst_86 : f32 to vector<40x80xf32>
    %117 = arith.maximumf %115, %116 : vector<40x80xf32>
    %cst_87 = arith.constant 0.000000e+00 : f32
    %118 = vector.broadcast %cst_87 : f32 to vector<8x120xf32>
    %119 = vector.extract_strided_slice %117 {offsets = [0, 0], sizes = [8, 80], strides = [1, 1]} : vector<40x80xf32> to vector<8x80xf32>
    %c0_88 = arith.constant 0 : index
    %c0_89 = arith.constant 0 : index
    %c0_90 = arith.constant 0 : index
    %120 = vector.load %arg6[%c0_88, %c0_89, %c0_90] : memref<5x80x120xf32, #tpu.memory_space<vmem>>, vector<1x80x120xf32>
    %121 = vector.shape_cast %120 : vector<1x80x120xf32> to vector<80x120xf32>
    %cst_91 = arith.constant dense<0.000000e+00> : vector<8x120xf32>
    %122 = tpu.matmul %119, %121, %cst_91 {dimension_numbers = #tpu.dot_dimension_numbers<[1], [0], [0], [1], [0, 0, 1, 1], [], []>} : vector<8x80xf32>, vector<80x120xf32>, vector<8x120xf32> -> vector<8x120xf32>
    %123 = arith.addf %118, %122 : vector<8x120xf32>
    %124 = vector.extract_strided_slice %117 {offsets = [8, 0], sizes = [8, 80], strides = [1, 1]} : vector<40x80xf32> to vector<8x80xf32>
    %c1_92 = arith.constant 1 : index
    %c0_93 = arith.constant 0 : index
    %c0_94 = arith.constant 0 : index
    %125 = vector.load %arg6[%c1_92, %c0_93, %c0_94] : memref<5x80x120xf32, #tpu.memory_space<vmem>>, vector<1x80x120xf32>
    %126 = vector.shape_cast %125 : vector<1x80x120xf32> to vector<80x120xf32>
    %cst_95 = arith.constant dense<0.000000e+00> : vector<8x120xf32>
    %127 = tpu.matmul %124, %126, %cst_95 {dimension_numbers = #tpu.dot_dimension_numbers<[1], [0], [0], [1], [0, 0, 1, 1], [], []>} : vector<8x80xf32>, vector<80x120xf32>, vector<8x120xf32> -> vector<8x120xf32>
    %128 = arith.addf %123, %127 : vector<8x120xf32>
    %129 = vector.extract_strided_slice %117 {offsets = [16, 0], sizes = [8, 80], strides = [1, 1]} : vector<40x80xf32> to vector<8x80xf32>
    %c2_96 = arith.constant 2 : index
    %c0_97 = arith.constant 0 : index
    %c0_98 = arith.constant 0 : index
    %130 = vector.load %arg6[%c2_96, %c0_97, %c0_98] : memref<5x80x120xf32, #tpu.memory_space<vmem>>, vector<1x80x120xf32>
    %131 = vector.shape_cast %130 : vector<1x80x120xf32> to vector<80x120xf32>
    %cst_99 = arith.constant dense<0.000000e+00> : vector<8x120xf32>
    %132 = tpu.matmul %129, %131, %cst_99 {dimension_numbers = #tpu.dot_dimension_numbers<[1], [0], [0], [1], [0, 0, 1, 1], [], []>} : vector<8x80xf32>, vector<80x120xf32>, vector<8x120xf32> -> vector<8x120xf32>
    %133 = arith.addf %128, %132 : vector<8x120xf32>
    %134 = vector.extract_strided_slice %117 {offsets = [24, 0], sizes = [8, 80], strides = [1, 1]} : vector<40x80xf32> to vector<8x80xf32>
    %c3_100 = arith.constant 3 : index
    %c0_101 = arith.constant 0 : index
    %c0_102 = arith.constant 0 : index
    %135 = vector.load %arg6[%c3_100, %c0_101, %c0_102] : memref<5x80x120xf32, #tpu.memory_space<vmem>>, vector<1x80x120xf32>
    %136 = vector.shape_cast %135 : vector<1x80x120xf32> to vector<80x120xf32>
    %cst_103 = arith.constant dense<0.000000e+00> : vector<8x120xf32>
    %137 = tpu.matmul %134, %136, %cst_103 {dimension_numbers = #tpu.dot_dimension_numbers<[1], [0], [0], [1], [0, 0, 1, 1], [], []>} : vector<8x80xf32>, vector<80x120xf32>, vector<8x120xf32> -> vector<8x120xf32>
    %138 = arith.addf %133, %137 : vector<8x120xf32>
    %139 = vector.extract_strided_slice %117 {offsets = [32, 0], sizes = [8, 80], strides = [1, 1]} : vector<40x80xf32> to vector<8x80xf32>
    %c4_104 = arith.constant 4 : index
    %c0_105 = arith.constant 0 : index
    %c0_106 = arith.constant 0 : index
    %140 = vector.load %arg6[%c4_104, %c0_105, %c0_106] : memref<5x80x120xf32, #tpu.memory_space<vmem>>, vector<1x80x120xf32>
    %141 = vector.shape_cast %140 : vector<1x80x120xf32> to vector<80x120xf32>
    %cst_107 = arith.constant dense<0.000000e+00> : vector<8x120xf32>
    %142 = tpu.matmul %139, %141, %cst_107 {dimension_numbers = #tpu.dot_dimension_numbers<[1], [0], [0], [1], [0, 0, 1, 1], [], []>} : vector<8x80xf32>, vector<80x120xf32>, vector<8x120xf32> -> vector<8x120xf32>
    %143 = arith.addf %138, %142 : vector<8x120xf32>
    %c0_108 = arith.constant 0 : index
    %c0_109 = arith.constant 0 : index
    %144 = vector.load %arg10[%c0_108, %c0_109] : memref<1x120xf32, #tpu.memory_space<vmem>>, vector<1x120xf32>
    %145 = vector.broadcast %144 : vector<1x120xf32> to vector<8x120xf32>
    %146 = arith.addf %143, %145 : vector<8x120xf32>
    %cst_110 = arith.constant 0.000000e+00 : f32
    %147 = vector.broadcast %cst_110 : f32 to vector<8x120xf32>
    %148 = arith.maximumf %146, %147 : vector<8x120xf32>
    %c0_111 = arith.constant 0 : index
    %c0_112 = arith.constant 0 : index
    %149 = vector.load %arg7[%c0_111, %c0_112] : memref<120x84xf32, #tpu.memory_space<vmem>>, vector<120x84xf32>
    %cst_113 = arith.constant dense<0.000000e+00> : vector<8x84xf32>
    %150 = tpu.matmul %148, %149, %cst_113 {dimension_numbers = #tpu.dot_dimension_numbers<[1], [0], [0], [1], [0, 0, 1, 1], [], []>} : vector<8x120xf32>, vector<120x84xf32>, vector<8x84xf32> -> vector<8x84xf32>
    %c0_114 = arith.constant 0 : index
    %c0_115 = arith.constant 0 : index
    %151 = vector.load %arg11[%c0_114, %c0_115] : memref<1x84xf32, #tpu.memory_space<vmem>>, vector<1x84xf32>
    %152 = vector.broadcast %151 : vector<1x84xf32> to vector<8x84xf32>
    %153 = arith.addf %150, %152 : vector<8x84xf32>
    %cst_116 = arith.constant 0.000000e+00 : f32
    %154 = vector.broadcast %cst_116 : f32 to vector<8x84xf32>
    %155 = arith.maximumf %153, %154 : vector<8x84xf32>
    %c0_117 = arith.constant 0 : index
    %c0_118 = arith.constant 0 : index
    %156 = vector.load %arg13[%c0_117, %c0_118] : memref<8x84xf32, #tpu.memory_space<vmem>>, vector<8x84xf32>
    tpu.vector_store %arg13[%c0_117, %c0_118], %155 {strides = array<i32>} : memref<8x84xf32, #tpu.memory_space<vmem>>, vector<8x84xf32>,
    %cst_119 = arith.constant dense<0xFF800000> : vector<8xf32>
    %157 = vector.multi_reduction <maximumf>, %155, %cst_119 [1] : vector<8x84xf32> to vector<8xf32>
    %158 = vector.shape_cast %157 : vector<8xf32> to vector<8x1xf32>
    %159 = vector.broadcast %158 : vector<8x1xf32> to vector<8x84xf32>
    %160 = arith.subf %155, %159 : vector<8x84xf32>
    %161 = math.exp %160 : vector<8x84xf32>
    %cst_120 = arith.constant dense<0.000000e+00> : vector<8xf32>
    %162 = vector.multi_reduction <add>, %161, %cst_120 [1] : vector<8x84xf32> to vector<8xf32>
    %163 = vector.shape_cast %162 : vector<8xf32> to vector<8x1xf32>
    %164 = math.log %163 : vector<8x1xf32>
    %165 = vector.broadcast %164 : vector<8x1xf32> to vector<8x84xf32>
    %166 = arith.subf %160, %165 : vector<8x84xf32>
    %c0_121 = arith.constant 0 : index
    %c0_122 = arith.constant 0 : index
    %167 = vector.load %arg12[%c0_121, %c0_122] : memref<8x84xf32, #tpu.memory_space<vmem>>, vector<8x84xf32>
    tpu.vector_store %arg12[%c0_121, %c0_122], %166 {strides = array<i32>} : memref<8x84xf32, #tpu.memory_space<vmem>>, vector<8x84xf32>,
    return
  }
  func.func @transform_0(%arg0: i32) -> (i32, i32, i32) {
    %c0_i32 = arith.constant 0 : i32
    %c0_i32_0 = arith.constant 0 : i32
    %c0_i32_1 = arith.constant 0 : i32
    return %c0_i32, %arg0, %c0_i32_0 : i32, i32, i32
  }
  func.func @transform_1(%arg0: i32) -> (i32, i32, i32) {
    %c0_i32 = arith.constant 0 : i32
    %c0_i32_0 = arith.constant 0 : i32
    %c0_i32_1 = arith.constant 0 : i32
    %c0_i32_2 = arith.constant 0 : i32
    return %c0_i32, %c0_i32_0, %c0_i32_1 : i32, i32, i32
  }
  func.func @transform_2(%arg0: i32) -> (i32, i32, i32) {
    %c0_i32 = arith.constant 0 : i32
    %c0_i32_0 = arith.constant 0 : i32
    %c0_i32_1 = arith.constant 0 : i32
    %c0_i32_2 = arith.constant 0 : i32
    return %c0_i32, %c0_i32_0, %c0_i32_1 : i32, i32, i32
  }
  func.func @transform_3(%arg0: i32) -> (i32, i32, i32) {
    %c0_i32 = arith.constant 0 : i32
    %c0_i32_0 = arith.constant 0 : i32
    %c0_i32_1 = arith.constant 0 : i32
    %c0_i32_2 = arith.constant 0 : i32
    return %c0_i32, %c0_i32_0, %c0_i32_1 : i32, i32, i32
  }
  func.func @transform_4(%arg0: i32) -> (i32, i32, i32) {
    %c0_i32 = arith.constant 0 : i32
    %c0_i32_0 = arith.constant 0 : i32
    %c0_i32_1 = arith.constant 0 : i32
    %c0_i32_2 = arith.constant 0 : i32
    return %c0_i32, %c0_i32_0, %c0_i32_1 : i32, i32, i32
  }
  func.func @transform_5(%arg0: i32) -> (i32, i32, i32) {
    %c0_i32 = arith.constant 0 : i32
    %c0_i32_0 = arith.constant 0 : i32
    %c0_i32_1 = arith.constant 0 : i32
    %c0_i32_2 = arith.constant 0 : i32
    return %c0_i32, %c0_i32_0, %c0_i32_1 : i32, i32, i32
  }
  func.func @transform_6(%arg0: i32) -> (i32, i32) {
    %c0_i32 = arith.constant 0 : i32
    %c0_i32_0 = arith.constant 0 : i32
    %c0_i32_1 = arith.constant 0 : i32
    return %c0_i32, %c0_i32_0 : i32, i32
  }
  func.func @transform_7(%arg0: i32) -> (i32, i32) {
    %c0_i32 = arith.constant 0 : i32
    %c0_i32_0 = arith.constant 0 : i32
    %c0_i32_1 = arith.constant 0 : i32
    return %c0_i32, %c0_i32_0 : i32, i32
  }
  func.func @transform_8(%arg0: i32) -> (i32, i32) {
    %c0_i32 = arith.constant 0 : i32
    %c0_i32_0 = arith.constant 0 : i32
    %c0_i32_1 = arith.constant 0 : i32
    return %c0_i32, %c0_i32_0 : i32, i32
  }
  func.func @transform_9(%arg0: i32) -> (i32, i32) {
    %c0_i32 = arith.constant 0 : i32
    %c0_i32_0 = arith.constant 0 : i32
    %c0_i32_1 = arith.constant 0 : i32
    return %c0_i32, %c0_i32_0 : i32, i32
  }
  func.func @transform_10(%arg0: i32) -> (i32, i32) {
    %c0_i32 = arith.constant 0 : i32
    %c0_i32_0 = arith.constant 0 : i32
    %c0_i32_1 = arith.constant 0 : i32
    return %c0_i32, %c0_i32_0 : i32, i32
  }
  func.func @transform_11(%arg0: i32) -> (i32, i32) {
    %c0_i32 = arith.constant 0 : i32
    %c0_i32_0 = arith.constant 0 : i32
    return %arg0, %c0_i32 : i32, i32
  }
  func.func @transform_12(%arg0: i32) -> (i32, i32) {
    %c0_i32 = arith.constant 0 : i32
    %c0_i32_0 = arith.constant 0 : i32
    return %arg0, %c0_i32 : i32, i32
  }
}

</mosaic_0001>

<llo_original>
// kernel: tile.13
$region0: #{tile.13}
  #allocation0 [shape = 's32[1]{0}', space=sflag, size = 0x4, scoped, tag = 'scoped memory for tile.13']
  %s0 = inlined_call_operand.vmem [shape: f32[6], index: 0, kind: input, shape index: {}]
  %s1 = inlined_call_operand.vmem [shape: f32[14,6], index: 1, kind: output, shape index: {}]
  // Predicated region
  $region2: #{tile.13} parent=0 // pred_check
    _
  $region3: #{tile.13} parent=0 // pred_check_branch
    %3 = sbr.rel (0) target = $region5
  $region4: #{tile.13} parent=0 // pred_region
    _
  $region5: #{tile.13} parent=0 // pred_fallthru
    _
  %v4 = vld [vmem:[%s0] ss:$0 sm:$0xff]
  %5 = vst [vmem:[%s1] sm:$0xff] %v4
  %s6 = scalar_lea.vmem %s1, 8
  %7 = vst [vmem:[%s6] sm:$0xff] %v4

// kernel: tile.14
$region0: #{tile.14}
  %s0 = inlined_call_operand.vmem [shape: f32[14,6], index: 0, kind: input, shape index: {}]
  %s1 = inlined_call_operand.vmem [shape: f32[1,84], index: 1, kind: output, shape index: {}]
  $region1: #{tile.14} parent=0
    #allocation0 [shape = 'u8[4096]{0}', space=vmem, size = 0x1000, scoped, tag = 'scoped mem for output reshape']
    %v2 = vld [vmem:[%s0] sm:$0x1]
    %vm3 = vcmask 48128
    %4 = vst.msk [vmem:[#allocation0] sm:$0x1] %vm3, %v2
    %s5 = scalar_lea.vmem %s0, 13
    %v6 = vld [vmem:[%s5] sm:$0x1]
    %7 = vrot.lane.b32.xlu0 %v6, 78
    %v8 = vpop.permute.xlu0 %7
    %vm9 = vcmask 687728
    %10 = vst.msk [vmem:[#allocation0] sm:$0x1] %vm9, %v8
    %s11 = scalar_lea.vmem %s0, 12
    %v12 = vld [vmem:[%s11] sm:$0x1]
    %13 = vrot.lane.b32.xlu0 %v12, 72
    %v14 = vpop.permute.xlu0 %13
    %vm15 = vcmask 638528
    %16 = vst.msk [vmem:[#allocation0] sm:$0x1] %vm15, %v14
    %s17 = scalar_lea.vmem %s0, 11
    %v18 = vld [vmem:[%s17] sm:$0x1]
    %19 = vrot.lane.b32.xlu0 %v18, 66
    %v20 = vpop.permute.xlu0 %19
    %vm21 = vcmask 589328
    %22 = vst.msk [vmem:[#allocation0] sm:$0x1] %vm21, %v20
    %s23 = scalar_lea.vmem %s0, 10
    %v24 = vld [vmem:[%s23] sm:$0x1]
    %25 = vrot.lane.b32.xlu0 %v24, 60
    %v26 = vpop.permute.xlu0 %25
    %vm27 = vcmask 540128
    %28 = vst.msk [vmem:[#allocation0] sm:$0x1] %vm27, %v26
    %s29 = scalar_lea.vmem %s0, 9
    %v30 = vld [vmem:[%s29] sm:$0x1]
    %31 = vrot.lane.b32.xlu0 %v30, 54
    %v32 = vpop.permute.xlu0 %31
    %vm33 = vcmask 490928
    %34 = vst.msk [vmem:[#allocation0] sm:$0x1] %vm33, %v32
    %s35 = scalar_lea.vmem %s0, 8
    %v36 = vld [vmem:[%s35] sm:$0x1]
    %37 = vrot.lane.b32.xlu0 %v36, 48
    %v38 = vpop.permute.xlu0 %37
    %vm39 = vcmask 441728
    %40 = vst.msk [vmem:[#allocation0] sm:$0x1] %vm39, %v38
    %s41 = scalar_lea.vmem %s0, 7
    %v42 = vld [vmem:[%s41] sm:$0x1]
    %43 = vrot.lane.b32.xlu0 %v42, 42
    %v44 = vpop.permute.xlu0 %43
    %vm45 = vcmask 392528
    %46 = vst.msk [vmem:[#allocation0] sm:$0x1] %vm45, %v44
    %s47 = scalar_lea.vmem %s0, 6
    %v48 = vld [vmem:[%s47] sm:$0x1]
    %49 = vrot.lane.b32.xlu0 %v48, 36
    %v50 = vpop.permute.xlu0 %49
    %vm51 = vcmask 343328
    %52 = vst.msk [vmem:[#allocation0] sm:$0x1] %vm51, %v50
    %s53 = scalar_lea.vmem %s0, 5
    %v54 = vld [vmem:[%s53] sm:$0x1]
    %55 = vrot.lane.b32.xlu0 %v54, 30
    %v56 = vpop.permute.xlu0 %55
    %vm57 = vcmask 294128
    %58 = vst.msk [vmem:[#allocation0] sm:$0x1] %vm57, %v56
    %s59 = scalar_lea.vmem %s0, 4
    %v60 = vld [vmem:[%s59] sm:$0x1]
    %61 = vrot.lane.b32.xlu0 %v60, 24
    %v62 = vpop.permute.xlu0 %61
    %vm63 = vcmask 244928
    %64 = vst.msk [vmem:[#allocation0] sm:$0x1] %vm63, %v62
    %s65 = scalar_lea.vmem %s0, 3
    %v66 = vld [vmem:[%s65] sm:$0x1]
    %67 = vrot.lane.b32.xlu0 %v66, 18
    %v68 = vpop.permute.xlu0 %67
    %vm69 = vcmask 195728
    %70 = vst.msk [vmem:[#allocation0] sm:$0x1] %vm69, %v68
    %s71 = scalar_lea.vmem %s0, 2
    %v72 = vld [vmem:[%s71] sm:$0x1]
    %73 = vrot.lane.b32.xlu0 %v72, 12
    %v74 = vpop.permute.xlu0 %73
    %vm75 = vcmask 146528
    %76 = vst.msk [vmem:[#allocation0] sm:$0x1] %vm75, %v74
    %s77 = scalar_lea.vmem %s0, 1
    %v78 = vld [vmem:[%s77] sm:$0x1]
    %79 = vrot.lane.b32.xlu0 %v78, 6
    %v80 = vpop.permute.xlu0 %79
    %vm81 = vcmask 97328
    %82 = vst.msk [vmem:[#allocation0] sm:$0x1] %vm81, %v80
    %s84 = ssub.s32 2, 1
    %v85 = vld [vmem:[#allocation0] sm:%s84]
    %s87 = ssub.s32 2, 1
    %88 = vst [vmem:[%s1] sm:%s87] %v85

// kernel: tile.18
$region0: #{tile.18}
  #allocation0 [shape = 's32[1]{0}', space=sflag, size = 0x4, scoped, tag = 'scoped memory for tile.18']
  %s0 = inlined_call_operand.vmem [shape: f32[16], index: 0, kind: input, shape index: {}]
  %s1 = inlined_call_operand.vmem [shape: f32[5,16], index: 1, kind: output, shape index: {}]
  // Predicated region
  $region2: #{tile.18} parent=0 // pred_check
    _
  $region3: #{tile.18} parent=0 // pred_check_branch
    %3 = sbr.rel (0) target = $region5
  $region4: #{tile.18} parent=0 // pred_region
    _
  $region5: #{tile.18} parent=0 // pred_fallthru
    _
  %v4 = vld [vmem:[%s0] ss:$0 sm:$0xff]
  %5 = vst [vmem:[%s1] sm:$0xff] %v4

// kernel: tile.19
$region0: #{tile.19}
  %s0 = inlined_call_operand.vmem [shape: f32[5,16], index: 0, kind: input, shape index: {}]
  %s1 = inlined_call_operand.vmem [shape: f32[1,80], index: 1, kind: output, shape index: {}]
  $region1: #{tile.19} parent=0
    #allocation0 [shape = 'u8[4096]{0}', space=vmem, size = 0x1000, scoped, tag = 'scoped mem for output reshape']
    %v2 = vld [vmem:[%s0] sm:$0x1]
    %vm3 = vcmask 130048
    %4 = vst.msk [vmem:[#allocation0] sm:$0x1] %vm3, %v2
    %s5 = scalar_lea.vmem %s0, 4
    %v6 = vld [vmem:[%s5] sm:$0x1]
    %7 = vrot.lane.b32.xlu0 %v6, 64
    %v8 = vpop.permute.xlu0 %7
    %vm9 = vcmask 654848
    %10 = vst.msk [vmem:[#allocation0] sm:$0x1] %vm9, %v8
    %s11 = scalar_lea.vmem %s0, 3
    %v12 = vld [vmem:[%s11] sm:$0x1]
    %13 = vrot.lane.b32.xlu0 %v12, 48
    %v14 = vpop.permute.xlu0 %13
    %vm15 = vcmask 523648
    %16 = vst.msk [vmem:[#allocation0] sm:$0x1] %vm15, %v14
    %s17 = scalar_lea.vmem %s0, 2
    %v18 = vld [vmem:[%s17] sm:$0x1]
    %19 = vrot.lane.b32.xlu0 %v18, 32
    %v20 = vpop.permute.xlu0 %19
    %vm21 = vcmask 392448
    %22 = vst.msk [vmem:[#allocation0] sm:$0x1] %vm21, %v20
    %s23 = scalar_lea.vmem %s0, 1
    %v24 = vld [vmem:[%s23] sm:$0x1]
    %25 = vrot.lane.b32.xlu0 %v24, 16
    %v26 = vpop.permute.xlu0 %25
    %vm27 = vcmask 261248
    %28 = vst.msk [vmem:[#allocation0] sm:$0x1] %vm27, %v26
    %s30 = ssub.s32 2, 1
    %v31 = vld [vmem:[#allocation0] sm:%s30]
    %s33 = ssub.s32 2, 1
    %34 = vst [vmem:[%s1] sm:%s33] %v31

// kernel: cifarnet_forward.1
$region0: #{cifarnet_forward.1}
  #allocation0 [shape = 'u32[]', space=smem, size = 0x4, offset = 0x4, fixed_abs, tag = 'smem constant byte address 0x4 - core index']
  #allocation1 [shape = 'u32[72,128]{1,0:T(1,128)}', space=vmem, size = 0x9000, scoped, tag = 'internal scratch']
  %s0 = inlined_call_operand.vmem [shape: f32[32,16,96], index: 0, kind: input, shape index: {}]
  %s1 = inlined_call_operand.vmem [shape: f32[5,96,84], index: 1, kind: input, shape index: {}]
  %s2 = inlined_call_operand.vmem [shape: f32[5,96,84], index: 2, kind: input, shape index: {}]
  %s3 = inlined_call_operand.vmem [shape: f32[5,84,80], index: 3, kind: input, shape index: {}]
  %s4 = inlined_call_operand.vmem [shape: f32[5,84,80], index: 4, kind: input, shape index: {}]
  %s5 = inlined_call_operand.vmem [shape: f32[5,80,120], index: 5, kind: input, shape index: {}]
  %s6 = inlined_call_operand.vmem [shape: f32[120,84], index: 6, kind: input, shape index: {}]
  %s7 = inlined_call_operand.vmem [shape: f32[1,84], index: 7, kind: input, shape index: {}]
  %s8 = inlined_call_operand.vmem [shape: f32[1,80], index: 8, kind: input, shape index: {}]
  %s9 = inlined_call_operand.vmem [shape: f32[1,120], index: 9, kind: input, shape index: {}]
  %s10 = inlined_call_operand.vmem [shape: f32[1,84], index: 10, kind: input, shape index: {}]
  %s11 = inlined_call_operand.hbm [shape: f32[16,84], index: 11, kind: output, shape index: {0}]
  %s12 = inlined_call_operand.hbm [shape: f32[16,84], index: 12, kind: output, shape index: {1}]
  %13 = xla_tuple %s11, %s12
  %s14 = sld [smem:[#allocation0]]
  $region123: #{cifarnet_forward.1} parent=0
    _
  %s16 = ssub.s32 1, %s14
  %s17 = scalar_select 0, %s16, %s14
  $region1: #{cifarnet_forward.1} parent=0
    #allocation2 [shape = 'u8[262144]{0}', space=vmem, size = 0x40000, scoped, tag = 'input window, operand 0']
    #allocation3 [shape = 'u8[8192]{0}', space=vmem, size = 0x2000, scoped, tag = 'output window, operand 0']
    #allocation4 [shape = 's32[2]{0}', space=sflag, size = 0x8, scoped, tag = 'scoped memory for cifarnet_forward.1']
    #allocation5 [shape = 'u8[8192]{0}', space=vmem, size = 0x2000, scoped, tag = 'output window, operand 1']
    #allocation6 [shape = 's32[2]{0}', space=sflag, size = 0x8, scoped, tag = 'scoped memory for cifarnet_forward.1']
    %18 = vsyncpa [#allocation4], 0
    %s19 = scalar_lea.sflag [#allocation4], 1
    %20 = vsyncpa %s19, 0
    %21 = vsyncpa [#allocation6], 0
    %s22 = scalar_lea.sflag [#allocation6], 1
    %23 = vsyncpa %s22, 0
    loop: start=0, step=1, limit=4
    $region2: #{cifarnet_forward.1} parent=1 // loop_pre_header
      _
    $region3: #{cifarnet_forward.1} parent=1 // loop_header
      %s25 = sphi 0, %s29
      %p26 = scmp.ge.s32.totalorder %s25, 4
      %s35 = sphi 0, %s37
      %s38 = sphi 0, %s35
      %s39 = sphi 0, %s38
      %s55 = sphi 0, %s39
      %s59 = sphi 0, %s59
      %s61 = sphi 0, %s59
      %s62 = sphi 0, %s61
      %s76 = sphi 0, %s62
      %s80 = sphi 0, %s80
      %s82 = sphi 0, %s80
      %s83 = sphi 0, %s82
      %s97 = sphi 0, %s83
      %s101 = sphi 0, %s101
      %s103 = sphi 0, %s101
      %s104 = sphi 0, %s103
      %s118 = sphi 0, %s104
      %s122 = sphi 0, %s122
      %s124 = sphi 0, %s122
      %s125 = sphi 0, %s124
      %s139 = sphi 0, %s125
      %s143 = sphi 0, %s143
      %s145 = sphi 0, %s143
      %s146 = sphi 0, %s145
      %s160 = sphi 0, %s146
      %s164 = sphi 0, %s164
      %s166 = sphi 0, %s164
      %s167 = sphi 0, %s166
      %s181 = sphi 0, %s167
      %s185 = sphi 0, %s185
      %s187 = sphi 0, %s185
      %s188 = sphi 0, %s187
      %s202 = sphi 0, %s188
      %s206 = sphi 0, %s206
      %s208 = sphi 0, %s206
      %s209 = sphi 0, %s208
      %s223 = sphi 0, %s209
      %s227 = sphi 0, %s227
      %s229 = sphi 0, %s227
      %s230 = sphi 0, %s229
      %s244 = sphi 0, %s230
      %s248 = sphi 0, %s248
      %s250 = sphi 0, %s248
      %s251 = sphi 0, %s250
      %s265 = sphi 0, %s251
      %s271 = sphi 0, %s273
      %s274 = sphi 0, %s271
      %s275 = sphi 0, %s274
      %s291 = sphi 0, %s275
      %s297 = sphi 0, %s299
      %s300 = sphi 0, %s297
      %s301 = sphi 0, %s300
      %s317 = sphi 0, %s301
    $region4: #{cifarnet_forward.1} parent=1 // loop_header_branch
      %28 = sbr.rel (%p26) target = $region8
    $region5: #{cifarnet_forward.1} parent=1 // loop_body
      %s30 = ssub.s32 %s25, 1
      %s31 = ssub.s32 %s25, 2
      %s32 = sadd.s32 %s25, 1
      %s33 = ssub.s32 %s25, %s32
      %p34 = scmp.eq.s32.totalorder %s33, 0
      %s36 = sadd.s32 %s35, 1
      %s37 = scalar_select %p34, %s35, %s36
      %p40 = pneg %p34
      %p41 = scmp.eq.s32.totalorder %s25, 1
      %p42 = por %p40, %p41
      %p43 = scmp.ne.s32.totalorder %s35, %s38
      %p44 = scmp.eq.s32.totalorder %s25, 0
      %p45 = por %p43, %p44
      %p46 = scmp.ne.s32.totalorder %s35, %s38
      %p47 = scmp.eq.s32.totalorder %s30, 1
      %p48 = por %p46, %p47
      %p49 = scmp.ne.s32.totalorder %s38, %s39
      %p50 = scmp.eq.s32.totalorder %s30, 0
      %p51 = por %p49, %p50
      %p52 = scmp.ne.s32.totalorder %s38, %s39
      %p53 = scmp.eq.s32.totalorder %s31, 1
      %p54 = por %p52, %p53
      %p56 = scmp.ne.s32.totalorder %s39, %s55
      %p57 = scmp.eq.s32.totalorder %s31, 0
      %p58 = por %p56, %p57
      %s60 = sadd.s32 %s59, 1
      %p63 = scmp.eq.s32.totalorder %s25, 1
      %p64 = scmp.ne.s32.totalorder %s59, %s61
      %p65 = scmp.eq.s32.totalorder %s25, 0
      %p66 = por %p64, %p65
      %p67 = scmp.ne.s32.totalorder %s59, %s61
      %p68 = scmp.eq.s32.totalorder %s30, 1
      %p69 = por %p67, %p68
      %p70 = scmp.ne.s32.totalorder %s61, %s62
      %p71 = scmp.eq.s32.totalorder %s30, 0
      %p72 = por %p70, %p71
      %p73 = scmp.ne.s32.totalorder %s61, %s62
      %p74 = scmp.eq.s32.totalorder %s31, 1
      %p75 = por %p73, %p74
      %p77 = scmp.ne.s32.totalorder %s62, %s76
      %p78 = scmp.eq.s32.totalorder %s31, 0
      %p79 = por %p77, %p78
      %s81 = sadd.s32 %s80, 1
      %p84 = scmp.eq.s32.totalorder %s25, 1
      %p85 = scmp.ne.s32.totalorder %s80, %s82
      %p86 = scmp.eq.s32.totalorder %s25, 0
      %p87 = por %p85, %p86
      %p88 = scmp.ne.s32.totalorder %s80, %s82
      %p89 = scmp.eq.s32.totalorder %s30, 1
      %p90 = por %p88, %p89
      %p91 = scmp.ne.s32.totalorder %s82, %s83
      %p92 = scmp.eq.s32.totalorder %s30, 0
      %p93 = por %p91, %p92
      %p94 = scmp.ne.s32.totalorder %s82, %s83
      %p95 = scmp.eq.s32.totalorder %s31, 1
      %p96 = por %p94, %p95
      %p98 = scmp.ne.s32.totalorder %s83, %s97
      %p99 = scmp.eq.s32.totalorder %s31, 0
      %p100 = por %p98, %p99
      %s102 = sadd.s32 %s101, 1
      %p105 = scmp.eq.s32.totalorder %s25, 1
      %p106 = scmp.ne.s32.totalorder %s101, %s103
      %p107 = scmp.eq.s32.totalorder %s25, 0
      %p108 = por %p106, %p107
      %p109 = scmp.ne.s32.totalorder %s101, %s103
      %p110 = scmp.eq.s32.totalorder %s30, 1
      %p111 = por %p109, %p110
      %p112 = scmp.ne.s32.totalorder %s103, %s104
      %p113 = scmp.eq.s32.totalorder %s30, 0
      %p114 = por %p112, %p113
      %p115 = scmp.ne.s32.totalorder %s103, %s104
      %p116 = scmp.eq.s32.totalorder %s31, 1
      %p117 = por %p115, %p116
      %p119 = scmp.ne.s32.totalorder %s104, %s118
      %p120 = scmp.eq.s32.totalorder %s31, 0
      %p121 = por %p119, %p120
      %s123 = sadd.s32 %s122, 1
      %p126 = scmp.eq.s32.totalorder %s25, 1
      %p127 = scmp.ne.s32.totalorder %s122, %s124
      %p128 = scmp.eq.s32.totalorder %s25, 0
      %p129 = por %p127, %p128
      %p130 = scmp.ne.s32.totalorder %s122, %s124
      %p131 = scmp.eq.s32.totalorder %s30, 1
      %p132 = por %p130, %p131
      %p133 = scmp.ne.s32.totalorder %s124, %s125
      %p134 = scmp.eq.s32.totalorder %s30, 0
      %p135 = por %p133, %p134
      %p136 = scmp.ne.s32.totalorder %s124, %s125
      %p137 = scmp.eq.s32.totalorder %s31, 1
      %p138 = por %p136, %p137
      %p140 = scmp.ne.s32.totalorder %s125, %s139
      %p141 = scmp.eq.s32.totalorder %s31, 0
      %p142 = por %p140, %p141
      %s144 = sadd.s32 %s143, 1
      %p147 = scmp.eq.s32.totalorder %s25, 1
      %p148 = scmp.ne.s32.totalorder %s143, %s145
      %p149 = scmp.eq.s32.totalorder %s25, 0
      %p150 = por %p148, %p149
      %p151 = scmp.ne.s32.totalorder %s143, %s145
      %p152 = scmp.eq.s32.totalorder %s30, 1
      %p153 = por %p151, %p152
      %p154 = scmp.ne.s32.totalorder %s145, %s146
      %p155 = scmp.eq.s32.totalorder %s30, 0
      %p156 = por %p154, %p155
      %p157 = scmp.ne.s32.totalorder %s145, %s146
      %p158 = scmp.eq.s32.totalorder %s31, 1
      %p159 = por %p157, %p158
      %p161 = scmp.ne.s32.totalorder %s146, %s160
      %p162 = scmp.eq.s32.totalorder %s31, 0
      %p163 = por %p161, %p162
      %s165 = sadd.s32 %s164, 1
      %p168 = scmp.eq.s32.totalorder %s25, 1
      %p169 = scmp.ne.s32.totalorder %s164, %s166
      %p170 = scmp.eq.s32.totalorder %s25, 0
      %p171 = por %p169, %p170
      %p172 = scmp.ne.s32.totalorder %s164, %s166
      %p173 = scmp.eq.s32.totalorder %s30, 1
      %p174 = por %p172, %p173
      %p175 = scmp.ne.s32.totalorder %s166, %s167
      %p176 = scmp.eq.s32.totalorder %s30, 0
      %p177 = por %p175, %p176
      %p178 = scmp.ne.s32.totalorder %s166, %s167
      %p179 = scmp.eq.s32.totalorder %s31, 1
      %p180 = por %p178, %p179
      %p182 = scmp.ne.s32.totalorder %s167, %s181
      %p183 = scmp.eq.s32.totalorder %s31, 0
      %p184 = por %p182, %p183
      %s186 = sadd.s32 %s185, 1
      %p189 = scmp.eq.s32.totalorder %s25, 1
      %p190 = scmp.ne.s32.totalorder %s185, %s187
      %p191 = scmp.eq.s32.totalorder %s25, 0
      %p192 = por %p190, %p191
      %p193 = scmp.ne.s32.totalorder %s185, %s187
      %p194 = scmp.eq.s32.totalorder %s30, 1
      %p195 = por %p193, %p194
      %p196 = scmp.ne.s32.totalorder %s187, %s188
      %p197 = scmp.eq.s32.totalorder %s30, 0
      %p198 = por %p196, %p197
      %p199 = scmp.ne.s32.totalorder %s187, %s188
      %p200 = scmp.eq.s32.totalorder %s31, 1
      %p201 = por %p199, %p200
      %p203 = scmp.ne.s32.totalorder %s188, %s202
      %p204 = scmp.eq.s32.totalorder %s31, 0
      %p205 = por %p203, %p204
      %s207 = sadd.s32 %s206, 1
      %p210 = scmp.eq.s32.totalorder %s25, 1
      %p211 = scmp.ne.s32.totalorder %s206, %s208
      %p212 = scmp.eq.s32.totalorder %s25, 0
      %p213 = por %p211, %p212
      %p214 = scmp.ne.s32.totalorder %s206, %s208
      %p215 = scmp.eq.s32.totalorder %s30, 1
      %p216 = por %p214, %p215
      %p217 = scmp.ne.s32.totalorder %s208, %s209
      %p218 = scmp.eq.s32.totalorder %s30, 0
      %p219 = por %p217, %p218
      %p220 = scmp.ne.s32.totalorder %s208, %s209
      %p221 = scmp.eq.s32.totalorder %s31, 1
      %p222 = por %p220, %p221
      %p224 = scmp.ne.s32.totalorder %s209, %s223
      %p225 = scmp.eq.s32.totalorder %s31, 0
      %p226 = por %p224, %p225
      %s228 = sadd.s32 %s227, 1
      %p231 = scmp.eq.s32.totalorder %s25, 1
      %p232 = scmp.ne.s32.totalorder %s227, %s229
      %p233 = scmp.eq.s32.totalorder %s25, 0
      %p234 = por %p232, %p233
      %p235 = scmp.ne.s32.totalorder %s227, %s229
      %p236 = scmp.eq.s32.totalorder %s30, 1
      %p237 = por %p235, %p236
      %p238 = scmp.ne.s32.totalorder %s229, %s230
      %p239 = scmp.eq.s32.totalorder %s30, 0
      %p240 = por %p238, %p239
      %p241 = scmp.ne.s32.totalorder %s229, %s230
      %p242 = scmp.eq.s32.totalorder %s31, 1
      %p243 = por %p241, %p242
      %p245 = scmp.ne.s32.totalorder %s230, %s244
      %p246 = scmp.eq.s32.totalorder %s31, 0
      %p247 = por %p245, %p246
      %s249 = sadd.s32 %s248, 1
      %p252 = scmp.eq.s32.totalorder %s25, 1
      %p253 = scmp.ne.s32.totalorder %s248, %s250
      %p254 = scmp.eq.s32.totalorder %s25, 0
      %p255 = por %p253, %p254
      %p256 = scmp.ne.s32.totalorder %s248, %s250
      %p257 = scmp.eq.s32.totalorder %s30, 1
      %p258 = por %p256, %p257
      %p259 = scmp.ne.s32.totalorder %s250, %s251
      %p260 = scmp.eq.s32.totalorder %s30, 0
      %p261 = por %p259, %p260
      %p262 = scmp.ne.s32.totalorder %s250, %s251
      %p263 = scmp.eq.s32.totalorder %s31, 1
      %p264 = por %p262, %p263
      %p266 = scmp.ne.s32.totalorder %s251, %s265
      %p267 = scmp.eq.s32.totalorder %s31, 0
      %p268 = por %p266, %p267
      %s269 = ssub.s32 %s25, %s32
      %p270 = scmp.eq.s32.totalorder %s269, 0
      %s272 = sadd.s32 %s271, 1
      %s273 = scalar_select %p270, %s271, %s272
      %p276 = pneg %p270
      %p277 = scmp.eq.s32.totalorder %s25, 1
      %p278 = por %p276, %p277
      %p279 = scmp.ne.s32.totalorder %s271, %s274
      %p280 = scmp.eq.s32.totalorder %s25, 0
      %p281 = por %p279, %p280
      %p282 = scmp.ne.s32.totalorder %s271, %s274
      %p283 = scmp.eq.s32.totalorder %s30, 1
      %p284 = por %p282, %p283
      %p285 = scmp.ne.s32.totalorder %s274, %s275
      %p286 = scmp.eq.s32.totalorder %s30, 0
      %p287 = por %p285, %p286
      %p288 = scmp.ne.s32.totalorder %s274, %s275
      %p289 = scmp.eq.s32.totalorder %s31, 1
      %p290 = por %p288, %p289
      %p292 = scmp.ne.s32.totalorder %s275, %s291
      %p293 = scmp.eq.s32.totalorder %s31, 0
      %p294 = por %p292, %p293
      %s295 = ssub.s32 %s25, %s32
      %p296 = scmp.eq.s32.totalorder %s295, 0
      %s298 = sadd.s32 %s297, 1
      %s299 = scalar_select %p296, %s297, %s298
      %p302 = pneg %p296
      %p303 = scmp.eq.s32.totalorder %s25, 1
      %p304 = por %p302, %p303
      %p305 = scmp.ne.s32.totalorder %s297, %s300
      %p306 = scmp.eq.s32.totalorder %s25, 0
      %p307 = por %p305, %p306
      %p308 = scmp.ne.s32.totalorder %s297, %s300
      %p309 = scmp.eq.s32.totalorder %s30, 1
      %p310 = por %p308, %p309
      %p311 = scmp.ne.s32.totalorder %s300, %s301
      %p312 = scmp.eq.s32.totalorder %s30, 0
      %p313 = por %p311, %p312
      %p314 = scmp.ne.s32.totalorder %s300, %s301
      %p315 = scmp.eq.s32.totalorder %s31, 1
      %p316 = por %p314, %p315
      %p318 = scmp.ne.s32.totalorder %s301, %s317
      %p319 = scmp.eq.s32.totalorder %s31, 0
      %p320 = por %p318, %p319
      %p321 = scmp.le.s32.totalorder 1, %s25
      %p322 = scmp.lt.s32.totalorder %s25, 3
      %p323 = pnand %p321, %p322
      %p324 = pneg %p323
      // Predicated region
      $region9: #{cifarnet_forward.1} parent=5 // pred_check
        _
      $region10: #{cifarnet_forward.1} parent=5 // pred_check_branch
        %326 = sbr.rel (%p323) target = $region12
      $region11: #{cifarnet_forward.1} parent=5 // pred_region
        %s327 = ssub.s32 %s25, 1
        // Predicated region
        $region13: #{cifarnet_forward.1} parent=11 // pred_check
          %p328 = pneg %p72
        $region14: #{cifarnet_forward.1} parent=11 // pred_check_branch
          %330 = sbr.rel (%p328) target = $region16
        $region15: #{cifarnet_forward.1} parent=11 // pred_region
          _
        $region16: #{cifarnet_forward.1} parent=11 // pred_fallthru
          _
        // Predicated region
        $region17: #{cifarnet_forward.1} parent=11 // pred_check
          %p331 = pneg %p93
        $region18: #{cifarnet_forward.1} parent=11 // pred_check_branch
          %333 = sbr.rel (%p331) target = $region20
        $region19: #{cifarnet_forward.1} parent=11 // pred_region
          _
        $region20: #{cifarnet_forward.1} parent=11 // pred_fallthru
          _
        // Predicated region
        $region21: #{cifarnet_forward.1} parent=11 // pred_check
          %p334 = pneg %p114
        $region22: #{cifarnet_forward.1} parent=11 // pred_check_branch
          %336 = sbr.rel (%p334) target = $region24
        $region23: #{cifarnet_forward.1} parent=11 // pred_region
          _
        $region24: #{cifarnet_forward.1} parent=11 // pred_fallthru
          _
        // Predicated region
        $region25: #{cifarnet_forward.1} parent=11 // pred_check
          %p337 = pneg %p135
        $region26: #{cifarnet_forward.1} parent=11 // pred_check_branch
          %339 = sbr.rel (%p337) target = $region28
        $region27: #{cifarnet_forward.1} parent=11 // pred_region
          _
        $region28: #{cifarnet_forward.1} parent=11 // pred_fallthru
          _
        // Predicated region
        $region29: #{cifarnet_forward.1} parent=11 // pred_check
          %p340 = pneg %p156
        $region30: #{cifarnet_forward.1} parent=11 // pred_check_branch
          %342 = sbr.rel (%p340) target = $region32
        $region31: #{cifarnet_forward.1} parent=11 // pred_region
          _
        $region32: #{cifarnet_forward.1} parent=11 // pred_fallthru
          _
        // Predicated region
        $region33: #{cifarnet_forward.1} parent=11 // pred_check
          %p343 = pneg %p177
        $region34: #{cifarnet_forward.1} parent=11 // pred_check_branch
          %345 = sbr.rel (%p343) target = $region36
        $region35: #{cifarnet_forward.1} parent=11 // pred_region
          _
        $region36: #{cifarnet_forward.1} parent=11 // pred_fallthru
          _
        // Predicated region
        $region37: #{cifarnet_forward.1} parent=11 // pred_check
          %p346 = pneg %p198
        $region38: #{cifarnet_forward.1} parent=11 // pred_check_branch
          %348 = sbr.rel (%p346) target = $region40
        $region39: #{cifarnet_forward.1} parent=11 // pred_region
          _
        $region40: #{cifarnet_forward.1} parent=11 // pred_fallthru
          _
        // Predicated region
        $region41: #{cifarnet_forward.1} parent=11 // pred_check
          %p349 = pneg %p219
        $region42: #{cifarnet_forward.1} parent=11 // pred_check_branch
          %351 = sbr.rel (%p349) target = $region44
        $region43: #{cifarnet_forward.1} parent=11 // pred_region
          _
        $region44: #{cifarnet_forward.1} parent=11 // pred_fallthru
          _
        // Predicated region
        $region45: #{cifarnet_forward.1} parent=11 // pred_check
          %p352 = pneg %p240
        $region46: #{cifarnet_forward.1} parent=11 // pred_check_branch
          %354 = sbr.rel (%p352) target = $region48
        $region47: #{cifarnet_forward.1} parent=11 // pred_region
          _
        $region48: #{cifarnet_forward.1} parent=11 // pred_fallthru
          _
        // Predicated region
        $region49: #{cifarnet_forward.1} parent=11 // pred_check
          %p355 = pneg %p261
        $region50: #{cifarnet_forward.1} parent=11 // pred_check_branch
          %357 = sbr.rel (%p355) target = $region52
        $region51: #{cifarnet_forward.1} parent=11 // pred_region
          _
        $region52: #{cifarnet_forward.1} parent=11 // pred_fallthru
          _
      $region12: #{cifarnet_forward.1} parent=5 // pred_fallthru
        _
      %p358 = scmp.lt.s32.totalorder %s25, 2
      // Predicated region
      $region53: #{cifarnet_forward.1} parent=5 // pred_check
        %p359 = pneg %p358
      $region54: #{cifarnet_forward.1} parent=5 // pred_check_branch
        %361 = sbr.rel (%p359) target = $region56
      $region55: #{cifarnet_forward.1} parent=5 // pred_region
        // Predicated region
        $region57: #{cifarnet_forward.1} parent=55 // pred_check
          %p362 = pneg %p45
        $region58: #{cifarnet_forward.1} parent=55 // pred_check_branch
          %364 = sbr.rel (%p362) target = $region60
        $region59: #{cifarnet_forward.1} parent=55 // pred_region
          %s365 = sand.u32 %s35, 1
          %s366 = sand.u32 %s35, 1
          %s367 = smul.addr %s366, 256
          %s368 = scalar_lea.vmem [#allocation2], %s367
          %s369 = smul.addr %s25, 8
          %s370 = scalar_lea.vmem %s0, %s369
          // Predicated region
          $region61: #{cifarnet_forward.1} parent=59 // pred_check
            _
          $region62: #{cifarnet_forward.1} parent=59 // pred_check_branch
            %372 = sbr.rel (0) target = $region64
          $region63: #{cifarnet_forward.1} parent=59 // pred_region
            // Predicated region
            $region65: #{cifarnet_forward.1} parent=63 // pred_check
              _
            $region66: #{cifarnet_forward.1} parent=63 // pred_check_branch
              %374 = sbr.rel (0) target = $region68
            $region67: #{cifarnet_forward.1} parent=63 // pred_region
              // Predicated region
              $region80: #{cifarnet_forward.1} parent=67 // pred_check
                _
              $region81: #{cifarnet_forward.1} parent=67 // pred_check_branch
                %452 = sbr.rel (0) target = $region83
              $region82: #{cifarnet_forward.1} parent=67 // pred_region
                loop: start=0, step=1, limit=1
                $region84: #{cifarnet_forward.1} parent=82 // loop_pre_header
                  _
                $region85: #{cifarnet_forward.1} parent=82 // loop_header
                  %s454 = sphi 0, %s458
                  %p455 = scmp.ge.s32.totalorder %s454, 1
                  %s459 = sphi %s370, %s370
                  %s460 = sphi %s368, %s368
                $region86: #{cifarnet_forward.1} parent=82 // loop_header_branch
                  %457 = sbr.rel (%p455) target = $region90
                $region87: #{cifarnet_forward.1} parent=82 // loop_body
                  %v461 = vld [vmem:[%s459] sm:$0xff]
                  %462 = vst [vmem:[%s460] sm:$0xff] %v461
                  %v463 = vld [vmem:[%s459 + $0x10] sm:$0xff]
                  %464 = vst [vmem:[%s460 + $0x8] sm:$0xff] %v463
                  %v465 = vld [vmem:[%s459 + $0x20] sm:$0xff]
                  %466 = vst [vmem:[%s460 + $0x10] sm:$0xff] %v465
                  %v467 = vld [vmem:[%s459 + $0x30] sm:$0xff]
                  %468 = vst [vmem:[%s460 + $0x18] sm:$0xff] %v467
                  %v469 = vld [vmem:[%s459 + $0x40] sm:$0xff]
                  %470 = vst [vmem:[%s460 + $0x20] sm:$0xff] %v469
                  %v471 = vld [vmem:[%s459 + $0x50] sm:$0xff]
                  %472 = vst [vmem:[%s460 + $0x28] sm:$0xff] %v471
                  %v473 = vld [vmem:[%s459 + $0x60] sm:$0xff]
                  %474 = vst [vmem:[%s460 + $0x30] sm:$0xff] %v473
                  %v475 = vld [vmem:[%s459 + $0x70] sm:$0xff]
                  %476 = vst [vmem:[%s460 + $0x38] sm:$0xff] %v475
                  %v477 = vld [vmem:[%s459 + $0x80] sm:$0xff]
                  %478 = vst [vmem:[%s460 + $0x40] sm:$0xff] %v477
                  %v479 = vld [vmem:[%s459 + $0x90] sm:$0xff]
                  %480 = vst [vmem:[%s460 + $0x48] sm:$0xff] %v479
                  %v481 = vld [vmem:[%s459 + $0xa0] sm:$0xff]
                  %482 = vst [vmem:[%s460 + $0x50] sm:$0xff] %v481
                  %v483 = vld [vmem:[%s459 + $0xb0] sm:$0xff]
                  %484 = vst [vmem:[%s460 + $0x58] sm:$0xff] %v483
                  %v485 = vld [vmem:[%s459 + $0xc0] sm:$0xff]
                  %486 = vst [vmem:[%s460 + $0x60] sm:$0xff] %v485
                  %v487 = vld [vmem:[%s459 + $0xd0] sm:$0xff]
                  %488 = vst [vmem:[%s460 + $0x68] sm:$0xff] %v487
                  %v489 = vld [vmem:[%s459 + $0xe0] sm:$0xff]
                  %490 = vst [vmem:[%s460 + $0x70] sm:$0xff] %v489
                  %v491 = vld [vmem:[%s459 + $0xf0] sm:$0xff]
                  %492 = vst [vmem:[%s460 + $0x78] sm:$0xff] %v491
                  %v493 = vld [vmem:[%s459 + $0x100] sm:$0xff]
                  %494 = vst [vmem:[%s460 + $0x80] sm:$0xff] %v493
                  %v495 = vld [vmem:[%s459 + $0x110] sm:$0xff]
                  %496 = vst [vmem:[%s460 + $0x88] sm:$0xff] %v495
                  %v497 = vld [vmem:[%s459 + $0x120] sm:$0xff]
                  %498 = vst [vmem:[%s460 + $0x90] sm:$0xff] %v497
                  %v499 = vld [vmem:[%s459 + $0x130] sm:$0xff]
                  %500 = vst [vmem:[%s460 + $0x98] sm:$0xff] %v499
                  %v501 = vld [vmem:[%s459 + $0x140] sm:$0xff]
                  %502 = vst [vmem:[%s460 + $0xa0] sm:$0xff] %v501
                  %v503 = vld [vmem:[%s459 + $0x150] sm:$0xff]
                  %504 = vst [vmem:[%s460 + $0xa8] sm:$0xff] %v503
                  %v505 = vld [vmem:[%s459 + $0x160] sm:$0xff]
                  %506 = vst [vmem:[%s460 + $0xb0] sm:$0xff] %v505
                  %v507 = vld [vmem:[%s459 + $0x170] sm:$0xff]
                  %508 = vst [vmem:[%s460 + $0xb8] sm:$0xff] %v507
                  %v509 = vld [vmem:[%s459 + $0x180] sm:$0xff]
                  %510 = vst [vmem:[%s460 + $0xc0] sm:$0xff] %v509
                  %v511 = vld [vmem:[%s459 + $0x190] sm:$0xff]
                  %512 = vst [vmem:[%s460 + $0xc8] sm:$0xff] %v511
                  %v513 = vld [vmem:[%s459 + $0x1a0] sm:$0xff]
                  %514 = vst [vmem:[%s460 + $0xd0] sm:$0xff] %v513
                  %v515 = vld [vmem:[%s459 + $0x1b0] sm:$0xff]
                  %516 = vst [vmem:[%s460 + $0xd8] sm:$0xff] %v515
                  %v517 = vld [vmem:[%s459 + $0x1c0] sm:$0xff]
                  %518 = vst [vmem:[%s460 + $0xe0] sm:$0xff] %v517
                  %v519 = vld [vmem:[%s459 + $0x1d0] sm:$0xff]
                  %520 = vst [vmem:[%s460 + $0xe8] sm:$0xff] %v519
                  %v521 = vld [vmem:[%s459 + $0x1e0] sm:$0xff]
                  %522 = vst [vmem:[%s460 + $0xf0] sm:$0xff] %v521
                  %v523 = vld [vmem:[%s459 + $0x1f0] sm:$0xff]
                  %524 = vst [vmem:[%s460 + $0xf8] sm:$0xff] %v523
                $region88: #{cifarnet_forward.1} parent=82 // loop_footer
                  %s458 = sadd.s32 1, %s454
                $region89: #{cifarnet_forward.1} parent=82 // loop_footer_branch
                  %453 = sbr.rel target = $region85
                $region90: #{cifarnet_forward.1} parent=82 // loop_exit
                  _
              $region83: #{cifarnet_forward.1} parent=67 // pred_fallthru
                _
              // Predicated region
              $region91: #{cifarnet_forward.1} parent=67 // pred_check
                _
              $region92: #{cifarnet_forward.1} parent=67 // pred_check_branch
                %526 = sbr.rel target = $region94
              $region93: #{cifarnet_forward.1} parent=67 // pred_region
                _
              $region94: #{cifarnet_forward.1} parent=67 // pred_fallthru
                _
            $region68: #{cifarnet_forward.1} parent=63 // pred_fallthru
              _
            // Predicated region
            $region69: #{cifarnet_forward.1} parent=63 // pred_check
              _
            $region70: #{cifarnet_forward.1} parent=63 // pred_check_branch
              %376 = sbr.rel target = $region72
            $region71: #{cifarnet_forward.1} parent=63 // pred_region
              %s378 = ssub.s32 256, 1
              loop: start=0, step=1, limit=1
              $region73: #{cifarnet_forward.1} parent=71 // loop_pre_header
                _
              $region74: #{cifarnet_forward.1} parent=71 // loop_header
                %s380 = sphi 0, %s384
                %p381 = scmp.ge.s32.totalorder %s380, 1
                %s385 = sphi %s370, %s370
                %s386 = sphi %s368, %s368
              $region75: #{cifarnet_forward.1} parent=71 // loop_header_branch
                %383 = sbr.rel (%p381) target = $region79
              $region76: #{cifarnet_forward.1} parent=71 // loop_body
                %v387 = vld [vmem:[%s385] sm:%s378]
                %388 = vst [vmem:[%s386] sm:%s378] %v387
                %v389 = vld [vmem:[%s385 + $0x10] sm:%s378]
                %390 = vst [vmem:[%s386 + $0x8] sm:%s378] %v389
                %v391 = vld [vmem:[%s385 + $0x20] sm:%s378]
                %392 = vst [vmem:[%s386 + $0x10] sm:%s378] %v391
                %v393 = vld [vmem:[%s385 + $0x30] sm:%s378]
                %394 = vst [vmem:[%s386 + $0x18] sm:%s378] %v393
                %v395 = vld [vmem:[%s385 + $0x40] sm:%s378]
                %396 = vst [vmem:[%s386 + $0x20] sm:%s378] %v395
                %v397 = vld [vmem:[%s385 + $0x50] sm:%s378]
                %398 = vst [vmem:[%s386 + $0x28] sm:%s378] %v397
                %v399 = vld [vmem:[%s385 + $0x60] sm:%s378]
                %400 = vst [vmem:[%s386 + $0x30] sm:%s378] %v399
                %v401 = vld [vmem:[%s385 + $0x70] sm:%s378]
                %402 = vst [vmem:[%s386 + $0x38] sm:%s378] %v401
                %v403 = vld [vmem:[%s385 + $0x80] sm:%s378]
                %404 = vst [vmem:[%s386 + $0x40] sm:%s378] %v403
                %v405 = vld [vmem:[%s385 + $0x90] sm:%s378]
                %406 = vst [vmem:[%s386 + $0x48] sm:%s378] %v405
                %v407 = vld [vmem:[%s385 + $0xa0] sm:%s378]
                %408 = vst [vmem:[%s386 + $0x50] sm:%s378] %v407
                %v409 = vld [vmem:[%s385 + $0xb0] sm:%s378]
                %410 = vst [vmem:[%s386 + $0x58] sm:%s378] %v409
                %v411 = vld [vmem:[%s385 + $0xc0] sm:%s378]
                %412 = vst [vmem:[%s386 + $0x60] sm:%s378] %v411
                %v413 = vld [vmem:[%s385 + $0xd0] sm:%s378]
                %414 = vst [vmem:[%s386 + $0x68] sm:%s378] %v413
                %v415 = vld [vmem:[%s385 + $0xe0] sm:%s378]
                %416 = vst [vmem:[%s386 + $0x70] sm:%s378] %v415
                %v417 = vld [vmem:[%s385 + $0xf0] sm:%s378]
                %418 = vst [vmem:[%s386 + $0x78] sm:%s378] %v417
                %v419 = vld [vmem:[%s385 + $0x100] sm:%s378]
                %420 = vst [vmem:[%s386 + $0x80] sm:%s378] %v419
                %v421 = vld [vmem:[%s385 + $0x110] sm:%s378]
                %422 = vst [vmem:[%s386 + $0x88] sm:%s378] %v421
                %v423 = vld [vmem:[%s385 + $0x120] sm:%s378]
                %424 = vst [vmem:[%s386 + $0x90] sm:%s378] %v423
                %v425 = vld [vmem:[%s385 + $0x130] sm:%s378]
                %426 = vst [vmem:[%s386 + $0x98] sm:%s378] %v425
                %v427 = vld [vmem:[%s385 + $0x140] sm:%s378]
                %428 = vst [vmem:[%s386 + $0xa0] sm:%s378] %v427
                %v429 = vld [vmem:[%s385 + $0x150] sm:%s378]
                %430 = vst [vmem:[%s386 + $0xa8] sm:%s378] %v429
                %v431 = vld [vmem:[%s385 + $0x160] sm:%s378]
                %432 = vst [vmem:[%s386 + $0xb0] sm:%s378] %v431
                %v433 = vld [vmem:[%s385 + $0x170] sm:%s378]
                %434 = vst [vmem:[%s386 + $0xb8] sm:%s378] %v433
                %v435 = vld [vmem:[%s385 + $0x180] sm:%s378]
                %436 = vst [vmem:[%s386 + $0xc0] sm:%s378] %v435
                %v437 = vld [vmem:[%s385 + $0x190] sm:%s378]
                %438 = vst [vmem:[%s386 + $0xc8] sm:%s378] %v437
                %v439 = vld [vmem:[%s385 + $0x1a0] sm:%s378]
                %440 = vst [vmem:[%s386 + $0xd0] sm:%s378] %v439
                %v441 = vld [vmem:[%s385 + $0x1b0] sm:%s378]
                %442 = vst [vmem:[%s386 + $0xd8] sm:%s378] %v441
                %v443 = vld [vmem:[%s385 + $0x1c0] sm:%s378]
                %444 = vst [vmem:[%s386 + $0xe0] sm:%s378] %v443
                %v445 = vld [vmem:[%s385 + $0x1d0] sm:%s378]
                %446 = vst [vmem:[%s386 + $0xe8] sm:%s378] %v445
                %v447 = vld [vmem:[%s385 + $0x1e0] sm:%s378]
                %448 = vst [vmem:[%s386 + $0xf0] sm:%s378] %v447
                %v449 = vld [vmem:[%s385 + $0x1f0] sm:%s378]
                %450 = vst [vmem:[%s386 + $0xf8] sm:%s378] %v449
              $region77: #{cifarnet_forward.1} parent=71 // loop_footer
                %s384 = sadd.s32 1, %s380
              $region78: #{cifarnet_forward.1} parent=71 // loop_footer_branch
                %379 = sbr.rel target = $region74
              $region79: #{cifarnet_forward.1} parent=71 // loop_exit
                _
            $region72: #{cifarnet_forward.1} parent=63 // pred_fallthru
              _
          $region64: #{cifarnet_forward.1} parent=59 // pred_fallthru
            _
          %527 = vnop
        $region60: #{cifarnet_forward.1} parent=55 // pred_fallthru
          _
      $region56: #{cifarnet_forward.1} parent=5 // pred_fallthru
        _
      %p528 = scmp.le.s32.totalorder 1, %s25
      %p529 = scmp.lt.s32.totalorder %s25, 3
      %p530 = pnand %p528, %p529
      %p531 = pneg %p530
      // Predicated region
      $region95: #{cifarnet_forward.1} parent=5 // pred_check
        _
      $region96: #{cifarnet_forward.1} parent=5 // pred_check_branch
        %533 = sbr.rel (%p530) target = $region98
      $region97: #{cifarnet_forward.1} parent=5 // pred_region
        %s534 = ssub.s32 %s25, 1
        %s535 = sand.u32 %s38, 1
        %s536 = sand.u32 %s38, 1
        %s537 = smul.addr %s536, 256
        %s538 = scalar_lea.vmem [#allocation2], %s537
        // Predicated region
        $region99: #{cifarnet_forward.1} parent=97 // pred_check
          %p539 = pneg %p51
        $region100: #{cifarnet_forward.1} parent=97 // pred_check_branch
          %541 = sbr.rel (%p539) target = $region102
        $region101: #{cifarnet_forward.1} parent=97 // pred_region
          _
        $region102: #{cifarnet_forward.1} parent=97 // pred_fallthru
          _
        %s542 = sand.u32 %s38, 1
        %s543 = sand.u32 %s38, 1
        %s544 = smul.addr %s543, 256
        %s545 = scalar_lea.vmem [#allocation2], %s544
        %p546 = pneg %p51
        %p547 = pneg %p48
        %p548 = pneg %p72
        %p549 = pneg %p69
        %p550 = pneg %p93
        %p551 = pneg %p90
        %p552 = pneg %p114
        %p553 = pneg %p111
        %p554 = pneg %p135
        %p555 = pneg %p132
        %p556 = pneg %p156
        %p557 = pneg %p153
        %p558 = pneg %p177
        %p559 = pneg %p174
        %p560 = pneg %p198
        %p561 = pneg %p195
        %p562 = pneg %p219
        %p563 = pneg %p216
        %p564 = pneg %p240
        %p565 = pneg %p237
        %p566 = pneg %p261
        %p567 = pneg %p258
        %p568 = pneg %p287
        %p569 = pneg %p284
        %s570 = sand.u32 %s274, 1
        %s571 = scalar_lea.sflag [#allocation4], %s570
        %s572 = sand.u32 %s274, 1
        %s573 = smul.addr %s572, 8
        %s574 = scalar_lea.vmem [#allocation3], %s573
        %p575 = pneg %p313
        %p576 = pneg %p310
        %s577 = sand.u32 %s300, 1
        %s578 = scalar_lea.sflag [#allocation6], %s577
        %s579 = sand.u32 %s300, 1
        %s580 = smul.addr %s579, 8
        %s581 = scalar_lea.vmem [#allocation5], %s580
        %v582 = vld [vmem:[%s538] sm:$0xff]
        %v583 = vld [vmem:[%s538 + $0x8] sm:$0xff]
        %v584 = vld [vmem:[%s538 + $0x10] sm:$0xff]
        %v585 = vld [vmem:[%s538 + $0x18] sm:$0xff]
        %v586 = vld [vmem:[%s538 + $0x20] sm:$0xff]
        %v587 = vld [vmem:[%s538 + $0x28] sm:$0xff]
        %v588 = vld [vmem:[%s538 + $0x30] sm:$0xff]
        %v589 = vld [vmem:[%s538 + $0x38] sm:$0xff]
        %v590 = vld [vmem:[%s538 + $0x40] sm:$0xff]
        %v591 = vld [vmem:[%s538 + $0x48] sm:$0xff]
        %v592 = vld [vmem:[%s538 + $0x50] sm:$0xff]
        %v593 = vld [vmem:[%s538 + $0x58] sm:$0xff]
        %v594 = vld [vmem:[%s538 + $0x60] sm:$0xff]
        %v595 = vld [vmem:[%s538 + $0x68] sm:$0xff]
        %v596 = vld [vmem:[%s538 + $0x70] sm:$0xff]
        %v597 = vld [vmem:[%s538 + $0x78] sm:$0xff]
        %v598 = vld [vmem:[%s538 + $0x80] sm:$0xff]
        %v599 = vld [vmem:[%s538 + $0x88] sm:$0xff]
        %v600 = vld [vmem:[%s538 + $0x90] sm:$0xff]
        %v601 = vld [vmem:[%s538 + $0x98] sm:$0xff]
        %v602 = vld [vmem:[%s538 + $0xa0] sm:$0xff]
        %v603 = vld [vmem:[%s538 + $0xa8] sm:$0xff]
        %v604 = vld [vmem:[%s538 + $0xb0] sm:$0xff]
        %v605 = vld [vmem:[%s538 + $0xb8] sm:$0xff]
        %v606 = vld [vmem:[%s538 + $0xc0] sm:$0xff]
        %v607 = vld [vmem:[%s538 + $0xc8] sm:$0xff]
        %v608 = vld [vmem:[%s538 + $0xd0] sm:$0xff]
        %v609 = vld [vmem:[%s538 + $0xd8] sm:$0xff]
        %v610 = vld [vmem:[%s538 + $0xe0] sm:$0xff]
        %v611 = vld [vmem:[%s538 + $0xe8] sm:$0xff]
        %v612 = vld [vmem:[%s538 + $0xf0] sm:$0xff]
        %v613 = vld [vmem:[%s538 + $0xf8] sm:$0xff]
        %v614 = vld [vmem:[%s1] sm:$0xff]
        %v615 = vld [vmem:[%s1 + $0x8] sm:$0xff]
        %v616 = vld [vmem:[%s1 + $0x10] sm:$0xff]
        %v617 = vld [vmem:[%s1 + $0x18] sm:$0xff]
        %v618 = vld [vmem:[%s1 + $0x20] sm:$0xff]
        %v619 = vld [vmem:[%s1 + $0x28] sm:$0xff]
        %v620 = vld [vmem:[%s1 + $0x30] sm:$0xff]
        %v621 = vld [vmem:[%s1 + $0x38] sm:$0xff]
        %v622 = vld [vmem:[%s1 + $0x40] sm:$0xff]
        %v623 = vld [vmem:[%s1 + $0x48] sm:$0xff]
        %v624 = vld [vmem:[%s1 + $0x50] sm:$0xff]
        %v625 = vld [vmem:[%s1 + $0x58] sm:$0xff]
        %v626 = vld [vmem:[%s2] sm:$0xff]
        %v627 = vld [vmem:[%s2 + $0x8] sm:$0xff]
        %v628 = vld [vmem:[%s2 + $0x10] sm:$0xff]
        %v629 = vld [vmem:[%s2 + $0x18] sm:$0xff]
        %v630 = vld [vmem:[%s2 + $0x20] sm:$0xff]
        %v631 = vld [vmem:[%s2 + $0x28] sm:$0xff]
        %v632 = vld [vmem:[%s2 + $0x30] sm:$0xff]
        %v633 = vld [vmem:[%s2 + $0x38] sm:$0xff]
        %v634 = vld [vmem:[%s2 + $0x40] sm:$0xff]
        %v635 = vld [vmem:[%s2 + $0x48] sm:$0xff]
        %v636 = vld [vmem:[%s2 + $0x50] sm:$0xff]
        %v637 = vld [vmem:[%s2 + $0x58] sm:$0xff]
        %s638 = scalar_lea.vmem %s1, 96
        %v639 = vld [vmem:[%s638] sm:$0xff]
        %v640 = vld [vmem:[%s638 + $0x8] sm:$0xff]
        %v641 = vld [vmem:[%s638 + $0x10] sm:$0xff]
        %v642 = vld [vmem:[%s638 + $0x18] sm:$0xff]
        %v643 = vld [vmem:[%s638 + $0x20] sm:$0xff]
        %v644 = vld [vmem:[%s638 + $0x28] sm:$0xff]
        %v645 = vld [vmem:[%s638 + $0x30] sm:$0xff]
        %v646 = vld [vmem:[%s638 + $0x38] sm:$0xff]
        %v647 = vld [vmem:[%s638 + $0x40] sm:$0xff]
        %v648 = vld [vmem:[%s638 + $0x48] sm:$0xff]
        %v649 = vld [vmem:[%s638 + $0x50] sm:$0xff]
        %v650 = vld [vmem:[%s638 + $0x58] sm:$0xff]
        %vm651 = vcmask 785408
        %v653 = vsel %vm651, %v583, 0
        %v656 = vsel %vm651, %v584, 0
        %v659 = vsel %vm651, %v585, 0
        %v662 = vsel %vm651, %v586, 0
        %v665 = vsel %vm651, %v587, 0
        %v668 = vsel %vm651, %v588, 0
        %v671 = vsel %vm651, %v589, 0
        %v674 = vsel %vm651, %v590, 0
        %v677 = vsel %vm651, %v591, 0
        %v680 = vsel %vm651, %v592, 0
        %v683 = vsel %vm651, %v593, 0
        %v686 = vsel %vm651, %v594, 0
        %v689 = vsel %vm651, %v595, 0
        %v692 = vsel %vm651, %v596, 0
        %v695 = vsel %vm651, %v597, 0
        %v698 = vsel %vm651, %v598, 0
        %v701 = vsel %vm651, %v599, 0
        %v704 = vsel %vm651, %v600, 0
        %v707 = vsel %vm651, %v601, 0
        %v710 = vsel %vm651, %v602, 0
        %v713 = vsel %vm651, %v603, 0
        %v716 = vsel %vm651, %v604, 0
        %v719 = vsel %vm651, %v605, 0
        %v722 = vsel %vm651, %v606, 0
        %v725 = vsel %vm651, %v607, 0
        %v728 = vsel %vm651, %v608, 0
        %v731 = vsel %vm651, %v609, 0
        %v734 = vsel %vm651, %v610, 0
        %736 = vmatpush.msra.mxu0 0.0
        %737 = vmatpush.msra.mxu0 0.0
        %738 = vmatpush.msra.mxu0 0.0
        %739 = vmatpush.msra.mxu0 0.0
        %740 = vmatpush.msra.mxu0 %v650
        %741 = vmatpush.msra.mxu0 %v649
        %742 = vmatpush.msra.mxu0 %v648
        %743 = vmatpush.msra.mxu0 %v647
        %744 = vmatpush.msra.mxu0 %v646
        %745 = vmatpush.msra.mxu0 %v645
        %746 = vmatpush.msra.mxu0 %v644
        %747 = vmatpush.msra.mxu0 %v643
        %748 = vmatpush.msra.mxu0 %v642
        %749 = vmatpush.msra.mxu0 %v641
        %750 = vmatpush.msra.mxu0 %v640
        %751 = vmatpush.msra.mxu0 %v639
        %752 = vmatmul.f32.gmra.mxu0 %v653
        %v753 = vpop.f32.mrf.mxu0
        %v754 = vadd.f32 0.0, %v753
        %755 = vmatmul.f32.gmra.mxu0 %v656
        %v756 = vpop.f32.mrf.mxu0
        %v757 = vadd.f32 0.0, %v756
        %758 = vmatmul.f32.gmra.mxu0 %v659
        %v759 = vpop.f32.mrf.mxu0
        %v760 = vadd.f32 0.0, %v759
        %761 = vmatmul.f32.gmra.mxu0 %v662
        %v762 = vpop.f32.mrf.mxu0
        %v763 = vadd.f32 0.0, %v762
        %764 = vmatmul.f32.gmra.mxu0 %v665
        %v765 = vpop.f32.mrf.mxu0
        %v766 = vadd.f32 0.0, %v765
        %767 = vmatmul.f32.gmra.mxu0 %v668
        %v768 = vpop.f32.mrf.mxu0
        %v769 = vadd.f32 0.0, %v768
        %770 = vmatmul.f32.gmra.mxu0 %v671
        %v771 = vpop.f32.mrf.mxu0
        %v772 = vadd.f32 0.0, %v771
        %773 = vmatmul.f32.gmra.mxu0 %v674
        %v774 = vpop.f32.mrf.mxu0
        %v775 = vadd.f32 0.0, %v774
        %776 = vmatmul.f32.gmra.mxu0 %v677
        %v777 = vpop.f32.mrf.mxu0
        %v778 = vadd.f32 0.0, %v777
        %779 = vmatmul.f32.gmra.mxu0 %v680
        %v780 = vpop.f32.mrf.mxu0
        %v781 = vadd.f32 0.0, %v780
        %782 = vmatmul.f32.gmra.mxu0 %v683
        %v783 = vpop.f32.mrf.mxu0
        %v784 = vadd.f32 0.0, %v783
        %785 = vmatmul.f32.gmra.mxu0 %v686
        %v786 = vpop.f32.mrf.mxu0
        %v787 = vadd.f32 0.0, %v786
        %788 = vmatmul.f32.gmra.mxu0 %v689
        %v789 = vpop.f32.mrf.mxu0
        %v790 = vadd.f32 0.0, %v789
        %791 = vmatmul.f32.gmra.mxu0 %v692
        %v792 = vpop.f32.mrf.mxu0
        %v793 = vadd.f32 0.0, %v792
        %794 = vmatmul.f32.gmra.mxu0 %v695
        %v795 = vpop.f32.mrf.mxu0
        %v796 = vadd.f32 0.0, %v795
        %797 = vmatmul.f32.gmra.mxu0 %v698
        %v798 = vpop.f32.mrf.mxu0
        %v799 = vadd.f32 0.0, %v798
        %800 = vmatmul.f32.gmra.mxu0 %v701
        %v801 = vpop.f32.mrf.mxu0
        %v802 = vadd.f32 0.0, %v801
        %803 = vmatmul.f32.gmra.mxu0 %v704
        %v804 = vpop.f32.mrf.mxu0
        %v805 = vadd.f32 0.0, %v804
        %806 = vmatmul.f32.gmra.mxu0 %v707
        %v807 = vpop.f32.mrf.mxu0
        %v808 = vadd.f32 0.0, %v807
        %809 = vmatmul.f32.gmra.mxu0 %v710
        %v810 = vpop.f32.mrf.mxu0
        %v811 = vadd.f32 0.0, %v810
        %812 = vmatmul.f32.gmra.mxu0 %v713
        %v813 = vpop.f32.mrf.mxu0
        %v814 = vadd.f32 0.0, %v813
        %815 = vmatmul.f32.gmra.mxu0 %v716
        %v816 = vpop.f32.mrf.mxu0
        %v817 = vadd.f32 0.0, %v816
        %818 = vmatmul.f32.gmra.mxu0 %v719
        %v819 = vpop.f32.mrf.mxu0
        %v820 = vadd.f32 0.0, %v819
        %821 = vmatmul.f32.gmra.mxu0 %v722
        %v822 = vpop.f32.mrf.mxu0
        %v823 = vadd.f32 0.0, %v822
        %824 = vmatmul.f32.gmra.mxu0 %v725
        %v825 = vpop.f32.mrf.mxu0
        %v826 = vadd.f32 0.0, %v825
        %827 = vmatmul.f32.gmra.mxu0 %v728
        %v828 = vpop.f32.mrf.mxu0
        %v829 = vadd.f32 0.0, %v828
        %830 = vmatmul.f32.gmra.mxu0 %v731
        %v831 = vpop.f32.mrf.mxu0
        %v832 = vadd.f32 0.0, %v831
        %833 = vmatmul.f32.gmra.mxu0 %v734
        %v834 = vpop.f32.mrf.mxu0
        %v835 = vadd.f32 0.0, %v834
        %836 = vdwg.mxu0
        %v838 = vsel %vm651, %v582, 0
        %840 = vmatpush.msra.mxu0 0.0
        %841 = vmatpush.msra.mxu0 0.0
        %842 = vmatpush.msra.mxu0 0.0
        %843 = vmatpush.msra.mxu0 0.0
        %844 = vmatpush.msra.mxu0 %v625
        %845 = vmatpush.msra.mxu0 %v624
        %846 = vmatpush.msra.mxu0 %v623
        %847 = vmatpush.msra.mxu0 %v622
        %848 = vmatpush.msra.mxu0 %v621
        %849 = vmatpush.msra.mxu0 %v620
        %850 = vmatpush.msra.mxu0 %v619
        %851 = vmatpush.msra.mxu0 %v618
        %852 = vmatpush.msra.mxu0 %v617
        %853 = vmatpush.msra.mxu0 %v616
        %854 = vmatpush.msra.mxu0 %v615
        %855 = vmatpush.msra.mxu0 %v614
        %856 = vmatmul.f32.gmra.mxu0 %v838
        %v857 = vpop.f32.mrf.mxu0
        %v858 = vadd.f32 %v754, %v857
        %859 = vmatmul.f32.gmra.mxu0 %v653
        %v860 = vpop.f32.mrf.mxu0
        %v861 = vadd.f32 %v757, %v860
        %862 = vmatmul.f32.gmra.mxu0 %v656
        %v863 = vpop.f32.mrf.mxu0
        %v864 = vadd.f32 %v760, %v863
        %865 = vmatmul.f32.gmra.mxu0 %v659
        %v866 = vpop.f32.mrf.mxu0
        %v867 = vadd.f32 %v763, %v866
        %868 = vmatmul.f32.gmra.mxu0 %v662
        %v869 = vpop.f32.mrf.mxu0
        %v870 = vadd.f32 %v766, %v869
        %871 = vmatmul.f32.gmra.mxu0 %v665
        %v872 = vpop.f32.mrf.mxu0
        %v873 = vadd.f32 %v769, %v872
        %874 = vmatmul.f32.gmra.mxu0 %v668
        %v875 = vpop.f32.mrf.mxu0
        %v876 = vadd.f32 %v772, %v875
        %877 = vmatmul.f32.gmra.mxu0 %v671
        %v878 = vpop.f32.mrf.mxu0
        %v879 = vadd.f32 %v775, %v878
        %880 = vmatmul.f32.gmra.mxu0 %v674
        %v881 = vpop.f32.mrf.mxu0
        %v882 = vadd.f32 %v778, %v881
        %883 = vmatmul.f32.gmra.mxu0 %v677
        %v884 = vpop.f32.mrf.mxu0
        %v885 = vadd.f32 %v781, %v884
        %886 = vmatmul.f32.gmra.mxu0 %v680
        %v887 = vpop.f32.mrf.mxu0
        %v888 = vadd.f32 %v784, %v887
        %889 = vmatmul.f32.gmra.mxu0 %v683
        %v890 = vpop.f32.mrf.mxu0
        %v891 = vadd.f32 %v787, %v890
        %892 = vmatmul.f32.gmra.mxu0 %v686
        %v893 = vpop.f32.mrf.mxu0
        %v894 = vadd.f32 %v790, %v893
        %895 = vmatmul.f32.gmra.mxu0 %v689
        %v896 = vpop.f32.mrf.mxu0
        %v897 = vadd.f32 %v793, %v896
        %898 = vmatmul.f32.gmra.mxu0 %v692
        %v899 = vpop.f32.mrf.mxu0
        %v900 = vadd.f32 %v796, %v899
        %901 = vmatmul.f32.gmra.mxu0 %v695
        %v902 = vpop.f32.mrf.mxu0
        %v903 = vadd.f32 %v799, %v902
        %904 = vmatmul.f32.gmra.mxu0 %v698
        %v905 = vpop.f32.mrf.mxu0
        %v906 = vadd.f32 %v802, %v905
        %907 = vmatmul.f32.gmra.mxu0 %v701
        %v908 = vpop.f32.mrf.mxu0
        %v909 = vadd.f32 %v805, %v908
        %910 = vmatmul.f32.gmra.mxu0 %v704
        %v911 = vpop.f32.mrf.mxu0
        %v912 = vadd.f32 %v808, %v911
        %913 = vmatmul.f32.gmra.mxu0 %v707
        %v914 = vpop.f32.mrf.mxu0
        %v915 = vadd.f32 %v811, %v914
        %916 = vmatmul.f32.gmra.mxu0 %v710
        %v917 = vpop.f32.mrf.mxu0
        %v918 = vadd.f32 %v814, %v917
        %919 = vmatmul.f32.gmra.mxu0 %v713
        %v920 = vpop.f32.mrf.mxu0
        %v921 = vadd.f32 %v817, %v920
        %922 = vmatmul.f32.gmra.mxu0 %v716
        %v923 = vpop.f32.mrf.mxu0
        %v924 = vadd.f32 %v820, %v923
        %925 = vmatmul.f32.gmra.mxu0 %v719
        %v926 = vpop.f32.mrf.mxu0
        %v927 = vadd.f32 %v823, %v926
        %928 = vmatmul.f32.gmra.mxu0 %v722
        %v929 = vpop.f32.mrf.mxu0
        %v930 = vadd.f32 %v826, %v929
        %931 = vmatmul.f32.gmra.mxu0 %v725
        %v932 = vpop.f32.mrf.mxu0
        %v933 = vadd.f32 %v829, %v932
        %934 = vmatmul.f32.gmra.mxu0 %v728
        %v935 = vpop.f32.mrf.mxu0
        %v936 = vadd.f32 %v832, %v935
        %937 = vmatmul.f32.gmra.mxu0 %v731
        %v938 = vpop.f32.mrf.mxu0
        %v939 = vadd.f32 %v835, %v938
        %940 = vdwg.mxu0
        %s941 = scalar_lea.vmem %s2, 96
        %v942 = vld [vmem:[%s941] sm:$0xff]
        %v943 = vld [vmem:[%s941 + $0x8] sm:$0xff]
        %v944 = vld [vmem:[%s941 + $0x10] sm:$0xff]
        %v945 = vld [vmem:[%s941 + $0x18] sm:$0xff]
        %v946 = vld [vmem:[%s941 + $0x20] sm:$0xff]
        %v947 = vld [vmem:[%s941 + $0x28] sm:$0xff]
        %v948 = vld [vmem:[%s941 + $0x30] sm:$0xff]
        %v949 = vld [vmem:[%s941 + $0x38] sm:$0xff]
        %v950 = vld [vmem:[%s941 + $0x40] sm:$0xff]
        %v951 = vld [vmem:[%s941 + $0x48] sm:$0xff]
        %v952 = vld [vmem:[%s941 + $0x50] sm:$0xff]
        %v953 = vld [vmem:[%s941 + $0x58] sm:$0xff]
        %954 = vmatpush.msra.mxu0 0.0
        %955 = vmatpush.msra.mxu0 0.0
        %956 = vmatpush.msra.mxu0 0.0
        %957 = vmatpush.msra.mxu0 0.0
        %958 = vmatpush.msra.mxu0 %v953
        %959 = vmatpush.msra.mxu0 %v952
        %960 = vmatpush.msra.mxu0 %v951
        %961 = vmatpush.msra.mxu0 %v950
        %962 = vmatpush.msra.mxu0 %v949
        %963 = vmatpush.msra.mxu0 %v948
        %964 = vmatpush.msra.mxu0 %v947
        %965 = vmatpush.msra.mxu0 %v946
        %966 = vmatpush.msra.mxu0 %v945
        %967 = vmatpush.msra.mxu0 %v944
        %968 = vmatpush.msra.mxu0 %v943
        %969 = vmatpush.msra.mxu0 %v942
        %970 = vmatmul.f32.gmra.mxu0 %v653
        %v971 = vpop.f32.mrf.mxu0
        %v972 = vadd.f32 0.0, %v971
        %973 = vmatmul.f32.gmra.mxu0 %v656
        %v974 = vpop.f32.mrf.mxu0
        %v975 = vadd.f32 0.0, %v974
        %976 = vmatmul.f32.gmra.mxu0 %v659
        %v977 = vpop.f32.mrf.mxu0
        %v978 = vadd.f32 0.0, %v977
        %979 = vmatmul.f32.gmra.mxu0 %v662
        %v980 = vpop.f32.mrf.mxu0
        %v981 = vadd.f32 0.0, %v980
        %982 = vmatmul.f32.gmra.mxu0 %v665
        %v983 = vpop.f32.mrf.mxu0
        %v984 = vadd.f32 0.0, %v983
        %985 = vmatmul.f32.gmra.mxu0 %v668
        %v986 = vpop.f32.mrf.mxu0
        %v987 = vadd.f32 0.0, %v986
        %988 = vmatmul.f32.gmra.mxu0 %v671
        %v989 = vpop.f32.mrf.mxu0
        %v990 = vadd.f32 0.0, %v989
        %991 = vmatmul.f32.gmra.mxu0 %v674
        %v992 = vpop.f32.mrf.mxu0
        %v993 = vadd.f32 0.0, %v992
        %994 = vmatmul.f32.gmra.mxu0 %v677
        %v995 = vpop.f32.mrf.mxu0
        %v996 = vadd.f32 0.0, %v995
        %997 = vmatmul.f32.gmra.mxu0 %v680
        %v998 = vpop.f32.mrf.mxu0
        %v999 = vadd.f32 0.0, %v998
        %1000 = vmatmul.f32.gmra.mxu0 %v683
        %v1001 = vpop.f32.mrf.mxu0
        %v1002 = vadd.f32 0.0, %v1001
        %1003 = vmatmul.f32.gmra.mxu0 %v686
        %v1004 = vpop.f32.mrf.mxu0
        %v1005 = vadd.f32 0.0, %v1004
        %1006 = vmatmul.f32.gmra.mxu0 %v689
        %v1007 = vpop.f32.mrf.mxu0
        %v1008 = vadd.f32 0.0, %v1007
        %1009 = vmatmul.f32.gmra.mxu0 %v692
        %v1010 = vpop.f32.mrf.mxu0
        %v1011 = vadd.f32 0.0, %v1010
        %1012 = vmatmul.f32.gmra.mxu0 %v695
        %v1013 = vpop.f32.mrf.mxu0
        %v1014 = vadd.f32 0.0, %v1013
        %1015 = vmatmul.f32.gmra.mxu0 %v698
        %v1016 = vpop.f32.mrf.mxu0
        %v1017 = vadd.f32 0.0, %v1016
        %1018 = vmatmul.f32.gmra.mxu0 %v701
        %v1019 = vpop.f32.mrf.mxu0
        %v1020 = vadd.f32 0.0, %v1019
        %1021 = vmatmul.f32.gmra.mxu0 %v704
        %v1022 = vpop.f32.mrf.mxu0
        %v1023 = vadd.f32 0.0, %v1022
        %1024 = vmatmul.f32.gmra.mxu0 %v707
        %v1025 = vpop.f32.mrf.mxu0
        %v1026 = vadd.f32 0.0, %v1025
        %1027 = vmatmul.f32.gmra.mxu0 %v710
        %v1028 = vpop.f32.mrf.mxu0
        %v1029 = vadd.f32 0.0, %v1028
        %1030 = vmatmul.f32.gmra.mxu0 %v713
        %v1031 = vpop.f32.mrf.mxu0
        %v1032 = vadd.f32 0.0, %v1031
        %1033 = vmatmul.f32.gmra.mxu0 %v716
        %v1034 = vpop.f32.mrf.mxu0
        %v1035 = vadd.f32 0.0, %v1034
        %1036 = vmatmul.f32.gmra.mxu0 %v719
        %v1037 = vpop.f32.mrf.mxu0
        %v1038 = vadd.f32 0.0, %v1037
        %1039 = vmatmul.f32.gmra.mxu0 %v722
        %v1040 = vpop.f32.mrf.mxu0
        %v1041 = vadd.f32 0.0, %v1040
        %1042 = vmatmul.f32.gmra.mxu0 %v725
        %v1043 = vpop.f32.mrf.mxu0
        %v1044 = vadd.f32 0.0, %v1043
        %1045 = vmatmul.f32.gmra.mxu0 %v728
        %v1046 = vpop.f32.mrf.mxu0
        %v1047 = vadd.f32 0.0, %v1046
        %1048 = vmatmul.f32.gmra.mxu0 %v731
        %v1049 = vpop.f32.mrf.mxu0
        %v1050 = vadd.f32 0.0, %v1049
        %1051 = vmatmul.f32.gmra.mxu0 %v734
        %v1052 = vpop.f32.mrf.mxu0
        %v1053 = vadd.f32 0.0, %v1052
        %1054 = vdwg.mxu0
        %1055 = vmatpush.msra.mxu0 0.0
        %1056 = vmatpush.msra.mxu0 0.0
        %1057 = vmatpush.msra.mxu0 0.0
        %1058 = vmatpush.msra.mxu0 0.0
        %1059 = vmatpush.msra.mxu0 %v637
        %1060 = vmatpush.msra.mxu0 %v636
        %1061 = vmatpush.msra.mxu0 %v635
        %1062 = vmatpush.msra.mxu0 %v634
        %1063 = vmatpush.msra.mxu0 %v633
        %1064 = vmatpush.msra.mxu0 %v632
        %1065 = vmatpush.msra.mxu0 %v631
        %1066 = vmatpush.msra.mxu0 %v630
        %1067 = vmatpush.msra.mxu0 %v629
        %1068 = vmatpush.msra.mxu0 %v628
        %1069 = vmatpush.msra.mxu0 %v627
        %1070 = vmatpush.msra.mxu0 %v626
        %1071 = vmatmul.f32.gmra.mxu0 %v838
        %v1072 = vpop.f32.mrf.mxu0
        %v1073 = vadd.f32 %v972, %v1072
        %1074 = vmatmul.f32.gmra.mxu0 %v653
        %v1075 = vpop.f32.mrf.mxu0
        %v1076 = vadd.f32 %v975, %v1075
        %1077 = vmatmul.f32.gmra.mxu0 %v656
        %v1078 = vpop.f32.mrf.mxu0
        %v1079 = vadd.f32 %v978, %v1078
        %1080 = vmatmul.f32.gmra.mxu0 %v659
        %v1081 = vpop.f32.mrf.mxu0
        %v1082 = vadd.f32 %v981, %v1081
        %1083 = vmatmul.f32.gmra.mxu0 %v662
        %v1084 = vpop.f32.mrf.mxu0
        %v1085 = vadd.f32 %v984, %v1084
        %1086 = vmatmul.f32.gmra.mxu0 %v665
        %v1087 = vpop.f32.mrf.mxu0
        %v1088 = vadd.f32 %v987, %v1087
        %1089 = vmatmul.f32.gmra.mxu0 %v668
        %v1090 = vpop.f32.mrf.mxu0
        %v1091 = vadd.f32 %v990, %v1090
        %1092 = vmatmul.f32.gmra.mxu0 %v671
        %v1093 = vpop.f32.mrf.mxu0
        %v1094 = vadd.f32 %v993, %v1093
        %1095 = vmatmul.f32.gmra.mxu0 %v674
        %v1096 = vpop.f32.mrf.mxu0
        %v1097 = vadd.f32 %v996, %v1096
        %1098 = vmatmul.f32.gmra.mxu0 %v677
        %v1099 = vpop.f32.mrf.mxu0
        %v1100 = vadd.f32 %v999, %v1099
        %1101 = vmatmul.f32.gmra.mxu0 %v680
        %v1102 = vpop.f32.mrf.mxu0
        %v1103 = vadd.f32 %v1002, %v1102
        %1104 = vmatmul.f32.gmra.mxu0 %v683
        %v1105 = vpop.f32.mrf.mxu0
        %v1106 = vadd.f32 %v1005, %v1105
        %1107 = vmatmul.f32.gmra.mxu0 %v686
        %v1108 = vpop.f32.mrf.mxu0
        %v1109 = vadd.f32 %v1008, %v1108
        %1110 = vmatmul.f32.gmra.mxu0 %v689
        %v1111 = vpop.f32.mrf.mxu0
        %v1112 = vadd.f32 %v1011, %v1111
        %1113 = vmatmul.f32.gmra.mxu0 %v692
        %v1114 = vpop.f32.mrf.mxu0
        %v1115 = vadd.f32 %v1014, %v1114
        %1116 = vmatmul.f32.gmra.mxu0 %v695
        %v1117 = vpop.f32.mrf.mxu0
        %v1118 = vadd.f32 %v1017, %v1117
        %1119 = vmatmul.f32.gmra.mxu0 %v698
        %v1120 = vpop.f32.mrf.mxu0
        %v1121 = vadd.f32 %v1020, %v1120
        %1122 = vmatmul.f32.gmra.mxu0 %v701
        %v1123 = vpop.f32.mrf.mxu0
        %v1124 = vadd.f32 %v1023, %v1123
        %1125 = vmatmul.f32.gmra.mxu0 %v704
        %v1126 = vpop.f32.mrf.mxu0
        %v1127 = vadd.f32 %v1026, %v1126
        %1128 = vmatmul.f32.gmra.mxu0 %v707
        %v1129 = vpop.f32.mrf.mxu0
        %v1130 = vadd.f32 %v1029, %v1129
        %1131 = vmatmul.f32.gmra.mxu0 %v710
        %v1132 = vpop.f32.mrf.mxu0
        %v1133 = vadd.f32 %v1032, %v1132
        %1134 = vmatmul.f32.gmra.mxu0 %v713
        %v1135 = vpop.f32.mrf.mxu0
        %v1136 = vadd.f32 %v1035, %v1135
        %1137 = vmatmul.f32.gmra.mxu0 %v716
        %v1138 = vpop.f32.mrf.mxu0
        %v1139 = vadd.f32 %v1038, %v1138
        %1140 = vmatmul.f32.gmra.mxu0 %v719
        %v1141 = vpop.f32.mrf.mxu0
        %v1142 = vadd.f32 %v1041, %v1141
        %1143 = vmatmul.f32.gmra.mxu0 %v722
        %v1144 = vpop.f32.mrf.mxu0
        %v1145 = vadd.f32 %v1044, %v1144
        %1146 = vmatmul.f32.gmra.mxu0 %v725
        %v1147 = vpop.f32.mrf.mxu0
        %v1148 = vadd.f32 %v1047, %v1147
        %1149 = vmatmul.f32.gmra.mxu0 %v728
        %v1150 = vpop.f32.mrf.mxu0
        %v1151 = vadd.f32 %v1050, %v1150
        %1152 = vmatmul.f32.gmra.mxu0 %v731
        %v1153 = vpop.f32.mrf.mxu0
        %v1154 = vadd.f32 %v1053, %v1153
        %1155 = vdwg.mxu0
        %s1156 = scalar_lea.vmem %s1, 192
        %v1157 = vld [vmem:[%s1156] sm:$0xff]
        %v1158 = vld [vmem:[%s1156 + $0x8] sm:$0xff]
        %v1159 = vld [vmem:[%s1156 + $0x10] sm:$0xff]
        %v1160 = vld [vmem:[%s1156 + $0x18] sm:$0xff]
        %v1161 = vld [vmem:[%s1156 + $0x20] sm:$0xff]
        %v1162 = vld [vmem:[%s1156 + $0x28] sm:$0xff]
        %v1163 = vld [vmem:[%s1156 + $0x30] sm:$0xff]
        %v1164 = vld [vmem:[%s1156 + $0x38] sm:$0xff]
        %v1165 = vld [vmem:[%s1156 + $0x40] sm:$0xff]
        %v1166 = vld [vmem:[%s1156 + $0x48] sm:$0xff]
        %v1167 = vld [vmem:[%s1156 + $0x50] sm:$0xff]
        %v1168 = vld [vmem:[%s1156 + $0x58] sm:$0xff]
        %v1170 = vsel %vm651, %v611, 0
        %1172 = vmatpush.msra.mxu0 0.0
        %1173 = vmatpush.msra.mxu0 0.0
        %1174 = vmatpush.msra.mxu0 0.0
        %1175 = vmatpush.msra.mxu0 0.0
        %1176 = vmatpush.msra.mxu0 %v1168
        %1177 = vmatpush.msra.mxu0 %v1167
        %1178 = vmatpush.msra.mxu0 %v1166
        %1179 = vmatpush.msra.mxu0 %v1165
        %1180 = vmatpush.msra.mxu0 %v1164
        %1181 = vmatpush.msra.mxu0 %v1163
        %1182 = vmatpush.msra.mxu0 %v1162
        %1183 = vmatpush.msra.mxu0 %v1161
        %1184 = vmatpush.msra.mxu0 %v1160
        %1185 = vmatpush.msra.mxu0 %v1159
        %1186 = vmatpush.msra.mxu0 %v1158
        %1187 = vmatpush.msra.mxu0 %v1157
        %1188 = vmatmul.f32.gmra.mxu0 %v656
        %v1189 = vpop.f32.mrf.mxu0
        %v1190 = vadd.f32 0.0, %v1189
        %1191 = vmatmul.f32.gmra.mxu0 %v659
        %v1192 = vpop.f32.mrf.mxu0
        %v1193 = vadd.f32 0.0, %v1192
        %1194 = vmatmul.f32.gmra.mxu0 %v662
        %v1195 = vpop.f32.mrf.mxu0
        %v1196 = vadd.f32 0.0, %v1195
        %1197 = vmatmul.f32.gmra.mxu0 %v665
        %v1198 = vpop.f32.mrf.mxu0
        %v1199 = vadd.f32 0.0, %v1198
        %1200 = vmatmul.f32.gmra.mxu0 %v668
        %v1201 = vpop.f32.mrf.mxu0
        %v1202 = vadd.f32 0.0, %v1201
        %1203 = vmatmul.f32.gmra.mxu0 %v671
        %v1204 = vpop.f32.mrf.mxu0
        %v1205 = vadd.f32 0.0, %v1204
        %1206 = vmatmul.f32.gmra.mxu0 %v674
        %v1207 = vpop.f32.mrf.mxu0
        %v1208 = vadd.f32 0.0, %v1207
        %1209 = vmatmul.f32.gmra.mxu0 %v677
        %v1210 = vpop.f32.mrf.mxu0
        %v1211 = vadd.f32 0.0, %v1210
        %1212 = vmatmul.f32.gmra.mxu0 %v680
        %v1213 = vpop.f32.mrf.mxu0
        %v1214 = vadd.f32 0.0, %v1213
        %1215 = vmatmul.f32.gmra.mxu0 %v683
        %v1216 = vpop.f32.mrf.mxu0
        %v1217 = vadd.f32 0.0, %v1216
        %1218 = vmatmul.f32.gmra.mxu0 %v686
        %v1219 = vpop.f32.mrf.mxu0
        %v1220 = vadd.f32 0.0, %v1219
        %1221 = vmatmul.f32.gmra.mxu0 %v689
        %v1222 = vpop.f32.mrf.mxu0
        %v1223 = vadd.f32 0.0, %v1222
        %1224 = vmatmul.f32.gmra.mxu0 %v692
        %v1225 = vpop.f32.mrf.mxu0
        %v1226 = vadd.f32 0.0, %v1225
        %1227 = vmatmul.f32.gmra.mxu0 %v695
        %v1228 = vpop.f32.mrf.mxu0
        %v1229 = vadd.f32 0.0, %v1228
        %1230 = vmatmul.f32.gmra.mxu0 %v698
        %v1231 = vpop.f32.mrf.mxu0
        %v1232 = vadd.f32 0.0, %v1231
        %1233 = vmatmul.f32.gmra.mxu0 %v701
        %v1234 = vpop.f32.mrf.mxu0
        %v1235 = vadd.f32 0.0, %v1234
        %1236 = vmatmul.f32.gmra.mxu0 %v704
        %v1237 = vpop.f32.mrf.mxu0
        %v1238 = vadd.f32 0.0, %v1237
        %1239 = vmatmul.f32.gmra.mxu0 %v707
        %v1240 = vpop.f32.mrf.mxu0
        %v1241 = vadd.f32 0.0, %v1240
        %1242 = vmatmul.f32.gmra.mxu0 %v710
        %v1243 = vpop.f32.mrf.mxu0
        %v1244 = vadd.f32 0.0, %v1243
        %1245 = vmatmul.f32.gmra.mxu0 %v713
        %v1246 = vpop.f32.mrf.mxu0
        %v1247 = vadd.f32 0.0, %v1246
        %1248 = vmatmul.f32.gmra.mxu0 %v716
        %v1249 = vpop.f32.mrf.mxu0
        %v1250 = vadd.f32 0.0, %v1249
        %1251 = vmatmul.f32.gmra.mxu0 %v719
        %v1252 = vpop.f32.mrf.mxu0
        %v1253 = vadd.f32 0.0, %v1252
        %1254 = vmatmul.f32.gmra.mxu0 %v722
        %v1255 = vpop.f32.mrf.mxu0
        %v1256 = vadd.f32 0.0, %v1255
        %1257 = vmatmul.f32.gmra.mxu0 %v725
        %v1258 = vpop.f32.mrf.mxu0
        %v1259 = vadd.f32 0.0, %v1258
        %1260 = vmatmul.f32.gmra.mxu0 %v728
        %v1261 = vpop.f32.mrf.mxu0
        %v1262 = vadd.f32 0.0, %v1261
        %1263 = vmatmul.f32.gmra.mxu0 %v731
        %v1264 = vpop.f32.mrf.mxu0
        %v1265 = vadd.f32 0.0, %v1264
        %1266 = vmatmul.f32.gmra.mxu0 %v734
        %v1267 = vpop.f32.mrf.mxu0
        %v1268 = vadd.f32 0.0, %v1267
        %1269 = vmatmul.f32.gmra.mxu0 %v1170
        %v1270 = vpop.f32.mrf.mxu0
        %v1271 = vadd.f32 0.0, %v1270
        %1272 = vdwg.mxu0
        %v1273 = vadd.f32 %v858, %v1190
        %v1274 = vadd.f32 %v861, %v1193
        %v1275 = vadd.f32 %v864, %v1196
        %v1276 = vadd.f32 %v867, %v1199
        %v1277 = vadd.f32 %v870, %v1202
        %v1278 = vadd.f32 %v873, %v1205
        %v1279 = vadd.f32 %v876, %v1208
        %v1280 = vadd.f32 %v879, %v1211
        %v1281 = vadd.f32 %v882, %v1214
        %v1282 = vadd.f32 %v885, %v1217
        %v1283 = vadd.f32 %v888, %v1220
        %v1284 = vadd.f32 %v891, %v1223
        %v1285 = vadd.f32 %v894, %v1226
        %v1286 = vadd.f32 %v897, %v1229
        %v1287 = vadd.f32 %v900, %v1232
        %v1288 = vadd.f32 %v903, %v1235
        %v1289 = vadd.f32 %v906, %v1238
        %v1290 = vadd.f32 %v909, %v1241
        %v1291 = vadd.f32 %v912, %v1244
        %v1292 = vadd.f32 %v915, %v1247
        %v1293 = vadd.f32 %v918, %v1250
        %v1294 = vadd.f32 %v921, %v1253
        %v1295 = vadd.f32 %v924, %v1256
        %v1296 = vadd.f32 %v927, %v1259
        %v1297 = vadd.f32 %v930, %v1262
        %v1298 = vadd.f32 %v933, %v1265
        %v1299 = vadd.f32 %v936, %v1268
        %v1300 = vadd.f32 %v939, %v1271
        %s1301 = scalar_lea.vmem %s2, 192
        %v1302 = vld [vmem:[%s1301] sm:$0xff]
        %v1303 = vld [vmem:[%s1301 + $0x8] sm:$0xff]
        %v1304 = vld [vmem:[%s1301 + $0x10] sm:$0xff]
        %v1305 = vld [vmem:[%s1301 + $0x18] sm:$0xff]
        %v1306 = vld [vmem:[%s1301 + $0x20] sm:$0xff]
        %v1307 = vld [vmem:[%s1301 + $0x28] sm:$0xff]
        %v1308 = vld [vmem:[%s1301 + $0x30] sm:$0xff]
        %v1309 = vld [vmem:[%s1301 + $0x38] sm:$0xff]
        %v1310 = vld [vmem:[%s1301 + $0x40] sm:$0xff]
        %v1311 = vld [vmem:[%s1301 + $0x48] sm:$0xff]
        %v1312 = vld [vmem:[%s1301 + $0x50] sm:$0xff]
        %v1313 = vld [vmem:[%s1301 + $0x58] sm:$0xff]
        %1314 = vmatpush.msra.mxu0 0.0
        %1315 = vmatpush.msra.mxu0 0.0
        %1316 = vmatpush.msra.mxu0 0.0
        %1317 = vmatpush.msra.mxu0 0.0
        %1318 = vmatpush.msra.mxu0 %v1313
        %1319 = vmatpush.msra.mxu0 %v1312
        %1320 = vmatpush.msra.mxu0 %v1311
        %1321 = vmatpush.msra.mxu0 %v1310
        %1322 = vmatpush.msra.mxu0 %v1309
        %1323 = vmatpush.msra.mxu0 %v1308
        %1324 = vmatpush.msra.mxu0 %v1307
        %1325 = vmatpush.msra.mxu0 %v1306
        %1326 = vmatpush.msra.mxu0 %v1305
        %1327 = vmatpush.msra.mxu0 %v1304
        %1328 = vmatpush.msra.mxu0 %v1303
        %1329 = vmatpush.msra.mxu0 %v1302
        %1330 = vmatmul.f32.gmra.mxu0 %v656
        %v1331 = vpop.f32.mrf.mxu0
        %v1332 = vadd.f32 0.0, %v1331
        %1333 = vmatmul.f32.gmra.mxu0 %v659
        %v1334 = vpop.f32.mrf.mxu0
        %v1335 = vadd.f32 0.0, %v1334
        %1336 = vmatmul.f32.gmra.mxu0 %v662
        %v1337 = vpop.f32.mrf.mxu0
        %v1338 = vadd.f32 0.0, %v1337
        %1339 = vmatmul.f32.gmra.mxu0 %v665
        %v1340 = vpop.f32.mrf.mxu0
        %v1341 = vadd.f32 0.0, %v1340
        %1342 = vmatmul.f32.gmra.mxu0 %v668
        %v1343 = vpop.f32.mrf.mxu0
        %v1344 = vadd.f32 0.0, %v1343
        %1345 = vmatmul.f32.gmra.mxu0 %v671
        %v1346 = vpop.f32.mrf.mxu0
        %v1347 = vadd.f32 0.0, %v1346
        %1348 = vmatmul.f32.gmra.mxu0 %v674
        %v1349 = vpop.f32.mrf.mxu0
        %v1350 = vadd.f32 0.0, %v1349
        %1351 = vmatmul.f32.gmra.mxu0 %v677
        %v1352 = vpop.f32.mrf.mxu0
        %v1353 = vadd.f32 0.0, %v1352
        %1354 = vmatmul.f32.gmra.mxu0 %v680
        %v1355 = vpop.f32.mrf.mxu0
        %v1356 = vadd.f32 0.0, %v1355
        %1357 = vmatmul.f32.gmra.mxu0 %v683
        %v1358 = vpop.f32.mrf.mxu0
        %v1359 = vadd.f32 0.0, %v1358
        %1360 = vmatmul.f32.gmra.mxu0 %v686
        %v1361 = vpop.f32.mrf.mxu0
        %v1362 = vadd.f32 0.0, %v1361
        %1363 = vmatmul.f32.gmra.mxu0 %v689
        %v1364 = vpop.f32.mrf.mxu0
        %v1365 = vadd.f32 0.0, %v1364
        %1366 = vmatmul.f32.gmra.mxu0 %v692
        %v1367 = vpop.f32.mrf.mxu0
        %v1368 = vadd.f32 0.0, %v1367
        %1369 = vmatmul.f32.gmra.mxu0 %v695
        %v1370 = vpop.f32.mrf.mxu0
        %v1371 = vadd.f32 0.0, %v1370
        %1372 = vmatmul.f32.gmra.mxu0 %v698
        %v1373 = vpop.f32.mrf.mxu0
        %v1374 = vadd.f32 0.0, %v1373
        %1375 = vmatmul.f32.gmra.mxu0 %v701
        %v1376 = vpop.f32.mrf.mxu0
        %v1377 = vadd.f32 0.0, %v1376
        %1378 = vmatmul.f32.gmra.mxu0 %v704
        %v1379 = vpop.f32.mrf.mxu0
        %v1380 = vadd.f32 0.0, %v1379
        %1381 = vmatmul.f32.gmra.mxu0 %v707
        %v1382 = vpop.f32.mrf.mxu0
        %v1383 = vadd.f32 0.0, %v1382
        %1384 = vmatmul.f32.gmra.mxu0 %v710
        %v1385 = vpop.f32.mrf.mxu0
        %v1386 = vadd.f32 0.0, %v1385
        %1387 = vmatmul.f32.gmra.mxu0 %v713
        %v1388 = vpop.f32.mrf.mxu0
        %v1389 = vadd.f32 0.0, %v1388
        %1390 = vmatmul.f32.gmra.mxu0 %v716
        %v1391 = vpop.f32.mrf.mxu0
        %v1392 = vadd.f32 0.0, %v1391
        %1393 = vmatmul.f32.gmra.mxu0 %v719
        %v1394 = vpop.f32.mrf.mxu0
        %v1395 = vadd.f32 0.0, %v1394
        %1396 = vmatmul.f32.gmra.mxu0 %v722
        %v1397 = vpop.f32.mrf.mxu0
        %v1398 = vadd.f32 0.0, %v1397
        %1399 = vmatmul.f32.gmra.mxu0 %v725
        %v1400 = vpop.f32.mrf.mxu0
        %v1401 = vadd.f32 0.0, %v1400
        %1402 = vmatmul.f32.gmra.mxu0 %v728
        %v1403 = vpop.f32.mrf.mxu0
        %v1404 = vadd.f32 0.0, %v1403
        %1405 = vmatmul.f32.gmra.mxu0 %v731
        %v1406 = vpop.f32.mrf.mxu0
        %v1407 = vadd.f32 0.0, %v1406
        %1408 = vmatmul.f32.gmra.mxu0 %v734
        %v1409 = vpop.f32.mrf.mxu0
        %v1410 = vadd.f32 0.0, %v1409
        %1411 = vmatmul.f32.gmra.mxu0 %v1170
        %v1412 = vpop.f32.mrf.mxu0
        %v1413 = vadd.f32 0.0, %v1412
        %1414 = vdwg.mxu0
        %v1415 = vadd.f32 %v1073, %v1332
        %v1416 = vadd.f32 %v1076, %v1335
        %v1417 = vadd.f32 %v1079, %v1338
        %v1418 = vadd.f32 %v1082, %v1341
        %v1419 = vadd.f32 %v1085, %v1344
        %v1420 = vadd.f32 %v1088, %v1347
        %v1421 = vadd.f32 %v1091, %v1350
        %v1422 = vadd.f32 %v1094, %v1353
        %v1423 = vadd.f32 %v1097, %v1356
        %v1424 = vadd.f32 %v1100, %v1359
        %v1425 = vadd.f32 %v1103, %v1362
        %v1426 = vadd.f32 %v1106, %v1365
        %v1427 = vadd.f32 %v1109, %v1368
        %v1428 = vadd.f32 %v1112, %v1371
        %v1429 = vadd.f32 %v1115, %v1374
        %v1430 = vadd.f32 %v1118, %v1377
        %v1431 = vadd.f32 %v1121, %v1380
        %v1432 = vadd.f32 %v1124, %v1383
        %v1433 = vadd.f32 %v1127, %v1386
        %v1434 = vadd.f32 %v1130, %v1389
        %v1435 = vadd.f32 %v1133, %v1392
        %v1436 = vadd.f32 %v1136, %v1395
        %v1437 = vadd.f32 %v1139, %v1398
        %v1438 = vadd.f32 %v1142, %v1401
        %v1439 = vadd.f32 %v1145, %v1404
        %v1440 = vadd.f32 %v1148, %v1407
        %v1441 = vadd.f32 %v1151, %v1410
        %v1442 = vadd.f32 %v1154, %v1413
        %s1443 = scalar_lea.vmem %s1, 288
        %v1444 = vld [vmem:[%s1443] sm:$0xff]
        %v1445 = vld [vmem:[%s1443 + $0x8] sm:$0xff]
        %v1446 = vld [vmem:[%s1443 + $0x10] sm:$0xff]
        %v1447 = vld [vmem:[%s1443 + $0x18] sm:$0xff]
        %v1448 = vld [vmem:[%s1443 + $0x20] sm:$0xff]
        %v1449 = vld [vmem:[%s1443 + $0x28] sm:$0xff]
        %v1450 = vld [vmem:[%s1443 + $0x30] sm:$0xff]
        %v1451 = vld [vmem:[%s1443 + $0x38] sm:$0xff]
        %v1452 = vld [vmem:[%s1443 + $0x40] sm:$0xff]
        %v1453 = vld [vmem:[%s1443 + $0x48] sm:$0xff]
        %v1454 = vld [vmem:[%s1443 + $0x50] sm:$0xff]
        %v1455 = vld [vmem:[%s1443 + $0x58] sm:$0xff]
        %v1457 = vsel %vm651, %v612, 0
        %1459 = vmatpush.msra.mxu0 0.0
        %1460 = vmatpush.msra.mxu0 0.0
        %1461 = vmatpush.msra.mxu0 0.0
        %1462 = vmatpush.msra.mxu0 0.0
        %1463 = vmatpush.msra.mxu0 %v1455
        %1464 = vmatpush.msra.mxu0 %v1454
        %1465 = vmatpush.msra.mxu0 %v1453
        %1466 = vmatpush.msra.mxu0 %v1452
        %1467 = vmatpush.msra.mxu0 %v1451
        %1468 = vmatpush.msra.mxu0 %v1450
        %1469 = vmatpush.msra.mxu0 %v1449
        %1470 = vmatpush.msra.mxu0 %v1448
        %1471 = vmatpush.msra.mxu0 %v1447
        %1472 = vmatpush.msra.mxu0 %v1446
        %1473 = vmatpush.msra.mxu0 %v1445
        %1474 = vmatpush.msra.mxu0 %v1444
        %1475 = vmatmul.f32.gmra.mxu0 %v659
        %v1476 = vpop.f32.mrf.mxu0
        %v1477 = vadd.f32 0.0, %v1476
        %1478 = vmatmul.f32.gmra.mxu0 %v662
        %v1479 = vpop.f32.mrf.mxu0
        %v1480 = vadd.f32 0.0, %v1479
        %1481 = vmatmul.f32.gmra.mxu0 %v665
        %v1482 = vpop.f32.mrf.mxu0
        %v1483 = vadd.f32 0.0, %v1482
        %1484 = vmatmul.f32.gmra.mxu0 %v668
        %v1485 = vpop.f32.mrf.mxu0
        %v1486 = vadd.f32 0.0, %v1485
        %1487 = vmatmul.f32.gmra.mxu0 %v671
        %v1488 = vpop.f32.mrf.mxu0
        %v1489 = vadd.f32 0.0, %v1488
        %1490 = vmatmul.f32.gmra.mxu0 %v674
        %v1491 = vpop.f32.mrf.mxu0
        %v1492 = vadd.f32 0.0, %v1491
        %1493 = vmatmul.f32.gmra.mxu0 %v677
        %v1494 = vpop.f32.mrf.mxu0
        %v1495 = vadd.f32 0.0, %v1494
        %1496 = vmatmul.f32.gmra.mxu0 %v680
        %v1497 = vpop.f32.mrf.mxu0
        %v1498 = vadd.f32 0.0, %v1497
        %1499 = vmatmul.f32.gmra.mxu0 %v683
        %v1500 = vpop.f32.mrf.mxu0
        %v1501 = vadd.f32 0.0, %v1500
        %1502 = vmatmul.f32.gmra.mxu0 %v686
        %v1503 = vpop.f32.mrf.mxu0
        %v1504 = vadd.f32 0.0, %v1503
        %1505 = vmatmul.f32.gmra.mxu0 %v689
        %v1506 = vpop.f32.mrf.mxu0
        %v1507 = vadd.f32 0.0, %v1506
        %1508 = vmatmul.f32.gmra.mxu0 %v692
        %v1509 = vpop.f32.mrf.mxu0
        %v1510 = vadd.f32 0.0, %v1509
        %1511 = vmatmul.f32.gmra.mxu0 %v695
        %v1512 = vpop.f32.mrf.mxu0
        %v1513 = vadd.f32 0.0, %v1512
        %1514 = vmatmul.f32.gmra.mxu0 %v698
        %v1515 = vpop.f32.mrf.mxu0
        %v1516 = vadd.f32 0.0, %v1515
        %1517 = vmatmul.f32.gmra.mxu0 %v701
        %v1518 = vpop.f32.mrf.mxu0
        %v1519 = vadd.f32 0.0, %v1518
        %1520 = vmatmul.f32.gmra.mxu0 %v704
        %v1521 = vpop.f32.mrf.mxu0
        %v1522 = vadd.f32 0.0, %v1521
        %1523 = vmatmul.f32.gmra.mxu0 %v707
        %v1524 = vpop.f32.mrf.mxu0
        %v1525 = vadd.f32 0.0, %v1524
        %1526 = vmatmul.f32.gmra.mxu0 %v710
        %v1527 = vpop.f32.mrf.mxu0
        %v1528 = vadd.f32 0.0, %v1527
        %1529 = vmatmul.f32.gmra.mxu0 %v713
        %v1530 = vpop.f32.mrf.mxu0
        %v1531 = vadd.f32 0.0, %v1530
        %1532 = vmatmul.f32.gmra.mxu0 %v716
        %v1533 = vpop.f32.mrf.mxu0
        %v1534 = vadd.f32 0.0, %v1533
        %1535 = vmatmul.f32.gmra.mxu0 %v719
        %v1536 = vpop.f32.mrf.mxu0
        %v1537 = vadd.f32 0.0, %v1536
        %1538 = vmatmul.f32.gmra.mxu0 %v722
        %v1539 = vpop.f32.mrf.mxu0
        %v1540 = vadd.f32 0.0, %v1539
        %1541 = vmatmul.f32.gmra.mxu0 %v725
        %v1542 = vpop.f32.mrf.mxu0
        %v1543 = vadd.f32 0.0, %v1542
        %1544 = vmatmul.f32.gmra.mxu0 %v728
        %v1545 = vpop.f32.mrf.mxu0
        %v1546 = vadd.f32 0.0, %v1545
        %1547 = vmatmul.f32.gmra.mxu0 %v731
        %v1548 = vpop.f32.mrf.mxu0
        %v1549 = vadd.f32 0.0, %v1548
        %1550 = vmatmul.f32.gmra.mxu0 %v734
        %v1551 = vpop.f32.mrf.mxu0
        %v1552 = vadd.f32 0.0, %v1551
        %1553 = vmatmul.f32.gmra.mxu0 %v1170
        %v1554 = vpop.f32.mrf.mxu0
        %v1555 = vadd.f32 0.0, %v1554
        %1556 = vmatmul.f32.gmra.mxu0 %v1457
        %v1557 = vpop.f32.mrf.mxu0
        %v1558 = vadd.f32 0.0, %v1557
        %1559 = vdwg.mxu0
        %v1560 = vadd.f32 %v1273, %v1477
        %v1561 = vadd.f32 %v1274, %v1480
        %v1562 = vadd.f32 %v1275, %v1483
        %v1563 = vadd.f32 %v1276, %v1486
        %v1564 = vadd.f32 %v1277, %v1489
        %v1565 = vadd.f32 %v1278, %v1492
        %v1566 = vadd.f32 %v1279, %v1495
        %v1567 = vadd.f32 %v1280, %v1498
        %v1568 = vadd.f32 %v1281, %v1501
        %v1569 = vadd.f32 %v1282, %v1504
        %v1570 = vadd.f32 %v1283, %v1507
        %v1571 = vadd.f32 %v1284, %v1510
        %v1572 = vadd.f32 %v1285, %v1513
        %v1573 = vadd.f32 %v1286, %v1516
        %v1574 = vadd.f32 %v1287, %v1519
        %v1575 = vadd.f32 %v1288, %v1522
        %v1576 = vadd.f32 %v1289, %v1525
        %v1577 = vadd.f32 %v1290, %v1528
        %v1578 = vadd.f32 %v1291, %v1531
        %v1579 = vadd.f32 %v1292, %v1534
        %v1580 = vadd.f32 %v1293, %v1537
        %v1581 = vadd.f32 %v1294, %v1540
        %v1582 = vadd.f32 %v1295, %v1543
        %v1583 = vadd.f32 %v1296, %v1546
        %v1584 = vadd.f32 %v1297, %v1549
        %v1585 = vadd.f32 %v1298, %v1552
        %v1586 = vadd.f32 %v1299, %v1555
        %v1587 = vadd.f32 %v1300, %v1558
        %s1588 = scalar_lea.vmem %s2, 288
        %v1589 = vld [vmem:[%s1588] sm:$0xff]
        %v1590 = vld [vmem:[%s1588 + $0x8] sm:$0xff]
        %v1591 = vld [vmem:[%s1588 + $0x10] sm:$0xff]
        %v1592 = vld [vmem:[%s1588 + $0x18] sm:$0xff]
        %v1593 = vld [vmem:[%s1588 + $0x20] sm:$0xff]
        %v1594 = vld [vmem:[%s1588 + $0x28] sm:$0xff]
        %v1595 = vld [vmem:[%s1588 + $0x30] sm:$0xff]
        %v1596 = vld [vmem:[%s1588 + $0x38] sm:$0xff]
        %v1597 = vld [vmem:[%s1588 + $0x40] sm:$0xff]
        %v1598 = vld [vmem:[%s1588 + $0x48] sm:$0xff]
        %v1599 = vld [vmem:[%s1588 + $0x50] sm:$0xff]
        %v1600 = vld [vmem:[%s1588 + $0x58] sm:$0xff]
        %1601 = vmatpush.msra.mxu0 0.0
        %1602 = vmatpush.msra.mxu0 0.0
        %1603 = vmatpush.msra.mxu0 0.0
        %1604 = vmatpush.msra.mxu0 0.0
        %1605 = vmatpush.msra.mxu0 %v1600
        %1606 = vmatpush.msra.mxu0 %v1599
        %1607 = vmatpush.msra.mxu0 %v1598
        %1608 = vmatpush.msra.mxu0 %v1597
        %1609 = vmatpush.msra.mxu0 %v1596
        %1610 = vmatpush.msra.mxu0 %v1595
        %1611 = vmatpush.msra.mxu0 %v1594
        %1612 = vmatpush.msra.mxu0 %v1593
        %1613 = vmatpush.msra.mxu0 %v1592
        %1614 = vmatpush.msra.mxu0 %v1591
        %1615 = vmatpush.msra.mxu0 %v1590
        %1616 = vmatpush.msra.mxu0 %v1589
        %1617 = vmatmul.f32.gmra.mxu0 %v659
        %v1618 = vpop.f32.mrf.mxu0
        %v1619 = vadd.f32 0.0, %v1618
        %1620 = vmatmul.f32.gmra.mxu0 %v662
        %v1621 = vpop.f32.mrf.mxu0
        %v1622 = vadd.f32 0.0, %v1621
        %1623 = vmatmul.f32.gmra.mxu0 %v665
        %v1624 = vpop.f32.mrf.mxu0
        %v1625 = vadd.f32 0.0, %v1624
        %1626 = vmatmul.f32.gmra.mxu0 %v668
        %v1627 = vpop.f32.mrf.mxu0
        %v1628 = vadd.f32 0.0, %v1627
        %1629 = vmatmul.f32.gmra.mxu0 %v671
        %v1630 = vpop.f32.mrf.mxu0
        %v1631 = vadd.f32 0.0, %v1630
        %1632 = vmatmul.f32.gmra.mxu0 %v674
        %v1633 = vpop.f32.mrf.mxu0
        %v1634 = vadd.f32 0.0, %v1633
        %1635 = vmatmul.f32.gmra.mxu0 %v677
        %v1636 = vpop.f32.mrf.mxu0
        %v1637 = vadd.f32 0.0, %v1636
        %1638 = vmatmul.f32.gmra.mxu0 %v680
        %v1639 = vpop.f32.mrf.mxu0
        %v1640 = vadd.f32 0.0, %v1639
        %1641 = vmatmul.f32.gmra.mxu0 %v683
        %v1642 = vpop.f32.mrf.mxu0
        %v1643 = vadd.f32 0.0, %v1642
        %1644 = vmatmul.f32.gmra.mxu0 %v686
        %v1645 = vpop.f32.mrf.mxu0
        %v1646 = vadd.f32 0.0, %v1645
        %1647 = vmatmul.f32.gmra.mxu0 %v689
        %v1648 = vpop.f32.mrf.mxu0
        %v1649 = vadd.f32 0.0, %v1648
        %1650 = vmatmul.f32.gmra.mxu0 %v692
        %v1651 = vpop.f32.mrf.mxu0
        %v1652 = vadd.f32 0.0, %v1651
        %1653 = vmatmul.f32.gmra.mxu0 %v695
        %v1654 = vpop.f32.mrf.mxu0
        %v1655 = vadd.f32 0.0, %v1654
        %1656 = vmatmul.f32.gmra.mxu0 %v698
        %v1657 = vpop.f32.mrf.mxu0
        %v1658 = vadd.f32 0.0, %v1657
        %1659 = vmatmul.f32.gmra.mxu0 %v701
        %v1660 = vpop.f32.mrf.mxu0
        %v1661 = vadd.f32 0.0, %v1660
        %1662 = vmatmul.f32.gmra.mxu0 %v704
        %v1663 = vpop.f32.mrf.mxu0
        %v1664 = vadd.f32 0.0, %v1663
        %1665 = vmatmul.f32.gmra.mxu0 %v707
        %v1666 = vpop.f32.mrf.mxu0
        %v1667 = vadd.f32 0.0, %v1666
        %1668 = vmatmul.f32.gmra.mxu0 %v710
        %v1669 = vpop.f32.mrf.mxu0
        %v1670 = vadd.f32 0.0, %v1669
        %1671 = vmatmul.f32.gmra.mxu0 %v713
        %v1672 = vpop.f32.mrf.mxu0
        %v1673 = vadd.f32 0.0, %v1672
        %1674 = vmatmul.f32.gmra.mxu0 %v716
        %v1675 = vpop.f32.mrf.mxu0
        %v1676 = vadd.f32 0.0, %v1675
        %1677 = vmatmul.f32.gmra.mxu0 %v719
        %v1678 = vpop.f32.mrf.mxu0
        %v1679 = vadd.f32 0.0, %v1678
        %1680 = vmatmul.f32.gmra.mxu0 %v722
        %v1681 = vpop.f32.mrf.mxu0
        %v1682 = vadd.f32 0.0, %v1681
        %1683 = vmatmul.f32.gmra.mxu0 %v725
        %v1684 = vpop.f32.mrf.mxu0
        %v1685 = vadd.f32 0.0, %v1684
        %1686 = vmatmul.f32.gmra.mxu0 %v728
        %v1687 = vpop.f32.mrf.mxu0
        %v1688 = vadd.f32 0.0, %v1687
        %1689 = vmatmul.f32.gmra.mxu0 %v731
        %v1690 = vpop.f32.mrf.mxu0
        %v1691 = vadd.f32 0.0, %v1690
        %1692 = vmatmul.f32.gmra.mxu0 %v734
        %v1693 = vpop.f32.mrf.mxu0
        %v1694 = vadd.f32 0.0, %v1693
        %1695 = vmatmul.f32.gmra.mxu0 %v1170
        %v1696 = vpop.f32.mrf.mxu0
        %v1697 = vadd.f32 0.0, %v1696
        %1698 = vmatmul.f32.gmra.mxu0 %v1457
        %v1699 = vpop.f32.mrf.mxu0
        %v1700 = vadd.f32 0.0, %v1699
        %1701 = vdwg.mxu0
        %v1702 = vadd.f32 %v1415, %v1619
        %v1703 = vadd.f32 %v1416, %v1622
        %v1704 = vadd.f32 %v1417, %v1625
        %v1705 = vadd.f32 %v1418, %v1628
        %v1706 = vadd.f32 %v1419, %v1631
        %v1707 = vadd.f32 %v1420, %v1634
        %v1708 = vadd.f32 %v1421, %v1637
        %v1709 = vadd.f32 %v1422, %v1640
        %v1710 = vadd.f32 %v1423, %v1643
        %v1711 = vadd.f32 %v1424, %v1646
        %v1712 = vadd.f32 %v1425, %v1649
        %v1713 = vadd.f32 %v1426, %v1652
        %v1714 = vadd.f32 %v1427, %v1655
        %v1715 = vadd.f32 %v1428, %v1658
        %v1716 = vadd.f32 %v1429, %v1661
        %v1717 = vadd.f32 %v1430, %v1664
        %v1718 = vadd.f32 %v1431, %v1667
        %v1719 = vadd.f32 %v1432, %v1670
        %v1720 = vadd.f32 %v1433, %v1673
        %v1721 = vadd.f32 %v1434, %v1676
        %v1722 = vadd.f32 %v1435, %v1679
        %v1723 = vadd.f32 %v1436, %v1682
        %v1724 = vadd.f32 %v1437, %v1685
        %v1725 = vadd.f32 %v1438, %v1688
        %v1726 = vadd.f32 %v1439, %v1691
        %v1727 = vadd.f32 %v1440, %v1694
        %v1728 = vadd.f32 %v1441, %v1697
        %v1729 = vadd.f32 %v1442, %v1700
        %s1730 = scalar_lea.vmem %s1, 384
        %v1731 = vld [vmem:[%s1730] sm:$0xff]
        %v1732 = vld [vmem:[%s1730 + $0x8] sm:$0xff]
        %v1733 = vld [vmem:[%s1730 + $0x10] sm:$0xff]
        %v1734 = vld [vmem:[%s1730 + $0x18] sm:$0xff]
        %v1735 = vld [vmem:[%s1730 + $0x20] sm:$0xff]
        %v1736 = vld [vmem:[%s1730 + $0x28] sm:$0xff]
        %v1737 = vld [vmem:[%s1730 + $0x30] sm:$0xff]
        %v1738 = vld [vmem:[%s1730 + $0x38] sm:$0xff]
        %v1739 = vld [vmem:[%s1730 + $0x40] sm:$0xff]
        %v1740 = vld [vmem:[%s1730 + $0x48] sm:$0xff]
        %v1741 = vld [vmem:[%s1730 + $0x50] sm:$0xff]
        %v1742 = vld [vmem:[%s1730 + $0x58] sm:$0xff]
        %v1744 = vsel %vm651, %v613, 0
        %1746 = vmatpush.msra.mxu0 0.0
        %1747 = vmatpush.msra.mxu0 0.0
        %1748 = vmatpush.msra.mxu0 0.0
        %1749 = vmatpush.msra.mxu0 0.0
        %1750 = vmatpush.msra.mxu0 %v1742
        %1751 = vmatpush.msra.mxu0 %v1741
        %1752 = vmatpush.msra.mxu0 %v1740
        %1753 = vmatpush.msra.mxu0 %v1739
        %1754 = vmatpush.msra.mxu0 %v1738
        %1755 = vmatpush.msra.mxu0 %v1737
        %1756 = vmatpush.msra.mxu0 %v1736
        %1757 = vmatpush.msra.mxu0 %v1735
        %1758 = vmatpush.msra.mxu0 %v1734
        %1759 = vmatpush.msra.mxu0 %v1733
        %1760 = vmatpush.msra.mxu0 %v1732
        %1761 = vmatpush.msra.mxu0 %v1731
        %1762 = vmatmul.f32.gmra.mxu0 %v662
        %v1763 = vpop.f32.mrf.mxu0
        %v1764 = vadd.f32 0.0, %v1763
        %1765 = vmatmul.f32.gmra.mxu0 %v665
        %v1766 = vpop.f32.mrf.mxu0
        %v1767 = vadd.f32 0.0, %v1766
        %1768 = vmatmul.f32.gmra.mxu0 %v668
        %v1769 = vpop.f32.mrf.mxu0
        %v1770 = vadd.f32 0.0, %v1769
        %1771 = vmatmul.f32.gmra.mxu0 %v671
        %v1772 = vpop.f32.mrf.mxu0
        %v1773 = vadd.f32 0.0, %v1772
        %1774 = vmatmul.f32.gmra.mxu0 %v674
        %v1775 = vpop.f32.mrf.mxu0
        %v1776 = vadd.f32 0.0, %v1775
        %1777 = vmatmul.f32.gmra.mxu0 %v677
        %v1778 = vpop.f32.mrf.mxu0
        %v1779 = vadd.f32 0.0, %v1778
        %1780 = vmatmul.f32.gmra.mxu0 %v680
        %v1781 = vpop.f32.mrf.mxu0
        %v1782 = vadd.f32 0.0, %v1781
        %1783 = vmatmul.f32.gmra.mxu0 %v683
        %v1784 = vpop.f32.mrf.mxu0
        %v1785 = vadd.f32 0.0, %v1784
        %1786 = vmatmul.f32.gmra.mxu0 %v686
        %v1787 = vpop.f32.mrf.mxu0
        %v1788 = vadd.f32 0.0, %v1787
        %1789 = vmatmul.f32.gmra.mxu0 %v689
        %v1790 = vpop.f32.mrf.mxu0
        %v1791 = vadd.f32 0.0, %v1790
        %1792 = vmatmul.f32.gmra.mxu0 %v692
        %v1793 = vpop.f32.mrf.mxu0
        %v1794 = vadd.f32 0.0, %v1793
        %1795 = vmatmul.f32.gmra.mxu0 %v695
        %v1796 = vpop.f32.mrf.mxu0
        %v1797 = vadd.f32 0.0, %v1796
        %1798 = vmatmul.f32.gmra.mxu0 %v698
        %v1799 = vpop.f32.mrf.mxu0
        %v1800 = vadd.f32 0.0, %v1799
        %1801 = vmatmul.f32.gmra.mxu0 %v701
        %v1802 = vpop.f32.mrf.mxu0
        %v1803 = vadd.f32 0.0, %v1802
        %1804 = vmatmul.f32.gmra.mxu0 %v704
        %v1805 = vpop.f32.mrf.mxu0
        %v1806 = vadd.f32 0.0, %v1805
        %1807 = vmatmul.f32.gmra.mxu0 %v707
        %v1808 = vpop.f32.mrf.mxu0
        %v1809 = vadd.f32 0.0, %v1808
        %1810 = vmatmul.f32.gmra.mxu0 %v710
        %v1811 = vpop.f32.mrf.mxu0
        %v1812 = vadd.f32 0.0, %v1811
        %1813 = vmatmul.f32.gmra.mxu0 %v713
        %v1814 = vpop.f32.mrf.mxu0
        %v1815 = vadd.f32 0.0, %v1814
        %1816 = vmatmul.f32.gmra.mxu0 %v716
        %v1817 = vpop.f32.mrf.mxu0
        %v1818 = vadd.f32 0.0, %v1817
        %1819 = vmatmul.f32.gmra.mxu0 %v719
        %v1820 = vpop.f32.mrf.mxu0
        %v1821 = vadd.f32 0.0, %v1820
        %1822 = vmatmul.f32.gmra.mxu0 %v722
        %v1823 = vpop.f32.mrf.mxu0
        %v1824 = vadd.f32 0.0, %v1823
        %1825 = vmatmul.f32.gmra.mxu0 %v725
        %v1826 = vpop.f32.mrf.mxu0
        %v1827 = vadd.f32 0.0, %v1826
        %1828 = vmatmul.f32.gmra.mxu0 %v728
        %v1829 = vpop.f32.mrf.mxu0
        %v1830 = vadd.f32 0.0, %v1829
        %1831 = vmatmul.f32.gmra.mxu0 %v731
        %v1832 = vpop.f32.mrf.mxu0
        %v1833 = vadd.f32 0.0, %v1832
        %1834 = vmatmul.f32.gmra.mxu0 %v734
        %v1835 = vpop.f32.mrf.mxu0
        %v1836 = vadd.f32 0.0, %v1835
        %1837 = vmatmul.f32.gmra.mxu0 %v1170
        %v1838 = vpop.f32.mrf.mxu0
        %v1839 = vadd.f32 0.0, %v1838
        %1840 = vmatmul.f32.gmra.mxu0 %v1457
        %v1841 = vpop.f32.mrf.mxu0
        %v1842 = vadd.f32 0.0, %v1841
        %1843 = vmatmul.f32.gmra.mxu0 %v1744
        %v1844 = vpop.f32.mrf.mxu0
        %v1845 = vadd.f32 0.0, %v1844
        %1846 = vdwg.mxu0
        %v1847 = vadd.f32 %v1560, %v1764
        %v1848 = vadd.f32 %v1561, %v1767
        %v1849 = vadd.f32 %v1562, %v1770
        %v1850 = vadd.f32 %v1563, %v1773
        %v1851 = vadd.f32 %v1564, %v1776
        %v1852 = vadd.f32 %v1565, %v1779
        %v1853 = vadd.f32 %v1566, %v1782
        %v1854 = vadd.f32 %v1567, %v1785
        %v1855 = vadd.f32 %v1568, %v1788
        %v1856 = vadd.f32 %v1569, %v1791
        %v1857 = vadd.f32 %v1570, %v1794
        %v1858 = vadd.f32 %v1571, %v1797
        %v1859 = vadd.f32 %v1572, %v1800
        %v1860 = vadd.f32 %v1573, %v1803
        %v1861 = vadd.f32 %v1574, %v1806
        %v1862 = vadd.f32 %v1575, %v1809
        %v1863 = vadd.f32 %v1576, %v1812
        %v1864 = vadd.f32 %v1577, %v1815
        %v1865 = vadd.f32 %v1578, %v1818
        %v1866 = vadd.f32 %v1579, %v1821
        %v1867 = vadd.f32 %v1580, %v1824
        %v1868 = vadd.f32 %v1581, %v1827
        %v1869 = vadd.f32 %v1582, %v1830
        %v1870 = vadd.f32 %v1583, %v1833
        %v1871 = vadd.f32 %v1584, %v1836
        %v1872 = vadd.f32 %v1585, %v1839
        %v1873 = vadd.f32 %v1586, %v1842
        %v1874 = vadd.f32 %v1587, %v1845
        %s1875 = scalar_lea.vmem %s2, 384
        %v1876 = vld [vmem:[%s1875] sm:$0xff]
        %v1877 = vld [vmem:[%s1875 + $0x8] sm:$0xff]
        %v1878 = vld [vmem:[%s1875 + $0x10] sm:$0xff]
        %v1879 = vld [vmem:[%s1875 + $0x18] sm:$0xff]
        %v1880 = vld [vmem:[%s1875 + $0x20] sm:$0xff]
        %v1881 = vld [vmem:[%s1875 + $0x28] sm:$0xff]
        %v1882 = vld [vmem:[%s1875 + $0x30] sm:$0xff]
        %v1883 = vld [vmem:[%s1875 + $0x38] sm:$0xff]
        %v1884 = vld [vmem:[%s1875 + $0x40] sm:$0xff]
        %v1885 = vld [vmem:[%s1875 + $0x48] sm:$0xff]
        %v1886 = vld [vmem:[%s1875 + $0x50] sm:$0xff]
        %v1887 = vld [vmem:[%s1875 + $0x58] sm:$0xff]
        %1888 = vmatpush.msra.mxu0 0.0
        %1889 = vmatpush.msra.mxu0 0.0
        %1890 = vmatpush.msra.mxu0 0.0
        %1891 = vmatpush.msra.mxu0 0.0
        %1892 = vmatpush.msra.mxu0 %v1887
        %1893 = vmatpush.msra.mxu0 %v1886
        %1894 = vmatpush.msra.mxu0 %v1885
        %1895 = vmatpush.msra.mxu0 %v1884
        %1896 = vmatpush.msra.mxu0 %v1883
        %1897 = vmatpush.msra.mxu0 %v1882
        %1898 = vmatpush.msra.mxu0 %v1881
        %1899 = vmatpush.msra.mxu0 %v1880
        %1900 = vmatpush.msra.mxu0 %v1879
        %1901 = vmatpush.msra.mxu0 %v1878
        %1902 = vmatpush.msra.mxu0 %v1877
        %1903 = vmatpush.msra.mxu0 %v1876
        %1904 = vmatmul.f32.gmra.mxu0 %v662
        %v1905 = vpop.f32.mrf.mxu0
        %v1906 = vadd.f32 0.0, %v1905
        %1907 = vmatmul.f32.gmra.mxu0 %v665
        %v1908 = vpop.f32.mrf.mxu0
        %v1909 = vadd.f32 0.0, %v1908
        %1910 = vmatmul.f32.gmra.mxu0 %v668
        %v1911 = vpop.f32.mrf.mxu0
        %v1912 = vadd.f32 0.0, %v1911
        %1913 = vmatmul.f32.gmra.mxu0 %v671
        %v1914 = vpop.f32.mrf.mxu0
        %v1915 = vadd.f32 0.0, %v1914
        %1916 = vmatmul.f32.gmra.mxu0 %v674
        %v1917 = vpop.f32.mrf.mxu0
        %v1918 = vadd.f32 0.0, %v1917
        %1919 = vmatmul.f32.gmra.mxu0 %v677
        %v1920 = vpop.f32.mrf.mxu0
        %v1921 = vadd.f32 0.0, %v1920
        %1922 = vmatmul.f32.gmra.mxu0 %v680
        %v1923 = vpop.f32.mrf.mxu0
        %v1924 = vadd.f32 0.0, %v1923
        %1925 = vmatmul.f32.gmra.mxu0 %v683
        %v1926 = vpop.f32.mrf.mxu0
        %v1927 = vadd.f32 0.0, %v1926
        %1928 = vmatmul.f32.gmra.mxu0 %v686
        %v1929 = vpop.f32.mrf.mxu0
        %v1930 = vadd.f32 0.0, %v1929
        %1931 = vmatmul.f32.gmra.mxu0 %v689
        %v1932 = vpop.f32.mrf.mxu0
        %v1933 = vadd.f32 0.0, %v1932
        %1934 = vmatmul.f32.gmra.mxu0 %v692
        %v1935 = vpop.f32.mrf.mxu0
        %v1936 = vadd.f32 0.0, %v1935
        %1937 = vmatmul.f32.gmra.mxu0 %v695
        %v1938 = vpop.f32.mrf.mxu0
        %v1939 = vadd.f32 0.0, %v1938
        %1940 = vmatmul.f32.gmra.mxu0 %v698
        %v1941 = vpop.f32.mrf.mxu0
        %v1942 = vadd.f32 0.0, %v1941
        %1943 = vmatmul.f32.gmra.mxu0 %v701
        %v1944 = vpop.f32.mrf.mxu0
        %v1945 = vadd.f32 0.0, %v1944
        %1946 = vmatmul.f32.gmra.mxu0 %v704
        %v1947 = vpop.f32.mrf.mxu0
        %v1948 = vadd.f32 0.0, %v1947
        %1949 = vmatmul.f32.gmra.mxu0 %v707
        %v1950 = vpop.f32.mrf.mxu0
        %v1951 = vadd.f32 0.0, %v1950
        %1952 = vmatmul.f32.gmra.mxu0 %v710
        %v1953 = vpop.f32.mrf.mxu0
        %v1954 = vadd.f32 0.0, %v1953
        %1955 = vmatmul.f32.gmra.mxu0 %v713
        %v1956 = vpop.f32.mrf.mxu0
        %v1957 = vadd.f32 0.0, %v1956
        %1958 = vmatmul.f32.gmra.mxu0 %v716
        %v1959 = vpop.f32.mrf.mxu0
        %v1960 = vadd.f32 0.0, %v1959
        %1961 = vmatmul.f32.gmra.mxu0 %v719
        %v1962 = vpop.f32.mrf.mxu0
        %v1963 = vadd.f32 0.0, %v1962
        %1964 = vmatmul.f32.gmra.mxu0 %v722
        %v1965 = vpop.f32.mrf.mxu0
        %v1966 = vadd.f32 0.0, %v1965
        %1967 = vmatmul.f32.gmra.mxu0 %v725
        %v1968 = vpop.f32.mrf.mxu0
        %v1969 = vadd.f32 0.0, %v1968
        %1970 = vmatmul.f32.gmra.mxu0 %v728
        %v1971 = vpop.f32.mrf.mxu0
        %v1972 = vadd.f32 0.0, %v1971
        %1973 = vmatmul.f32.gmra.mxu0 %v731
        %v1974 = vpop.f32.mrf.mxu0
        %v1975 = vadd.f32 0.0, %v1974
        %1976 = vmatmul.f32.gmra.mxu0 %v734
        %v1977 = vpop.f32.mrf.mxu0
        %v1978 = vadd.f32 0.0, %v1977
        %1979 = vmatmul.f32.gmra.mxu0 %v1170
        %v1980 = vpop.f32.mrf.mxu0
        %v1981 = vadd.f32 0.0, %v1980
        %1982 = vmatmul.f32.gmra.mxu0 %v1457
        %v1983 = vpop.f32.mrf.mxu0
        %v1984 = vadd.f32 0.0, %v1983
        %1985 = vmatmul.f32.gmra.mxu0 %v1744
        %v1986 = vpop.f32.mrf.mxu0
        %v1987 = vadd.f32 0.0, %v1986
        %1988 = vdwg.mxu0
        %v1989 = vadd.f32 %v1702, %v1906
        %v1990 = vadd.f32 %v1703, %v1909
        %v1991 = vadd.f32 %v1704, %v1912
        %v1992 = vadd.f32 %v1705, %v1915
        %v1993 = vadd.f32 %v1706, %v1918
        %v1994 = vadd.f32 %v1707, %v1921
        %v1995 = vadd.f32 %v1708, %v1924
        %v1996 = vadd.f32 %v1709, %v1927
        %v1997 = vadd.f32 %v1710, %v1930
        %v1998 = vadd.f32 %v1711, %v1933
        %v1999 = vadd.f32 %v1712, %v1936
        %v2000 = vadd.f32 %v1713, %v1939
        %v2001 = vadd.f32 %v1714, %v1942
        %v2002 = vadd.f32 %v1715, %v1945
        %v2003 = vadd.f32 %v1716, %v1948
        %v2004 = vadd.f32 %v1717, %v1951
        %v2005 = vadd.f32 %v1718, %v1954
        %v2006 = vadd.f32 %v1719, %v1957
        %v2007 = vadd.f32 %v1720, %v1960
        %v2008 = vadd.f32 %v1721, %v1963
        %v2009 = vadd.f32 %v1722, %v1966
        %v2010 = vadd.f32 %v1723, %v1969
        %v2011 = vadd.f32 %v1724, %v1972
        %v2012 = vadd.f32 %v1725, %v1975
        %v2013 = vadd.f32 %v1726, %v1978
        %v2014 = vadd.f32 %v1727, %v1981
        %v2015 = vadd.f32 %v1728, %v1984
        %v2016 = vadd.f32 %v1729, %v1987
        %v2017 = vmax.f32 %v1847, %v1989
        %v2018 = vmax.f32 %v1848, %v1990
        %v2019 = vmax.f32 %v1849, %v1991
        %v2020 = vmax.f32 %v1850, %v1992
        %v2021 = vmax.f32 %v1851, %v1993
        %v2022 = vmax.f32 %v1852, %v1994
        %v2023 = vmax.f32 %v1853, %v1995
        %v2024 = vmax.f32 %v1854, %v1996
        %v2025 = vmax.f32 %v1855, %v1997
        %v2026 = vmax.f32 %v1856, %v1998
        %v2027 = vmax.f32 %v1857, %v1999
        %v2028 = vmax.f32 %v1858, %v2000
        %v2029 = vmax.f32 %v1859, %v2001
        %v2030 = vmax.f32 %v1860, %v2002
        %v2031 = vmax.f32 %v1861, %v2003
        %v2032 = vmax.f32 %v1862, %v2004
        %v2033 = vmax.f32 %v1863, %v2005
        %v2034 = vmax.f32 %v1864, %v2006
        %v2035 = vmax.f32 %v1865, %v2007
        %v2036 = vmax.f32 %v1866, %v2008
        %v2037 = vmax.f32 %v1867, %v2009
        %v2038 = vmax.f32 %v1868, %v2010
        %v2039 = vmax.f32 %v1869, %v2011
        %v2040 = vmax.f32 %v1870, %v2012
        %v2041 = vmax.f32 %v1871, %v2013
        %v2042 = vmax.f32 %v1872, %v2014
        %v2043 = vmax.f32 %v1873, %v2015
        %v2044 = vmax.f32 %v1874, %v2016
        %v2045 = vmax.f32 %v2017, %v2018
        %v2046 = vmax.f32 %v2019, %v2020
        %v2047 = vmax.f32 %v2021, %v2022
        %v2048 = vmax.f32 %v2023, %v2024
        %v2049 = vmax.f32 %v2025, %v2026
        %v2050 = vmax.f32 %v2027, %v2028
        %v2051 = vmax.f32 %v2029, %v2030
        %v2052 = vmax.f32 %v2031, %v2032
        %v2053 = vmax.f32 %v2033, %v2034
        %v2054 = vmax.f32 %v2035, %v2036
        %v2055 = vmax.f32 %v2037, %v2038
        %v2056 = vmax.f32 %v2039, %v2040
        %v2057 = vmax.f32 %v2041, %v2042
        %v2058 = vmax.f32 %v2043, %v2044
        %v2059 = vld [vmem:[%s7] sm:$0x1]
        %v2061 = vperm.slane %v2059, 0
        %v2063 = vadd.f32 %v2045, %v2061
        %v2064 = vadd.f32 %v2046, %v2061
        %v2065 = vadd.f32 %v2047, %v2061
        %v2066 = vadd.f32 %v2048, %v2061
        %v2067 = vadd.f32 %v2049, %v2061
        %v2068 = vadd.f32 %v2050, %v2061
        %v2069 = vadd.f32 %v2051, %v2061
        %v2070 = vadd.f32 %v2052, %v2061
        %v2071 = vadd.f32 %v2053, %v2061
        %v2072 = vadd.f32 %v2054, %v2061
        %v2073 = vadd.f32 %v2055, %v2061
        %v2074 = vadd.f32 %v2056, %v2061
        %v2075 = vadd.f32 %v2057, %v2061
        %v2076 = vadd.f32 %v2058, %v2061
        %v2077 = vmax.f32 %v2063, 0.0
        %v2078 = vmax.f32 %v2064, 0.0
        %v2079 = vmax.f32 %v2065, 0.0
        %v2080 = vmax.f32 %v2066, 0.0
        %v2081 = vmax.f32 %v2067, 0.0
        %v2082 = vmax.f32 %v2068, 0.0
        %v2083 = vmax.f32 %v2069, 0.0
        %v2084 = vmax.f32 %v2070, 0.0
        %v2085 = vmax.f32 %v2071, 0.0
        %v2086 = vmax.f32 %v2072, 0.0
        %v2087 = vmax.f32 %v2073, 0.0
        %v2088 = vmax.f32 %v2074, 0.0
        %v2089 = vmax.f32 %v2075, 0.0
        %v2090 = vmax.f32 %v2076, 0.0
        %v2091 = vld [vmem:[%s3] sm:$0xff]
        %v2092 = vld [vmem:[%s3 + $0x8] sm:$0xff]
        %v2093 = vld [vmem:[%s3 + $0x10] sm:$0xff]
        %v2094 = vld [vmem:[%s3 + $0x18] sm:$0xff]
        %v2095 = vld [vmem:[%s3 + $0x20] sm:$0xff]
        %v2096 = vld [vmem:[%s3 + $0x28] sm:$0xff]
        %v2097 = vld [vmem:[%s3 + $0x30] sm:$0xff]
        %v2098 = vld [vmem:[%s3 + $0x38] sm:$0xff]
        %v2099 = vld [vmem:[%s3 + $0x40] sm:$0xff]
        %v2100 = vld [vmem:[%s3 + $0x48] sm:$0xff]
        %v2101 = vld [vmem:[%s3 + $0x50] sm:$0xf]
        %v2102 = vld [vmem:[%s4] sm:$0xff]
        %v2103 = vld [vmem:[%s4 + $0x8] sm:$0xff]
        %v2104 = vld [vmem:[%s4 + $0x10] sm:$0xff]
        %v2105 = vld [vmem:[%s4 + $0x18] sm:$0xff]
        %v2106 = vld [vmem:[%s4 + $0x20] sm:$0xff]
        %v2107 = vld [vmem:[%s4 + $0x28] sm:$0xff]
        %v2108 = vld [vmem:[%s4 + $0x30] sm:$0xff]
        %v2109 = vld [vmem:[%s4 + $0x38] sm:$0xff]
        %v2110 = vld [vmem:[%s4 + $0x40] sm:$0xff]
        %v2111 = vld [vmem:[%s4 + $0x48] sm:$0xff]
        %v2112 = vld [vmem:[%s4 + $0x50] sm:$0xf]
        %s2113 = scalar_lea.vmem %s3, 88
        %v2114 = vld [vmem:[%s2113] sm:$0xff]
        %v2115 = vld [vmem:[%s2113 + $0x8] sm:$0xff]
        %v2116 = vld [vmem:[%s2113 + $0x10] sm:$0xff]
        %v2117 = vld [vmem:[%s2113 + $0x18] sm:$0xff]
        %v2118 = vld [vmem:[%s2113 + $0x20] sm:$0xff]
        %v2119 = vld [vmem:[%s2113 + $0x28] sm:$0xff]
        %v2120 = vld [vmem:[%s2113 + $0x30] sm:$0xff]
        %v2121 = vld [vmem:[%s2113 + $0x38] sm:$0xff]
        %v2122 = vld [vmem:[%s2113 + $0x40] sm:$0xff]
        %v2123 = vld [vmem:[%s2113 + $0x48] sm:$0xff]
        %v2124 = vld [vmem:[%s2113 + $0x50] sm:$0xf]
        %vm2125 = vcmask 687104
        %v2127 = vsel %vm2125, %v2078, 0
        %v2130 = vsel %vm2125, %v2079, 0
        %v2133 = vsel %vm2125, %v2080, 0
        %v2136 = vsel %vm2125, %v2081, 0
        %v2139 = vsel %vm2125, %v2082, 0
        %v2142 = vsel %vm2125, %v2083, 0
        %v2145 = vsel %vm2125, %v2084, 0
        %v2148 = vsel %vm2125, %v2085, 0
        %v2151 = vsel %vm2125, %v2086, 0
        %v2154 = vsel %vm2125, %v2087, 0
        %vm2156 = vcmask 1043456
        %v2158 = vsel %vm2156, %v2124, 0
        %2160 = vmatpush.msra.mxu0 0.0
        %2161 = vmatpush.msra.mxu0 0.0
        %2162 = vmatpush.msra.mxu0 0.0
        %2163 = vmatpush.msra.mxu0 0.0
        %2164 = vmatpush.msra.mxu0 0.0
        %2165 = vmatpush.msra.mxu0 %v2158
        %2166 = vmatpush.msra.mxu0 %v2123
        %2167 = vmatpush.msra.mxu0 %v2122
        %2168 = vmatpush.msra.mxu0 %v2121
        %2169 = vmatpush.msra.mxu0 %v2120
        %2170 = vmatpush.msra.mxu0 %v2119
        %2171 = vmatpush.msra.mxu0 %v2118
        %2172 = vmatpush.msra.mxu0 %v2117
        %2173 = vmatpush.msra.mxu0 %v2116
        %2174 = vmatpush.msra.mxu0 %v2115
        %2175 = vmatpush.msra.mxu0 %v2114
        %2176 = vmatmul.f32.gmra.mxu0 %v2127
        %v2177 = vpop.f32.mrf.mxu0
        %v2178 = vadd.f32 0.0, %v2177
        %2179 = vmatmul.f32.gmra.mxu0 %v2130
        %v2180 = vpop.f32.mrf.mxu0
        %v2181 = vadd.f32 0.0, %v2180
        %2182 = vmatmul.f32.gmra.mxu0 %v2133
        %v2183 = vpop.f32.mrf.mxu0
        %v2184 = vadd.f32 0.0, %v2183
        %2185 = vmatmul.f32.gmra.mxu0 %v2136
        %v2186 = vpop.f32.mrf.mxu0
        %v2187 = vadd.f32 0.0, %v2186
        %2188 = vmatmul.f32.gmra.mxu0 %v2139
        %v2189 = vpop.f32.mrf.mxu0
        %v2190 = vadd.f32 0.0, %v2189
        %2191 = vmatmul.f32.gmra.mxu0 %v2142
        %v2192 = vpop.f32.mrf.mxu0
        %v2193 = vadd.f32 0.0, %v2192
        %2194 = vmatmul.f32.gmra.mxu0 %v2145
        %v2195 = vpop.f32.mrf.mxu0
        %v2196 = vadd.f32 0.0, %v2195
        %2197 = vmatmul.f32.gmra.mxu0 %v2148
        %v2198 = vpop.f32.mrf.mxu0
        %v2199 = vadd.f32 0.0, %v2198
        %2200 = vmatmul.f32.gmra.mxu0 %v2151
        %v2201 = vpop.f32.mrf.mxu0
        %v2202 = vadd.f32 0.0, %v2201
        %2203 = vmatmul.f32.gmra.mxu0 %v2154
        %v2204 = vpop.f32.mrf.mxu0
        %v2205 = vadd.f32 0.0, %v2204
        %2206 = vdwg.mxu0
        %v2208 = vsel %vm2125, %v2077, 0
        %v2211 = vsel %vm2156, %v2101, 0
        %2213 = vmatpush.msra.mxu0 0.0
        %2214 = vmatpush.msra.mxu0 0.0
        %2215 = vmatpush.msra.mxu0 0.0
        %2216 = vmatpush.msra.mxu0 0.0
        %2217 = vmatpush.msra.mxu0 0.0
        %2218 = vmatpush.msra.mxu0 %v2211
        %2219 = vmatpush.msra.mxu0 %v2100
        %2220 = vmatpush.msra.mxu0 %v2099
        %2221 = vmatpush.msra.mxu0 %v2098
        %2222 = vmatpush.msra.mxu0 %v2097
        %2223 = vmatpush.msra.mxu0 %v2096
        %2224 = vmatpush.msra.mxu0 %v2095
        %2225 = vmatpush.msra.mxu0 %v2094
        %2226 = vmatpush.msra.mxu0 %v2093
        %2227 = vmatpush.msra.mxu0 %v2092
        %2228 = vmatpush.msra.mxu0 %v2091
        %2229 = vmatmul.f32.gmra.mxu0 %v2208
        %v2230 = vpop.f32.mrf.mxu0
        %v2231 = vadd.f32 %v2178, %v2230
        %2232 = vmatmul.f32.gmra.mxu0 %v2127
        %v2233 = vpop.f32.mrf.mxu0
        %v2234 = vadd.f32 %v2181, %v2233
        %2235 = vmatmul.f32.gmra.mxu0 %v2130
        %v2236 = vpop.f32.mrf.mxu0
        %v2237 = vadd.f32 %v2184, %v2236
        %2238 = vmatmul.f32.gmra.mxu0 %v2133
        %v2239 = vpop.f32.mrf.mxu0
        %v2240 = vadd.f32 %v2187, %v2239
        %2241 = vmatmul.f32.gmra.mxu0 %v2136
        %v2242 = vpop.f32.mrf.mxu0
        %v2243 = vadd.f32 %v2190, %v2242
        %2244 = vmatmul.f32.gmra.mxu0 %v2139
        %v2245 = vpop.f32.mrf.mxu0
        %v2246 = vadd.f32 %v2193, %v2245
        %2247 = vmatmul.f32.gmra.mxu0 %v2142
        %v2248 = vpop.f32.mrf.mxu0
        %v2249 = vadd.f32 %v2196, %v2248
        %2250 = vmatmul.f32.gmra.mxu0 %v2145
        %v2251 = vpop.f32.mrf.mxu0
        %v2252 = vadd.f32 %v2199, %v2251
        %2253 = vmatmul.f32.gmra.mxu0 %v2148
        %v2254 = vpop.f32.mrf.mxu0
        %v2255 = vadd.f32 %v2202, %v2254
        %2256 = vmatmul.f32.gmra.mxu0 %v2151
        %v2257 = vpop.f32.mrf.mxu0
        %v2258 = vadd.f32 %v2205, %v2257
        %2259 = vdwg.mxu0
        %s2260 = scalar_lea.vmem %s4, 88
        %v2261 = vld [vmem:[%s2260] sm:$0xff]
        %v2262 = vld [vmem:[%s2260 + $0x8] sm:$0xff]
        %v2263 = vld [vmem:[%s2260 + $0x10] sm:$0xff]
        %v2264 = vld [vmem:[%s2260 + $0x18] sm:$0xff]
        %v2265 = vld [vmem:[%s2260 + $0x20] sm:$0xff]
        %v2266 = vld [vmem:[%s2260 + $0x28] sm:$0xff]
        %v2267 = vld [vmem:[%s2260 + $0x30] sm:$0xff]
        %v2268 = vld [vmem:[%s2260 + $0x38] sm:$0xff]
        %v2269 = vld [vmem:[%s2260 + $0x40] sm:$0xff]
        %v2270 = vld [vmem:[%s2260 + $0x48] sm:$0xff]
        %v2271 = vld [vmem:[%s2260 + $0x50] sm:$0xf]
        %v2273 = vsel %vm2156, %v2271, 0
        %2275 = vmatpush.msra.mxu0 0.0
        %2276 = vmatpush.msra.mxu0 0.0
        %2277 = vmatpush.msra.mxu0 0.0
        %2278 = vmatpush.msra.mxu0 0.0
        %2279 = vmatpush.msra.mxu0 0.0
        %2280 = vmatpush.msra.mxu0 %v2273
        %2281 = vmatpush.msra.mxu0 %v2270
        %2282 = vmatpush.msra.mxu0 %v2269
        %2283 = vmatpush.msra.mxu0 %v2268
        %2284 = vmatpush.msra.mxu0 %v2267
        %2285 = vmatpush.msra.mxu0 %v2266
        %2286 = vmatpush.msra.mxu0 %v2265
        %2287 = vmatpush.msra.mxu0 %v2264
        %2288 = vmatpush.msra.mxu0 %v2263
        %2289 = vmatpush.msra.mxu0 %v2262
        %2290 = vmatpush.msra.mxu0 %v2261
        %2291 = vmatmul.f32.gmra.mxu0 %v2127
        %v2292 = vpop.f32.mrf.mxu0
        %v2293 = vadd.f32 0.0, %v2292
        %2294 = vmatmul.f32.gmra.mxu0 %v2130
        %v2295 = vpop.f32.mrf.mxu0
        %v2296 = vadd.f32 0.0, %v2295
        %2297 = vmatmul.f32.gmra.mxu0 %v2133
        %v2298 = vpop.f32.mrf.mxu0
        %v2299 = vadd.f32 0.0, %v2298
        %2300 = vmatmul.f32.gmra.mxu0 %v2136
        %v2301 = vpop.f32.mrf.mxu0
        %v2302 = vadd.f32 0.0, %v2301
        %2303 = vmatmul.f32.gmra.mxu0 %v2139
        %v2304 = vpop.f32.mrf.mxu0
        %v2305 = vadd.f32 0.0, %v2304
        %2306 = vmatmul.f32.gmra.mxu0 %v2142
        %v2307 = vpop.f32.mrf.mxu0
        %v2308 = vadd.f32 0.0, %v2307
        %2309 = vmatmul.f32.gmra.mxu0 %v2145
        %v2310 = vpop.f32.mrf.mxu0
        %v2311 = vadd.f32 0.0, %v2310
        %2312 = vmatmul.f32.gmra.mxu0 %v2148
        %v2313 = vpop.f32.mrf.mxu0
        %v2314 = vadd.f32 0.0, %v2313
        %2315 = vmatmul.f32.gmra.mxu0 %v2151
        %v2316 = vpop.f32.mrf.mxu0
        %v2317 = vadd.f32 0.0, %v2316
        %2318 = vmatmul.f32.gmra.mxu0 %v2154
        %v2319 = vpop.f32.mrf.mxu0
        %v2320 = vadd.f32 0.0, %v2319
        %2321 = vdwg.mxu0
        %v2323 = vsel %vm2156, %v2112, 0
        %2325 = vmatpush.msra.mxu0 0.0
        %2326 = vmatpush.msra.mxu0 0.0
        %2327 = vmatpush.msra.mxu0 0.0
        %2328 = vmatpush.msra.mxu0 0.0
        %2329 = vmatpush.msra.mxu0 0.0
        %2330 = vmatpush.msra.mxu0 %v2323
        %2331 = vmatpush.msra.mxu0 %v2111
        %2332 = vmatpush.msra.mxu0 %v2110
        %2333 = vmatpush.msra.mxu0 %v2109
        %2334 = vmatpush.msra.mxu0 %v2108
        %2335 = vmatpush.msra.mxu0 %v2107
        %2336 = vmatpush.msra.mxu0 %v2106
        %2337 = vmatpush.msra.mxu0 %v2105
        %2338 = vmatpush.msra.mxu0 %v2104
        %2339 = vmatpush.msra.mxu0 %v2103
        %2340 = vmatpush.msra.mxu0 %v2102
        %2341 = vmatmul.f32.gmra.mxu0 %v2208
        %v2342 = vpop.f32.mrf.mxu0
        %v2343 = vadd.f32 %v2293, %v2342
        %2344 = vmatmul.f32.gmra.mxu0 %v2127
        %v2345 = vpop.f32.mrf.mxu0
        %v2346 = vadd.f32 %v2296, %v2345
        %2347 = vmatmul.f32.gmra.mxu0 %v2130
        %v2348 = vpop.f32.mrf.mxu0
        %v2349 = vadd.f32 %v2299, %v2348
        %2350 = vmatmul.f32.gmra.mxu0 %v2133
        %v2351 = vpop.f32.mrf.mxu0
        %v2352 = vadd.f32 %v2302, %v2351
        %2353 = vmatmul.f32.gmra.mxu0 %v2136
        %v2354 = vpop.f32.mrf.mxu0
        %v2355 = vadd.f32 %v2305, %v2354
        %2356 = vmatmul.f32.gmra.mxu0 %v2139
        %v2357 = vpop.f32.mrf.mxu0
        %v2358 = vadd.f32 %v2308, %v2357
        %2359 = vmatmul.f32.gmra.mxu0 %v2142
        %v2360 = vpop.f32.mrf.mxu0
        %v2361 = vadd.f32 %v2311, %v2360
        %2362 = vmatmul.f32.gmra.mxu0 %v2145
        %v2363 = vpop.f32.mrf.mxu0
        %v2364 = vadd.f32 %v2314, %v2363
        %2365 = vmatmul.f32.gmra.mxu0 %v2148
        %v2366 = vpop.f32.mrf.mxu0
        %v2367 = vadd.f32 %v2317, %v2366
        %2368 = vmatmul.f32.gmra.mxu0 %v2151
        %v2369 = vpop.f32.mrf.mxu0
        %v2370 = vadd.f32 %v2320, %v2369
        %2371 = vdwg.mxu0
        %s2372 = scalar_lea.vmem %s3, 176
        %v2373 = vld [vmem:[%s2372] sm:$0xff]
        %v2374 = vld [vmem:[%s2372 + $0x8] sm:$0xff]
        %v2375 = vld [vmem:[%s2372 + $0x10] sm:$0xff]
        %v2376 = vld [vmem:[%s2372 + $0x18] sm:$0xff]
        %v2377 = vld [vmem:[%s2372 + $0x20] sm:$0xff]
        %v2378 = vld [vmem:[%s2372 + $0x28] sm:$0xff]
        %v2379 = vld [vmem:[%s2372 + $0x30] sm:$0xff]
        %v2380 = vld [vmem:[%s2372 + $0x38] sm:$0xff]
        %v2381 = vld [vmem:[%s2372 + $0x40] sm:$0xff]
        %v2382 = vld [vmem:[%s2372 + $0x48] sm:$0xff]
        %v2383 = vld [vmem:[%s2372 + $0x50] sm:$0xf]
        %v2385 = vsel %vm2125, %v2088, 0
        %v2388 = vsel %vm2156, %v2383, 0
        %2390 = vmatpush.msra.mxu0 0.0
        %2391 = vmatpush.msra.mxu0 0.0
        %2392 = vmatpush.msra.mxu0 0.0
        %2393 = vmatpush.msra.mxu0 0.0
        %2394 = vmatpush.msra.mxu0 0.0
        %2395 = vmatpush.msra.mxu0 %v2388
        %2396 = vmatpush.msra.mxu0 %v2382
        %2397 = vmatpush.msra.mxu0 %v2381
        %2398 = vmatpush.msra.mxu0 %v2380
        %2399 = vmatpush.msra.mxu0 %v2379
        %2400 = vmatpush.msra.mxu0 %v2378
        %2401 = vmatpush.msra.mxu0 %v2377
        %2402 = vmatpush.msra.mxu0 %v2376
        %2403 = vmatpush.msra.mxu0 %v2375
        %2404 = vmatpush.msra.mxu0 %v2374
        %2405 = vmatpush.msra.mxu0 %v2373
        %2406 = vmatmul.f32.gmra.mxu0 %v2130
        %v2407 = vpop.f32.mrf.mxu0
        %v2408 = vadd.f32 0.0, %v2407
        %2409 = vmatmul.f32.gmra.mxu0 %v2133
        %v2410 = vpop.f32.mrf.mxu0
        %v2411 = vadd.f32 0.0, %v2410
        %2412 = vmatmul.f32.gmra.mxu0 %v2136
        %v2413 = vpop.f32.mrf.mxu0
        %v2414 = vadd.f32 0.0, %v2413
        %2415 = vmatmul.f32.gmra.mxu0 %v2139
        %v2416 = vpop.f32.mrf.mxu0
        %v2417 = vadd.f32 0.0, %v2416
        %2418 = vmatmul.f32.gmra.mxu0 %v2142
        %v2419 = vpop.f32.mrf.mxu0
        %v2420 = vadd.f32 0.0, %v2419
        %2421 = vmatmul.f32.gmra.mxu0 %v2145
        %v2422 = vpop.f32.mrf.mxu0
        %v2423 = vadd.f32 0.0, %v2422
        %2424 = vmatmul.f32.gmra.mxu0 %v2148
        %v2425 = vpop.f32.mrf.mxu0
        %v2426 = vadd.f32 0.0, %v2425
        %2427 = vmatmul.f32.gmra.mxu0 %v2151
        %v2428 = vpop.f32.mrf.mxu0
        %v2429 = vadd.f32 0.0, %v2428
        %2430 = vmatmul.f32.gmra.mxu0 %v2154
        %v2431 = vpop.f32.mrf.mxu0
        %v2432 = vadd.f32 0.0, %v2431
        %2433 = vmatmul.f32.gmra.mxu0 %v2385
        %v2434 = vpop.f32.mrf.mxu0
        %v2435 = vadd.f32 0.0, %v2434
        %2436 = vdwg.mxu0
        %v2437 = vadd.f32 %v2231, %v2408
        %v2438 = vadd.f32 %v2234, %v2411
        %v2439 = vadd.f32 %v2237, %v2414
        %v2440 = vadd.f32 %v2240, %v2417
        %v2441 = vadd.f32 %v2243, %v2420
        %v2442 = vadd.f32 %v2246, %v2423
        %v2443 = vadd.f32 %v2249, %v2426
        %v2444 = vadd.f32 %v2252, %v2429
        %v2445 = vadd.f32 %v2255, %v2432
        %v2446 = vadd.f32 %v2258, %v2435
        %s2447 = scalar_lea.vmem %s4, 176
        %v2448 = vld [vmem:[%s2447] sm:$0xff]
        %v2449 = vld [vmem:[%s2447 + $0x8] sm:$0xff]
        %v2450 = vld [vmem:[%s2447 + $0x10] sm:$0xff]
        %v2451 = vld [vmem:[%s2447 + $0x18] sm:$0xff]
        %v2452 = vld [vmem:[%s2447 + $0x20] sm:$0xff]
        %v2453 = vld [vmem:[%s2447 + $0x28] sm:$0xff]
        %v2454 = vld [vmem:[%s2447 + $0x30] sm:$0xff]
        %v2455 = vld [vmem:[%s2447 + $0x38] sm:$0xff]
        %v2456 = vld [vmem:[%s2447 + $0x40] sm:$0xff]
        %v2457 = vld [vmem:[%s2447 + $0x48] sm:$0xff]
        %v2458 = vld [vmem:[%s2447 + $0x50] sm:$0xf]
        %v2460 = vsel %vm2156, %v2458, 0
        %2462 = vmatpush.msra.mxu0 0.0
        %2463 = vmatpush.msra.mxu0 0.0
        %2464 = vmatpush.msra.mxu0 0.0
        %2465 = vmatpush.msra.mxu0 0.0
        %2466 = vmatpush.msra.mxu0 0.0
        %2467 = vmatpush.msra.mxu0 %v2460
        %2468 = vmatpush.msra.mxu0 %v2457
        %2469 = vmatpush.msra.mxu0 %v2456
        %2470 = vmatpush.msra.mxu0 %v2455
        %2471 = vmatpush.msra.mxu0 %v2454
        %2472 = vmatpush.msra.mxu0 %v2453
        %2473 = vmatpush.msra.mxu0 %v2452
        %2474 = vmatpush.msra.mxu0 %v2451
        %2475 = vmatpush.msra.mxu0 %v2450
        %2476 = vmatpush.msra.mxu0 %v2449
        %2477 = vmatpush.msra.mxu0 %v2448
        %2478 = vmatmul.f32.gmra.mxu0 %v2130
        %v2479 = vpop.f32.mrf.mxu0
        %v2480 = vadd.f32 0.0, %v2479
        %2481 = vmatmul.f32.gmra.mxu0 %v2133
        %v2482 = vpop.f32.mrf.mxu0
        %v2483 = vadd.f32 0.0, %v2482
        %2484 = vmatmul.f32.gmra.mxu0 %v2136
        %v2485 = vpop.f32.mrf.mxu0
        %v2486 = vadd.f32 0.0, %v2485
        %2487 = vmatmul.f32.gmra.mxu0 %v2139
        %v2488 = vpop.f32.mrf.mxu0
        %v2489 = vadd.f32 0.0, %v2488
        %2490 = vmatmul.f32.gmra.mxu0 %v2142
        %v2491 = vpop.f32.mrf.mxu0
        %v2492 = vadd.f32 0.0, %v2491
        %2493 = vmatmul.f32.gmra.mxu0 %v2145
        %v2494 = vpop.f32.mrf.mxu0
        %v2495 = vadd.f32 0.0, %v2494
        %2496 = vmatmul.f32.gmra.mxu0 %v2148
        %v2497 = vpop.f32.mrf.mxu0
        %v2498 = vadd.f32 0.0, %v2497
        %2499 = vmatmul.f32.gmra.mxu0 %v2151
        %v2500 = vpop.f32.mrf.mxu0
        %v2501 = vadd.f32 0.0, %v2500
        %2502 = vmatmul.f32.gmra.mxu0 %v2154
        %v2503 = vpop.f32.mrf.mxu0
        %v2504 = vadd.f32 0.0, %v2503
        %2505 = vmatmul.f32.gmra.mxu0 %v2385
        %v2506 = vpop.f32.mrf.mxu0
        %v2507 = vadd.f32 0.0, %v2506
        %2508 = vdwg.mxu0
        %v2509 = vadd.f32 %v2343, %v2480
        %v2510 = vadd.f32 %v2346, %v2483
        %v2511 = vadd.f32 %v2349, %v2486
        %v2512 = vadd.f32 %v2352, %v2489
        %v2513 = vadd.f32 %v2355, %v2492
        %v2514 = vadd.f32 %v2358, %v2495
        %v2515 = vadd.f32 %v2361, %v2498
        %v2516 = vadd.f32 %v2364, %v2501
        %v2517 = vadd.f32 %v2367, %v2504
        %v2518 = vadd.f32 %v2370, %v2507
        %s2519 = scalar_lea.vmem %s3, 264
        %v2520 = vld [vmem:[%s2519] sm:$0xff]
        %v2521 = vld [vmem:[%s2519 + $0x8] sm:$0xff]
        %v2522 = vld [vmem:[%s2519 + $0x10] sm:$0xff]
        %v2523 = vld [vmem:[%s2519 + $0x18] sm:$0xff]
        %v2524 = vld [vmem:[%s2519 + $0x20] sm:$0xff]
        %v2525 = vld [vmem:[%s2519 + $0x28] sm:$0xff]
        %v2526 = vld [vmem:[%s2519 + $0x30] sm:$0xff]
        %v2527 = vld [vmem:[%s2519 + $0x38] sm:$0xff]
        %v2528 = vld [vmem:[%s2519 + $0x40] sm:$0xff]
        %v2529 = vld [vmem:[%s2519 + $0x48] sm:$0xff]
        %v2530 = vld [vmem:[%s2519 + $0x50] sm:$0xf]
        %v2532 = vsel %vm2125, %v2089, 0
        %v2535 = vsel %vm2156, %v2530, 0
        %2537 = vmatpush.msra.mxu0 0.0
        %2538 = vmatpush.msra.mxu0 0.0
        %2539 = vmatpush.msra.mxu0 0.0
        %2540 = vmatpush.msra.mxu0 0.0
        %2541 = vmatpush.msra.mxu0 0.0
        %2542 = vmatpush.msra.mxu0 %v2535
        %2543 = vmatpush.msra.mxu0 %v2529
        %2544 = vmatpush.msra.mxu0 %v2528
        %2545 = vmatpush.msra.mxu0 %v2527
        %2546 = vmatpush.msra.mxu0 %v2526
        %2547 = vmatpush.msra.mxu0 %v2525
        %2548 = vmatpush.msra.mxu0 %v2524
        %2549 = vmatpush.msra.mxu0 %v2523
        %2550 = vmatpush.msra.mxu0 %v2522
        %2551 = vmatpush.msra.mxu0 %v2521
        %2552 = vmatpush.msra.mxu0 %v2520
        %2553 = vmatmul.f32.gmra.mxu0 %v2133
        %v2554 = vpop.f32.mrf.mxu0
        %v2555 = vadd.f32 0.0, %v2554
        %2556 = vmatmul.f32.gmra.mxu0 %v2136
        %v2557 = vpop.f32.mrf.mxu0
        %v2558 = vadd.f32 0.0, %v2557
        %2559 = vmatmul.f32.gmra.mxu0 %v2139
        %v2560 = vpop.f32.mrf.mxu0
        %v2561 = vadd.f32 0.0, %v2560
        %2562 = vmatmul.f32.gmra.mxu0 %v2142
        %v2563 = vpop.f32.mrf.mxu0
        %v2564 = vadd.f32 0.0, %v2563
        %2565 = vmatmul.f32.gmra.mxu0 %v2145
        %v2566 = vpop.f32.mrf.mxu0
        %v2567 = vadd.f32 0.0, %v2566
        %2568 = vmatmul.f32.gmra.mxu0 %v2148
        %v2569 = vpop.f32.mrf.mxu0
        %v2570 = vadd.f32 0.0, %v2569
        %2571 = vmatmul.f32.gmra.mxu0 %v2151
        %v2572 = vpop.f32.mrf.mxu0
        %v2573 = vadd.f32 0.0, %v2572
        %2574 = vmatmul.f32.gmra.mxu0 %v2154
        %v2575 = vpop.f32.mrf.mxu0
        %v2576 = vadd.f32 0.0, %v2575
        %2577 = vmatmul.f32.gmra.mxu0 %v2385
        %v2578 = vpop.f32.mrf.mxu0
        %v2579 = vadd.f32 0.0, %v2578
        %2580 = vmatmul.f32.gmra.mxu0 %v2532
        %v2581 = vpop.f32.mrf.mxu0
        %v2582 = vadd.f32 0.0, %v2581
        %2583 = vdwg.mxu0
        %v2584 = vadd.f32 %v2437, %v2555
        %v2585 = vadd.f32 %v2438, %v2558
        %v2586 = vadd.f32 %v2439, %v2561
        %v2587 = vadd.f32 %v2440, %v2564
        %v2588 = vadd.f32 %v2441, %v2567
        %v2589 = vadd.f32 %v2442, %v2570
        %v2590 = vadd.f32 %v2443, %v2573
        %v2591 = vadd.f32 %v2444, %v2576
        %v2592 = vadd.f32 %v2445, %v2579
        %v2593 = vadd.f32 %v2446, %v2582
        %s2594 = scalar_lea.vmem %s4, 264
        %v2595 = vld [vmem:[%s2594] sm:$0xff]
        %v2596 = vld [vmem:[%s2594 + $0x8] sm:$0xff]
        %v2597 = vld [vmem:[%s2594 + $0x10] sm:$0xff]
        %v2598 = vld [vmem:[%s2594 + $0x18] sm:$0xff]
        %v2599 = vld [vmem:[%s2594 + $0x20] sm:$0xff]
        %v2600 = vld [vmem:[%s2594 + $0x28] sm:$0xff]
        %v2601 = vld [vmem:[%s2594 + $0x30] sm:$0xff]
        %v2602 = vld [vmem:[%s2594 + $0x38] sm:$0xff]
        %v2603 = vld [vmem:[%s2594 + $0x40] sm:$0xff]
        %v2604 = vld [vmem:[%s2594 + $0x48] sm:$0xff]
        %v2605 = vld [vmem:[%s2594 + $0x50] sm:$0xf]
        %v2607 = vsel %vm2156, %v2605, 0
        %2609 = vmatpush.msra.mxu0 0.0
        %2610 = vmatpush.msra.mxu0 0.0
        %2611 = vmatpush.msra.mxu0 0.0
        %2612 = vmatpush.msra.mxu0 0.0
        %2613 = vmatpush.msra.mxu0 0.0
        %2614 = vmatpush.msra.mxu0 %v2607
        %2615 = vmatpush.msra.mxu0 %v2604
        %2616 = vmatpush.msra.mxu0 %v2603
        %2617 = vmatpush.msra.mxu0 %v2602
        %2618 = vmatpush.msra.mxu0 %v2601
        %2619 = vmatpush.msra.mxu0 %v2600
        %2620 = vmatpush.msra.mxu0 %v2599
        %2621 = vmatpush.msra.mxu0 %v2598
        %2622 = vmatpush.msra.mxu0 %v2597
        %2623 = vmatpush.msra.mxu0 %v2596
        %2624 = vmatpush.msra.mxu0 %v2595
        %2625 = vmatmul.f32.gmra.mxu0 %v2133
        %v2626 = vpop.f32.mrf.mxu0
        %v2627 = vadd.f32 0.0, %v2626
        %2628 = vmatmul.f32.gmra.mxu0 %v2136
        %v2629 = vpop.f32.mrf.mxu0
        %v2630 = vadd.f32 0.0, %v2629
        %2631 = vmatmul.f32.gmra.mxu0 %v2139
        %v2632 = vpop.f32.mrf.mxu0
        %v2633 = vadd.f32 0.0, %v2632
        %2634 = vmatmul.f32.gmra.mxu0 %v2142
        %v2635 = vpop.f32.mrf.mxu0
        %v2636 = vadd.f32 0.0, %v2635
        %2637 = vmatmul.f32.gmra.mxu0 %v2145
        %v2638 = vpop.f32.mrf.mxu0
        %v2639 = vadd.f32 0.0, %v2638
        %2640 = vmatmul.f32.gmra.mxu0 %v2148
        %v2641 = vpop.f32.mrf.mxu0
        %v2642 = vadd.f32 0.0, %v2641
        %2643 = vmatmul.f32.gmra.mxu0 %v2151
        %v2644 = vpop.f32.mrf.mxu0
        %v2645 = vadd.f32 0.0, %v2644
        %2646 = vmatmul.f32.gmra.mxu0 %v2154
        %v2647 = vpop.f32.mrf.mxu0
        %v2648 = vadd.f32 0.0, %v2647
        %2649 = vmatmul.f32.gmra.mxu0 %v2385
        %v2650 = vpop.f32.mrf.mxu0
        %v2651 = vadd.f32 0.0, %v2650
        %2652 = vmatmul.f32.gmra.mxu0 %v2532
        %v2653 = vpop.f32.mrf.mxu0
        %v2654 = vadd.f32 0.0, %v2653
        %2655 = vdwg.mxu0
        %v2656 = vadd.f32 %v2509, %v2627
        %v2657 = vadd.f32 %v2510, %v2630
        %v2658 = vadd.f32 %v2511, %v2633
        %v2659 = vadd.f32 %v2512, %v2636
        %v2660 = vadd.f32 %v2513, %v2639
        %v2661 = vadd.f32 %v2514, %v2642
        %v2662 = vadd.f32 %v2515, %v2645
        %v2663 = vadd.f32 %v2516, %v2648
        %v2664 = vadd.f32 %v2517, %v2651
        %v2665 = vadd.f32 %v2518, %v2654
        %s2666 = scalar_lea.vmem %s3, 352
        %v2667 = vld [vmem:[%s2666] sm:$0xff]
        %v2668 = vld [vmem:[%s2666 + $0x8] sm:$0xff]
        %v2669 = vld [vmem:[%s2666 + $0x10] sm:$0xff]
        %v2670 = vld [vmem:[%s2666 + $0x18] sm:$0xff]
        %v2671 = vld [vmem:[%s2666 + $0x20] sm:$0xff]
        %v2672 = vld [vmem:[%s2666 + $0x28] sm:$0xff]
        %v2673 = vld [vmem:[%s2666 + $0x30] sm:$0xff]
        %v2674 = vld [vmem:[%s2666 + $0x38] sm:$0xff]
        %v2675 = vld [vmem:[%s2666 + $0x40] sm:$0xff]
        %v2676 = vld [vmem:[%s2666 + $0x48] sm:$0xff]
        %v2677 = vld [vmem:[%s2666 + $0x50] sm:$0xf]
        %v2679 = vsel %vm2125, %v2090, 0
        %v2682 = vsel %vm2156, %v2677, 0
        %2684 = vmatpush.msra.mxu0 0.0
        %2685 = vmatpush.msra.mxu0 0.0
        %2686 = vmatpush.msra.mxu0 0.0
        %2687 = vmatpush.msra.mxu0 0.0
        %2688 = vmatpush.msra.mxu0 0.0
        %2689 = vmatpush.msra.mxu0 %v2682
        %2690 = vmatpush.msra.mxu0 %v2676
        %2691 = vmatpush.msra.mxu0 %v2675
        %2692 = vmatpush.msra.mxu0 %v2674
        %2693 = vmatpush.msra.mxu0 %v2673
        %2694 = vmatpush.msra.mxu0 %v2672
        %2695 = vmatpush.msra.mxu0 %v2671
        %2696 = vmatpush.msra.mxu0 %v2670
        %2697 = vmatpush.msra.mxu0 %v2669
        %2698 = vmatpush.msra.mxu0 %v2668
        %2699 = vmatpush.msra.mxu0 %v2667
        %2700 = vmatmul.f32.gmra.mxu0 %v2136
        %v2701 = vpop.f32.mrf.mxu0
        %v2702 = vadd.f32 0.0, %v2701
        %2703 = vmatmul.f32.gmra.mxu0 %v2139
        %v2704 = vpop.f32.mrf.mxu0
        %v2705 = vadd.f32 0.0, %v2704
        %2706 = vmatmul.f32.gmra.mxu0 %v2142
        %v2707 = vpop.f32.mrf.mxu0
        %v2708 = vadd.f32 0.0, %v2707
        %2709 = vmatmul.f32.gmra.mxu0 %v2145
        %v2710 = vpop.f32.mrf.mxu0
        %v2711 = vadd.f32 0.0, %v2710
        %2712 = vmatmul.f32.gmra.mxu0 %v2148
        %v2713 = vpop.f32.mrf.mxu0
        %v2714 = vadd.f32 0.0, %v2713
        %2715 = vmatmul.f32.gmra.mxu0 %v2151
        %v2716 = vpop.f32.mrf.mxu0
        %v2717 = vadd.f32 0.0, %v2716
        %2718 = vmatmul.f32.gmra.mxu0 %v2154
        %v2719 = vpop.f32.mrf.mxu0
        %v2720 = vadd.f32 0.0, %v2719
        %2721 = vmatmul.f32.gmra.mxu0 %v2385
        %v2722 = vpop.f32.mrf.mxu0
        %v2723 = vadd.f32 0.0, %v2722
        %2724 = vmatmul.f32.gmra.mxu0 %v2532
        %v2725 = vpop.f32.mrf.mxu0
        %v2726 = vadd.f32 0.0, %v2725
        %2727 = vmatmul.f32.gmra.mxu0 %v2679
        %v2728 = vpop.f32.mrf.mxu0
        %v2729 = vadd.f32 0.0, %v2728
        %2730 = vdwg.mxu0
        %v2731 = vadd.f32 %v2584, %v2702
        %v2732 = vadd.f32 %v2585, %v2705
        %v2733 = vadd.f32 %v2586, %v2708
        %v2734 = vadd.f32 %v2587, %v2711
        %v2735 = vadd.f32 %v2588, %v2714
        %v2736 = vadd.f32 %v2589, %v2717
        %v2737 = vadd.f32 %v2590, %v2720
        %v2738 = vadd.f32 %v2591, %v2723
        %v2739 = vadd.f32 %v2592, %v2726
        %v2740 = vadd.f32 %v2593, %v2729
        %s2741 = scalar_lea.vmem %s4, 352
        %v2742 = vld [vmem:[%s2741] sm:$0xff]
        %v2743 = vld [vmem:[%s2741 + $0x8] sm:$0xff]
        %v2744 = vld [vmem:[%s2741 + $0x10] sm:$0xff]
        %v2745 = vld [vmem:[%s2741 + $0x18] sm:$0xff]
        %v2746 = vld [vmem:[%s2741 + $0x20] sm:$0xff]
        %v2747 = vld [vmem:[%s2741 + $0x28] sm:$0xff]
        %v2748 = vld [vmem:[%s2741 + $0x30] sm:$0xff]
        %v2749 = vld [vmem:[%s2741 + $0x38] sm:$0xff]
        %v2750 = vld [vmem:[%s2741 + $0x40] sm:$0xff]
        %v2751 = vld [vmem:[%s2741 + $0x48] sm:$0xff]
        %v2752 = vld [vmem:[%s2741 + $0x50] sm:$0xf]
        %v2754 = vsel %vm2156, %v2752, 0
        %2756 = vmatpush.msra.mxu0 0.0
        %2757 = vmatpush.msra.mxu0 0.0
        %2758 = vmatpush.msra.mxu0 0.0
        %2759 = vmatpush.msra.mxu0 0.0
        %2760 = vmatpush.msra.mxu0 0.0
        %2761 = vmatpush.msra.mxu0 %v2754
        %2762 = vmatpush.msra.mxu0 %v2751
        %2763 = vmatpush.msra.mxu0 %v2750
        %2764 = vmatpush.msra.mxu0 %v2749
        %2765 = vmatpush.msra.mxu0 %v2748
        %2766 = vmatpush.msra.mxu0 %v2747
        %2767 = vmatpush.msra.mxu0 %v2746
        %2768 = vmatpush.msra.mxu0 %v2745
        %2769 = vmatpush.msra.mxu0 %v2744
        %2770 = vmatpush.msra.mxu0 %v2743
        %2771 = vmatpush.msra.mxu0 %v2742
        %2772 = vmatmul.f32.gmra.mxu0 %v2136
        %v2773 = vpop.f32.mrf.mxu0
        %v2774 = vadd.f32 0.0, %v2773
        %2775 = vmatmul.f32.gmra.mxu0 %v2139
        %v2776 = vpop.f32.mrf.mxu0
        %v2777 = vadd.f32 0.0, %v2776
        %2778 = vmatmul.f32.gmra.mxu0 %v2142
        %v2779 = vpop.f32.mrf.mxu0
        %v2780 = vadd.f32 0.0, %v2779
        %2781 = vmatmul.f32.gmra.mxu0 %v2145
        %v2782 = vpop.f32.mrf.mxu0
        %v2783 = vadd.f32 0.0, %v2782
        %2784 = vmatmul.f32.gmra.mxu0 %v2148
        %v2785 = vpop.f32.mrf.mxu0
        %v2786 = vadd.f32 0.0, %v2785
        %2787 = vmatmul.f32.gmra.mxu0 %v2151
        %v2788 = vpop.f32.mrf.mxu0
        %v2789 = vadd.f32 0.0, %v2788
        %2790 = vmatmul.f32.gmra.mxu0 %v2154
        %v2791 = vpop.f32.mrf.mxu0
        %v2792 = vadd.f32 0.0, %v2791
        %2793 = vmatmul.f32.gmra.mxu0 %v2385
        %v2794 = vpop.f32.mrf.mxu0
        %v2795 = vadd.f32 0.0, %v2794
        %2796 = vmatmul.f32.gmra.mxu0 %v2532
        %v2797 = vpop.f32.mrf.mxu0
        %v2798 = vadd.f32 0.0, %v2797
        %2799 = vmatmul.f32.gmra.mxu0 %v2679
        %v2800 = vpop.f32.mrf.mxu0
        %v2801 = vadd.f32 0.0, %v2800
        %2802 = vdwg.mxu0
        %v2803 = vadd.f32 %v2656, %v2774
        %v2804 = vadd.f32 %v2657, %v2777
        %v2805 = vadd.f32 %v2658, %v2780
        %v2806 = vadd.f32 %v2659, %v2783
        %v2807 = vadd.f32 %v2660, %v2786
        %v2808 = vadd.f32 %v2661, %v2789
        %v2809 = vadd.f32 %v2662, %v2792
        %v2810 = vadd.f32 %v2663, %v2795
        %v2811 = vadd.f32 %v2664, %v2798
        %v2812 = vadd.f32 %v2665, %v2801
        %v2813 = vmax.f32 %v2731, %v2803
        %v2814 = vmax.f32 %v2732, %v2804
        %v2815 = vmax.f32 %v2733, %v2805
        %v2816 = vmax.f32 %v2734, %v2806
        %v2817 = vmax.f32 %v2735, %v2807
        %v2818 = vmax.f32 %v2736, %v2808
        %v2819 = vmax.f32 %v2737, %v2809
        %v2820 = vmax.f32 %v2738, %v2810
        %v2821 = vmax.f32 %v2739, %v2811
        %v2822 = vmax.f32 %v2740, %v2812
        %v2823 = vmax.f32 %v2813, %v2814
        %v2824 = vmax.f32 %v2815, %v2816
        %v2825 = vmax.f32 %v2817, %v2818
        %v2826 = vmax.f32 %v2819, %v2820
        %v2827 = vmax.f32 %v2821, %v2822
        %v2828 = vld [vmem:[%s8] sm:$0x1]
        %v2830 = vperm.slane %v2828, 0
        %v2832 = vadd.f32 %v2823, %v2830
        %v2833 = vadd.f32 %v2824, %v2830
        %v2834 = vadd.f32 %v2825, %v2830
        %v2835 = vadd.f32 %v2826, %v2830
        %v2836 = vadd.f32 %v2827, %v2830
        %v2837 = vmax.f32 %v2832, 0.0
        %v2838 = vmax.f32 %v2833, 0.0
        %v2839 = vmax.f32 %v2834, 0.0
        %v2840 = vmax.f32 %v2835, 0.0
        %v2841 = vmax.f32 %v2836, 0.0
        %v2842 = vld [vmem:[%s5] sm:$0xff]
        %v2843 = vld [vmem:[%s5 + $0x8] sm:$0xff]
        %v2844 = vld [vmem:[%s5 + $0x10] sm:$0xff]
        %v2845 = vld [vmem:[%s5 + $0x18] sm:$0xff]
        %v2846 = vld [vmem:[%s5 + $0x20] sm:$0xff]
        %v2847 = vld [vmem:[%s5 + $0x28] sm:$0xff]
        %v2848 = vld [vmem:[%s5 + $0x30] sm:$0xff]
        %v2849 = vld [vmem:[%s5 + $0x38] sm:$0xff]
        %v2850 = vld [vmem:[%s5 + $0x40] sm:$0xff]
        %v2851 = vld [vmem:[%s5 + $0x48] sm:$0xff]
        %s2852 = scalar_lea.vmem %s5, 80
        %v2853 = vld [vmem:[%s2852] sm:$0xff]
        %v2854 = vld [vmem:[%s2852 + $0x8] sm:$0xff]
        %v2855 = vld [vmem:[%s2852 + $0x10] sm:$0xff]
        %v2856 = vld [vmem:[%s2852 + $0x18] sm:$0xff]
        %v2857 = vld [vmem:[%s2852 + $0x20] sm:$0xff]
        %v2858 = vld [vmem:[%s2852 + $0x28] sm:$0xff]
        %v2859 = vld [vmem:[%s2852 + $0x30] sm:$0xff]
        %v2860 = vld [vmem:[%s2852 + $0x38] sm:$0xff]
        %v2861 = vld [vmem:[%s2852 + $0x40] sm:$0xff]
        %v2862 = vld [vmem:[%s2852 + $0x48] sm:$0xff]
        %vm2863 = vcmask 654336
        %v2865 = vsel %vm2863, %v2838, 0
        %2867 = vmatpush.msra.mxu0 0.0
        %2868 = vmatpush.msra.mxu0 0.0
        %2869 = vmatpush.msra.mxu0 0.0
        %2870 = vmatpush.msra.mxu0 0.0
        %2871 = vmatpush.msra.mxu0 0.0
        %2872 = vmatpush.msra.mxu0 0.0
        %2873 = vmatpush.msra.mxu0 %v2862
        %2874 = vmatpush.msra.mxu0 %v2861
        %2875 = vmatpush.msra.mxu0 %v2860
        %2876 = vmatpush.msra.mxu0 %v2859
        %2877 = vmatpush.msra.mxu0 %v2858
        %2878 = vmatpush.msra.mxu0 %v2857
        %2879 = vmatpush.msra.mxu0 %v2856
        %2880 = vmatpush.msra.mxu0 %v2855
        %2881 = vmatpush.msra.mxu0 %v2854
        %2882 = vmatpush.msra.mxu0 %v2853
        %2883 = vmatmul.f32.gmra.mxu0 %v2865
        %v2884 = vpop.f32.mrf.mxu0
        %v2885 = vadd.f32 0.0, %v2884
        %2886 = vdwg.mxu0
        %v2888 = vsel %vm2863, %v2837, 0
        %2890 = vmatpush.msra.mxu0 0.0
        %2891 = vmatpush.msra.mxu0 0.0
        %2892 = vmatpush.msra.mxu0 0.0
        %2893 = vmatpush.msra.mxu0 0.0
        %2894 = vmatpush.msra.mxu0 0.0
        %2895 = vmatpush.msra.mxu0 0.0
        %2896 = vmatpush.msra.mxu0 %v2851
        %2897 = vmatpush.msra.mxu0 %v2850
        %2898 = vmatpush.msra.mxu0 %v2849
        %2899 = vmatpush.msra.mxu0 %v2848
        %2900 = vmatpush.msra.mxu0 %v2847
        %2901 = vmatpush.msra.mxu0 %v2846
        %2902 = vmatpush.msra.mxu0 %v2845
        %2903 = vmatpush.msra.mxu0 %v2844
        %2904 = vmatpush.msra.mxu0 %v2843
        %2905 = vmatpush.msra.mxu0 %v2842
        %2906 = vmatmul.f32.gmra.mxu0 %v2888
        %v2907 = vpop.f32.mrf.mxu0
        %v2908 = vadd.f32 %v2885, %v2907
        %2909 = vdwg.mxu0
        %s2910 = scalar_lea.vmem %s5, 160
        %v2911 = vld [vmem:[%s2910] sm:$0xff]
        %v2912 = vld [vmem:[%s2910 + $0x8] sm:$0xff]
        %v2913 = vld [vmem:[%s2910 + $0x10] sm:$0xff]
        %v2914 = vld [vmem:[%s2910 + $0x18] sm:$0xff]
        %v2915 = vld [vmem:[%s2910 + $0x20] sm:$0xff]
        %v2916 = vld [vmem:[%s2910 + $0x28] sm:$0xff]
        %v2917 = vld [vmem:[%s2910 + $0x30] sm:$0xff]
        %v2918 = vld [vmem:[%s2910 + $0x38] sm:$0xff]
        %v2919 = vld [vmem:[%s2910 + $0x40] sm:$0xff]
        %v2920 = vld [vmem:[%s2910 + $0x48] sm:$0xff]
        %v2922 = vsel %vm2863, %v2839, 0
        %2924 = vmatpush.msra.mxu0 0.0
        %2925 = vmatpush.msra.mxu0 0.0
        %2926 = vmatpush.msra.mxu0 0.0
        %2927 = vmatpush.msra.mxu0 0.0
        %2928 = vmatpush.msra.mxu0 0.0
        %2929 = vmatpush.msra.mxu0 0.0
        %2930 = vmatpush.msra.mxu0 %v2920
        %2931 = vmatpush.msra.mxu0 %v2919
        %2932 = vmatpush.msra.mxu0 %v2918
        %2933 = vmatpush.msra.mxu0 %v2917
        %2934 = vmatpush.msra.mxu0 %v2916
        %2935 = vmatpush.msra.mxu0 %v2915
        %2936 = vmatpush.msra.mxu0 %v2914
        %2937 = vmatpush.msra.mxu0 %v2913
        %2938 = vmatpush.msra.mxu0 %v2912
        %2939 = vmatpush.msra.mxu0 %v2911
        %2940 = vmatmul.f32.gmra.mxu0 %v2922
        %v2941 = vpop.f32.mrf.mxu0
        %v2942 = vadd.f32 0.0, %v2941
        %2943 = vdwg.mxu0
        %v2944 = vadd.f32 %v2908, %v2942
        %s2945 = scalar_lea.vmem %s5, 240
        %v2946 = vld [vmem:[%s2945] sm:$0xff]
        %v2947 = vld [vmem:[%s2945 + $0x8] sm:$0xff]
        %v2948 = vld [vmem:[%s2945 + $0x10] sm:$0xff]
        %v2949 = vld [vmem:[%s2945 + $0x18] sm:$0xff]
        %v2950 = vld [vmem:[%s2945 + $0x20] sm:$0xff]
        %v2951 = vld [vmem:[%s2945 + $0x28] sm:$0xff]
        %v2952 = vld [vmem:[%s2945 + $0x30] sm:$0xff]
        %v2953 = vld [vmem:[%s2945 + $0x38] sm:$0xff]
        %v2954 = vld [vmem:[%s2945 + $0x40] sm:$0xff]
        %v2955 = vld [vmem:[%s2945 + $0x48] sm:$0xff]
        %v2957 = vsel %vm2863, %v2840, 0
        %2959 = vmatpush.msra.mxu0 0.0
        %2960 = vmatpush.msra.mxu0 0.0
        %2961 = vmatpush.msra.mxu0 0.0
        %2962 = vmatpush.msra.mxu0 0.0
        %2963 = vmatpush.msra.mxu0 0.0
        %2964 = vmatpush.msra.mxu0 0.0
        %2965 = vmatpush.msra.mxu0 %v2955
        %2966 = vmatpush.msra.mxu0 %v2954
        %2967 = vmatpush.msra.mxu0 %v2953
        %2968 = vmatpush.msra.mxu0 %v2952
        %2969 = vmatpush.msra.mxu0 %v2951
        %2970 = vmatpush.msra.mxu0 %v2950
        %2971 = vmatpush.msra.mxu0 %v2949
        %2972 = vmatpush.msra.mxu0 %v2948
        %2973 = vmatpush.msra.mxu0 %v2947
        %2974 = vmatpush.msra.mxu0 %v2946
        %2975 = vmatmul.f32.gmra.mxu0 %v2957
        %v2976 = vpop.f32.mrf.mxu0
        %v2977 = vadd.f32 0.0, %v2976
        %2978 = vdwg.mxu0
        %v2979 = vadd.f32 %v2944, %v2977
        %s2980 = scalar_lea.vmem %s5, 320
        %v2981 = vld [vmem:[%s2980] sm:$0xff]
        %v2982 = vld [vmem:[%s2980 + $0x8] sm:$0xff]
        %v2983 = vld [vmem:[%s2980 + $0x10] sm:$0xff]
        %v2984 = vld [vmem:[%s2980 + $0x18] sm:$0xff]
        %v2985 = vld [vmem:[%s2980 + $0x20] sm:$0xff]
        %v2986 = vld [vmem:[%s2980 + $0x28] sm:$0xff]
        %v2987 = vld [vmem:[%s2980 + $0x30] sm:$0xff]
        %v2988 = vld [vmem:[%s2980 + $0x38] sm:$0xff]
        %v2989 = vld [vmem:[%s2980 + $0x40] sm:$0xff]
        %v2990 = vld [vmem:[%s2980 + $0x48] sm:$0xff]
        %v2992 = vsel %vm2863, %v2841, 0
        %2994 = vmatpush.msra.mxu0 0.0
        %2995 = vmatpush.msra.mxu0 0.0
        %2996 = vmatpush.msra.mxu0 0.0
        %2997 = vmatpush.msra.mxu0 0.0
        %2998 = vmatpush.msra.mxu0 0.0
        %2999 = vmatpush.msra.mxu0 0.0
        %3000 = vmatpush.msra.mxu0 %v2990
        %3001 = vmatpush.msra.mxu0 %v2989
        %3002 = vmatpush.msra.mxu0 %v2988
        %3003 = vmatpush.msra.mxu0 %v2987
        %3004 = vmatpush.msra.mxu0 %v2986
        %3005 = vmatpush.msra.mxu0 %v2985
        %3006 = vmatpush.msra.mxu0 %v2984
        %3007 = vmatpush.msra.mxu0 %v2983
        %3008 = vmatpush.msra.mxu0 %v2982
        %3009 = vmatpush.msra.mxu0 %v2981
        %3010 = vmatmul.f32.gmra.mxu0 %v2992
        %v3011 = vpop.f32.mrf.mxu0
        %v3012 = vadd.f32 0.0, %v3011
        %3013 = vdwg.mxu0
        %v3014 = vadd.f32 %v2979, %v3012
        %v3015 = vld [vmem:[%s9] sm:$0x1]
        %v3017 = vperm.slane %v3015, 0
        %v3019 = vadd.f32 %v3014, %v3017
        %v3020 = vmax.f32 %v3019, 0.0
        %v3021 = vld [vmem:[%s6] sm:$0xff]
        %v3022 = vld [vmem:[%s6 + $0x8] sm:$0xff]
        %v3023 = vld [vmem:[%s6 + $0x10] sm:$0xff]
        %v3024 = vld [vmem:[%s6 + $0x18] sm:$0xff]
        %v3025 = vld [vmem:[%s6 + $0x20] sm:$0xff]
        %v3026 = vld [vmem:[%s6 + $0x28] sm:$0xff]
        %v3027 = vld [vmem:[%s6 + $0x30] sm:$0xff]
        %v3028 = vld [vmem:[%s6 + $0x38] sm:$0xff]
        %v3029 = vld [vmem:[%s6 + $0x40] sm:$0xff]
        %v3030 = vld [vmem:[%s6 + $0x48] sm:$0xff]
        %v3031 = vld [vmem:[%s6 + $0x50] sm:$0xff]
        %v3032 = vld [vmem:[%s6 + $0x58] sm:$0xff]
        %v3033 = vld [vmem:[%s6 + $0x60] sm:$0xff]
        %v3034 = vld [vmem:[%s6 + $0x68] sm:$0xff]
        %v3035 = vld [vmem:[%s6 + $0x70] sm:$0xff]
        %v3036 = vld [vmem:[%s10] sm:$0x1]
        %v3038 = vperm.slane %v3036, 0
        %vm3040 = vcmask 982016
        %v3042 = vsel %vm3040, %v3020, 0
        %3044 = vmatpush.msra.mxu0 0.0
        %3045 = vmatpush.msra.mxu0 %v3035
        %3046 = vmatpush.msra.mxu0 %v3034
        %3047 = vmatpush.msra.mxu0 %v3033
        %3048 = vmatpush.msra.mxu0 %v3032
        %3049 = vmatpush.msra.mxu0 %v3031
        %3050 = vmatpush.msra.mxu0 %v3030
        %3051 = vmatpush.msra.mxu0 %v3029
        %3052 = vmatpush.msra.mxu0 %v3028
        %3053 = vmatpush.msra.mxu0 %v3027
        %3054 = vmatpush.msra.mxu0 %v3026
        %3055 = vmatpush.msra.mxu0 %v3025
        %3056 = vmatpush.msra.mxu0 %v3024
        %3057 = vmatpush.msra.mxu0 %v3023
        %3058 = vmatpush.msra.mxu0 %v3022
        %3059 = vmatpush.msra.mxu0 %v3021
        %3060 = vmatmul.f32.gmra.mxu0 %v3042
        %v3061 = vpop.f32.mrf.mxu0
        %v3062 = vadd.f32 %v3038, %v3061
        %3063 = vdwg.mxu0
        %v3064 = vmax.f32 %v3062, 0.0
        %3065 = vst.msk [vmem:[%s581] sm:$0xff] %vm2125, %v3064
        %v3066 = vsel %vm2125, %v3064, -inf
        %3067 = vmax.xlane.f32.xlu0 %v3066
        %v3068 = vpop.xlane.xlu0 %3067
        %v3069 = vsub.f32 %v3064, %v3068
        %v3070 = vmul.f32 %v3069, 1.442695
        %v3071 = vpow.pop %v3070
        %v3072 = vsel %vm2125, %v3071, 0.0
        %3073 = vadd.xlane.f32.xlu0 %v3072
        %v3074 = vpop.xlane.xlu0 %3073
        %v3075 = vlog2.pop %v3074
        %v3076 = vmul.f32 %v3075, 0.6931472
        %v3077 = vsub.f32 %v3069, %v3076
        %3078 = vst.msk [vmem:[%s574] sm:$0xff] %vm2125, %v3077
        %s3079 = sand.u32 %s274, 1
        %s3080 = scalar_lea.sflag [#allocation4], %s3079
        %s3081 = sand.u32 %s274, 1
        %s3082 = smul.addr %s3081, 8
        %s3083 = scalar_lea.vmem [#allocation3], %s3082
        %s3084 = sand.u32 %s300, 1
        %s3085 = scalar_lea.sflag [#allocation6], %s3084
        %s3086 = sand.u32 %s300, 1
        %s3087 = smul.addr %s3086, 8
        %s3088 = scalar_lea.vmem [#allocation5], %s3087
        // Predicated region
        $region103: #{cifarnet_forward.1} parent=97 // pred_check
          %p3089 = pneg %p284
        $region104: #{cifarnet_forward.1} parent=97 // pred_check_branch
          %3091 = sbr.rel (%p3089) target = $region106
        $region105: #{cifarnet_forward.1} parent=97 // pred_region
          %3093 = vsyncadd %s3080, 0
          %s3094 = smul.addr %s30, 8
          %s3095 = scalar_lea.hbm %s11, %s3094
          %s3097 = sshll.u32 %s3083, 4
          %s3098 = int_to_ptr.vmem [resolvable:$true] %s3097
          %s3099 = sshll.u32 %s3095, 4
          %s3100 = int_to_ptr.hbm [resolvable:$true] %s3099
          %3102 = dma.vmem_to_hbm [thread:$0]  %s3098, 128, %s3100, %s3080
        $region106: #{cifarnet_forward.1} parent=97 // pred_fallthru
          _
        // Predicated region
        $region107: #{cifarnet_forward.1} parent=97 // pred_check
          %p3103 = pneg %p310
        $region108: #{cifarnet_forward.1} parent=97 // pred_check_branch
          %3105 = sbr.rel (%p3103) target = $region110
        $region109: #{cifarnet_forward.1} parent=97 // pred_region
          %3107 = vsyncadd %s3085, 0
          %s3108 = smul.addr %s30, 8
          %s3109 = scalar_lea.hbm %s12, %s3108
          %s3111 = sshll.u32 %s3088, 4
          %s3112 = int_to_ptr.vmem [resolvable:$true] %s3111
          %s3113 = sshll.u32 %s3109, 4
          %s3114 = int_to_ptr.hbm [resolvable:$true] %s3113
          %3116 = dma.vmem_to_hbm [thread:$0]  %s3112, 128, %s3114, %s3085
        $region110: #{cifarnet_forward.1} parent=97 // pred_fallthru
          _
      $region98: #{cifarnet_forward.1} parent=5 // pred_fallthru
        _
      %p3117 = scmp.le.s32.totalorder 2, %s25
      // Predicated region
      $region111: #{cifarnet_forward.1} parent=5 // pred_check
        %p3118 = pneg %p3117
      $region112: #{cifarnet_forward.1} parent=5 // pred_check_branch
        %3120 = sbr.rel (%p3118) target = $region114
      $region113: #{cifarnet_forward.1} parent=5 // pred_region
        %s3121 = ssub.s32 %s25, 2
        // Predicated region
        $region115: #{cifarnet_forward.1} parent=113 // pred_check
          %p3122 = pneg %p290
        $region116: #{cifarnet_forward.1} parent=113 // pred_check_branch
          %3124 = sbr.rel (%p3122) target = $region118
        $region117: #{cifarnet_forward.1} parent=113 // pred_region
          %s3125 = sand.u32 %s275, 1
          %s3126 = scalar_lea.sflag [#allocation4], %s3125
          %s3127 = sand.u32 %s275, 1
          %s3128 = smul.addr %s3127, 8
          %s3129 = scalar_lea.vmem [#allocation3], %s3128
          %3131 = dma.done %s3126, 128
        $region118: #{cifarnet_forward.1} parent=113 // pred_fallthru
          _
        // Predicated region
        $region119: #{cifarnet_forward.1} parent=113 // pred_check
          %p3132 = pneg %p316
        $region120: #{cifarnet_forward.1} parent=113 // pred_check_branch
          %3134 = sbr.rel (%p3132) target = $region122
        $region121: #{cifarnet_forward.1} parent=113 // pred_region
          %s3135 = sand.u32 %s301, 1
          %s3136 = scalar_lea.sflag [#allocation6], %s3135
          %s3137 = sand.u32 %s301, 1
          %s3138 = smul.addr %s3137, 8
          %s3139 = scalar_lea.vmem [#allocation5], %s3138
          %3141 = dma.done %s3136, 128
        $region122: #{cifarnet_forward.1} parent=113 // pred_fallthru
          _
      $region114: #{cifarnet_forward.1} parent=5 // pred_fallthru
        _
    $region6: #{cifarnet_forward.1} parent=1 // loop_footer
      %s29 = sadd.s32 1, %s25
    $region7: #{cifarnet_forward.1} parent=1 // loop_footer_branch
      %24 = sbr.rel target = $region3
    $region8: #{cifarnet_forward.1} parent=1 // loop_exit
      _
    %3142 = vsyncpa [#allocation4], 1
    %s3143 = scalar_lea.sflag [#allocation4], 1
    %3144 = vsyncpa %s3143, 1
    %3145 = vsyncpa [#allocation6], 1
    %s3146 = scalar_lea.sflag [#allocation6], 1
    %3147 = vsyncpa %s3146, 1

</llo_original>
